<compile_context>
chip_gen: v5e
topology: v5e:2x2
jax: 0.10.0
libtpu: 0.0.40
codegen_flags: <defaults>
</compile_context>

<pallas_src>
import jax
import jax.numpy as jnp
from jax import lax
from jax.experimental import pallas as pl
from jax.experimental.pallas import tpu as pltpu

EPS = 1e-5  # torch.nn.BatchNorm2d default


def basic_block_kernel(x_ref, w1_ref, w2_ref, g1_ref, b1_ref, g2_ref, b2_ref,
                       out_ref, xpad_ref, hpad_ref):
    """x_ref: (B, L, Cin) f32.  w*_ref: (K, Cin, Cout) bf16.  out_ref: (B*L, Cout) f32.

    xpad_ref / hpad_ref: (B, L + K - 1, C) bf16 staging scratch for the shifted conv reads.
    """
    K, Cin, Cmid = w1_ref.shape
    B, L, _ = x_ref.shape
    pad = (K - 1) // 2
    BL = B * L

    x_f32 = x_ref[...]                                   # residual + conv1 input (f32)

    # ---- stage a zero-padded bf16 copy of x (only the two pad slabs are zeroed) ----
    xpad_ref[:, :pad, :] = jnp.zeros((B, pad, Cin), xpad_ref.dtype)
    xpad_ref[:, pad + L:, :] = jnp.zeros((B, pad, Cin), xpad_ref.dtype)
    xpad_ref[:, pad:pad + L, :] = x_f32.astype(xpad_ref.dtype)

    # ---- conv1: K shifted bf16 matmuls with M = B*L, f32 accumulation on the MXU ----
    acc1 = jnp.zeros((BL, Cmid), jnp.float32)
    for k in range(K):                                   # K is small & static -> unrolled
        xk = xpad_ref[:, k:k + L, :].reshape(BL, Cin)    # (B*L, Cin) bf16
        acc1 = acc1 + jnp.dot(xk, w1_ref[k], preferred_element_type=jnp.float32)

    # ---- BN1 (training-mode batch stats over B*L) + ReLU; fused single-sweep stats ----
    m1 = jnp.mean(acc1, axis=0, keepdims=True)
    v1 = jnp.mean(acc1 * acc1, axis=0, keepdims=True) - m1 * m1
    h = (acc1 - m1) * lax.rsqrt(v1 + EPS) * g1_ref[...] + b1_ref[...]
    h = jnp.maximum(h, 0.0)

    # ---- stage zero-padded bf16 copy of h for conv2 ----
    hpad_ref[:, :pad, :] = jnp.zeros((B, pad, Cmid), hpad_ref.dtype)
    hpad_ref[:, pad + L:, :] = jnp.zeros((B, pad, Cmid), hpad_ref.dtype)
    hpad_ref[:, pad:pad + L, :] = h.reshape(B, L, Cmid).astype(hpad_ref.dtype)

    # ---- conv2 ----
    acc2 = jnp.zeros((BL, Cmid), jnp.float32)
    for k in range(K):
        hk = hpad_ref[:, k:k + L, :].reshape(BL, Cmid)
        acc2 = acc2 + jnp.dot(hk, w2_ref[k], preferred_element_type=jnp.float32)

    # ---- BN2 + identity residual + ReLU (all f32) ----
    m2 = jnp.mean(acc2, axis=0, keepdims=True)
    v2 = jnp.mean(acc2 * acc2, axis=0, keepdims=True) - m2 * m2
    o = (acc2 - m2) * lax.rsqrt(v2 + EPS) * g2_ref[...] + b2_ref[...]
    out_ref[...] = jnp.maximum(o + x_f32.reshape(BL, Cin), 0.0)


def basic_block_forward(x_nchw, w1, w2, g1, b1, g2, b2):
    """x_nchw: (N, Cin, H, W); w*: torch layout (Cout, Cin, 1, K); g*/b*: (C,)."""
    N, Cin, H, W = x_nchw.shape
    Cout, _, _, K = w1.shape
    assert K % 2 == 1, "only odd conv width supported"  # TODO(synk): even-width padding path
    assert Cin == Cout, "residual add requires inplanes == planes (downsample is None)"
    B, L = N * H, W

    # NCHW -> (B, L, C) channels-last rows (keep this layout between stacked blocks).
    x_blc = jnp.transpose(x_nchw, (0, 2, 3, 1)).reshape(B, L, Cin).astype(jnp.float32)

    # torch (Cout, Cin, 1, K) -> (K, Cin, Cout); bf16 for the MXU.
    w1_k = jnp.transpose(w1[:, :, 0, :], (2, 1, 0)).astype(jnp.bfloat16)
    w2_k = jnp.transpose(w2[:, :, 0, :], (2, 1, 0)).astype(jnp.bfloat16)
    g1_ = g1.reshape(1, -1).astype(jnp.float32)
    b1_ = b1.reshape(1, -1).astype(jnp.float32)
    g2_ = g2.reshape(1, -1).astype(jnp.float32)
    b2_ = b2.reshape(1, -1).astype(jnp.float32)

    vmem = pl.BlockSpec(memory_space=pltpu.MemorySpace.VMEM)
    out_2d = pl.pallas_call(
        basic_block_kernel,
        out_shape=jax.ShapeDtypeStruct((B * L, Cout), jnp.float32),
        in_specs=[vmem] * 7,
        out_specs=vmem,
        scratch_shapes=[pltpu.VMEM((B, L + K - 1, Cin), jnp.bfloat16),
                        pltpu.VMEM((B, L + K - 1, Cout), jnp.bfloat16)],
    )(x_blc, w1_k, w2_k, g1_, b1_, g2_, b2_)

    # (B*L, C) -> NCHW (reshape is free on the contiguous HBM array; one transpose back).
    return out_2d.reshape(N, H, W, Cout).transpose(0, 3, 1, 2)


# ---------------- pure-JAX reference (mirrors the PyTorch forward) ----------------
def reference_forward(x, w1, w2, g1, b1, g2, b2, matmul_dtype=jnp.float32):
    """matmul_dtype=bf16 models the kernel's MXU operand precision; accumulation and all
    BN / elementwise / residual math stays f32 (exactly as in the kernel)."""
    K = w1.shape[-1]
    pad = (K - 1) // 2

    def conv(t, w):
        return lax.conv_general_dilated(
            t.astype(matmul_dtype), w.astype(matmul_dtype),
            window_strides=(1, 1), padding=((0, 0), (pad, pad)),
            dimension_numbers=('NCHW', 'OIHW', 'NCHW'),
            preferred_element_type=jnp.float32)

    def bn(t, g, b):  # training-mode batch norm (biased batch variance)
        m = jnp.mean(t, axis=(0, 2, 3), keepdims=True)
        v = jnp.mean((t - m) ** 2, axis=(0, 2, 3), keepdims=True)
        return (t - m) * lax.rsqrt(v + EPS) * g.reshape(1, -1, 1, 1) + b.reshape(1, -1, 1, 1)

    out = jnp.maximum(bn(conv(x, w1), g1, b1), 0.0)
    out = bn(conv(out, w2), g2, b2)
    return jnp.maximum(out + x, 0.0)


if __name__ == "__main__":
    # Small shapes consistent with BasicBlock(inplanes=8, planes=8, width=9, stride=1)
    N, C, H, W = 2, 8, 4, 16
    KW = 9

    key = jax.random.PRNGKey(0)
    k_x, k_w1, k_w2, k_g1, k_b1, k_g2, k_b2 = jax.random.split(key, 7)

    x = jax.random.normal(k_x, (N, C, H, W), dtype=jnp.float32)
    w1 = 0.1 * jax.random.normal(k_w1, (C, C, 1, KW), dtype=jnp.float32)  # conv1 weight
    w2 = 0.1 * jax.random.normal(k_w2, (C, C, 1, KW), dtype=jnp.float32)  # conv2 weight
    g1 = 1.0 + 0.1 * jax.random.normal(k_g1, (C,), dtype=jnp.float32)     # BN1 gamma
    b1 = 0.1 * jax.random.normal(k_b1, (C,), dtype=jnp.float32)           # BN1 beta
    g2 = 1.0 + 0.1 * jax.random.normal(k_g2, (C,), dtype=jnp.float32)     # BN2 gamma
    b2 = 0.1 * jax.random.normal(k_b2, (C,), dtype=jnp.float32)           # BN2 beta

    out = jax.block_until_ready(basic_block_forward(x, w1, w2, g1, b1, g2, b2))
    assert out.shape == (N, C, H, W) and out.dtype == jnp.float32

    # Tight check vs. a reference that matches the kernel's mixed precision
    # (bf16 matmul operands, f32 accumulation / BN / residual).
    ref_mp = jax.block_until_ready(
        reference_forward(x, w1, w2, g1, b1, g2, b2, matmul_dtype=jnp.bfloat16))
    err_mp = jnp.max(jnp.abs(out - ref_mp))
    assert jnp.allclose(out, ref_mp, atol=5e-3, rtol=5e-3), \
        f"max abs err vs mixed-precision ref {err_mp}"

    # Looser sanity check vs. the pure-f32 PyTorch-equivalent forward
    # (difference is only the bf16 quantization of the MXU operands).
    ref_f32 = jax.block_until_ready(reference_forward(x, w1, w2, g1, b1, g2, b2))
    err_f32 = jnp.max(jnp.abs(out - ref_f32))
    assert jnp.allclose(out, ref_f32, atol=5e-2, rtol=5e-2), \
        f"max abs err vs f32 ref {err_f32}"

    print("KERNEL_OK")
</pallas_src>

<mosaic_0001>
module attributes {stable_mosaic.version = 11 : i64} {
  func.func @basic_block_kernel(%arg0: memref<8x16x8xf32, #tpu.memory_space<vmem>>, %arg1: memref<9x8x8xbf16, #tpu.memory_space<vmem>>, %arg2: memref<9x8x8xbf16, #tpu.memory_space<vmem>>, %arg3: memref<1x8xf32, #tpu.memory_space<vmem>>, %arg4: memref<1x8xf32, #tpu.memory_space<vmem>>, %arg5: memref<1x8xf32, #tpu.memory_space<vmem>>, %arg6: memref<1x8xf32, #tpu.memory_space<vmem>>, %arg7: memref<128x8xf32, #tpu.memory_space<vmem>>, %arg8: memref<8x24x8xbf16, #tpu.memory_space<vmem>>, %arg9: memref<8x24x8xbf16, #tpu.memory_space<vmem>>) attributes {dimension_semantics = [], scalar_prefetch = 0 : i64, scratch_operands = 2 : i64, tpu.core_type = #tpu.core_type<tc>} {
    %c0 = arith.constant 0 : index
    %c0_0 = arith.constant 0 : index
    %c0_1 = arith.constant 0 : index
    %0 = vector.load %arg0[%c0, %c0_0, %c0_1] : memref<8x16x8xf32, #tpu.memory_space<vmem>>, vector<8x16x8xf32>
    %cst = arith.constant 0.000000e+00 : bf16
    %1 = vector.broadcast %cst : bf16 to vector<8x4x8xbf16>
    %c0_2 = arith.constant 0 : index
    %c0_3 = arith.constant 0 : index
    %c0_4 = arith.constant 0 : index
    %2 = vector.load %arg8[%c0_2, %c0_3, %c0_4] : memref<8x24x8xbf16, #tpu.memory_space<vmem>>, vector<8x4x8xbf16>
    tpu.vector_store %arg8[%c0_2, %c0_3, %c0_4], %1 {strides = array<i32>} : memref<8x24x8xbf16, #tpu.memory_space<vmem>>, vector<8x4x8xbf16>,
    %cst_5 = arith.constant 0.000000e+00 : bf16
    %3 = vector.broadcast %cst_5 : bf16 to vector<8x4x8xbf16>
    %c0_6 = arith.constant 0 : index
    %c20 = arith.constant 20 : index
    %c0_7 = arith.constant 0 : index
    %4 = vector.load %arg8[%c0_6, %c20, %c0_7] : memref<8x24x8xbf16, #tpu.memory_space<vmem>>, vector<8x4x8xbf16>
    tpu.vector_store %arg8[%c0_6, %c20, %c0_7], %3 {strides = array<i32>} : memref<8x24x8xbf16, #tpu.memory_space<vmem>>, vector<8x4x8xbf16>,
    %5 = arith.truncf %0 : vector<8x16x8xf32> to vector<8x16x8xbf16>
    %c0_8 = arith.constant 0 : index
    %c4 = arith.constant 4 : index
    %c0_9 = arith.constant 0 : index
    %6 = vector.load %arg8[%c0_8, %c4, %c0_9] : memref<8x24x8xbf16, #tpu.memory_space<vmem>>, vector<8x16x8xbf16>
    tpu.vector_store %arg8[%c0_8, %c4, %c0_9], %5 {strides = array<i32>} : memref<8x24x8xbf16, #tpu.memory_space<vmem>>, vector<8x16x8xbf16>,
    %cst_10 = arith.constant 0.000000e+00 : f32
    %7 = vector.broadcast %cst_10 : f32 to vector<128x8xf32>
    %c0_11 = arith.constant 0 : index
    %c0_12 = arith.constant 0 : index
    %c0_13 = arith.constant 0 : index
    %8 = vector.load %arg8[%c0_11, %c0_12, %c0_13] : memref<8x24x8xbf16, #tpu.memory_space<vmem>>, vector<8x16x8xbf16>
    %9 = vector.shape_cast %8 : vector<8x16x8xbf16> to vector<128x8xbf16>
    %c0_14 = arith.constant 0 : index
    %c0_15 = arith.constant 0 : index
    %c0_16 = arith.constant 0 : index
    %10 = vector.load %arg1[%c0_14, %c0_15, %c0_16] : memref<9x8x8xbf16, #tpu.memory_space<vmem>>, vector<1x8x8xbf16>
    %11 = vector.shape_cast %10 : vector<1x8x8xbf16> to vector<8x8xbf16>
    %cst_17 = arith.constant dense<0.000000e+00> : vector<128x8xf32>
    %12 = tpu.matmul %9, %11, %cst_17 {dimension_numbers = #tpu.dot_dimension_numbers<[1], [0], [0], [1], [0, 0, 1, 1], [], []>} : vector<128x8xbf16>, vector<8x8xbf16>, vector<128x8xf32> -> vector<128x8xf32>
    %13 = arith.addf %7, %12 : vector<128x8xf32>
    %c0_18 = arith.constant 0 : index
    %c1 = arith.constant 1 : index
    %c0_19 = arith.constant 0 : index
    %14 = vector.load %arg8[%c0_18, %c1, %c0_19] : memref<8x24x8xbf16, #tpu.memory_space<vmem>>, vector<8x16x8xbf16>
    %15 = vector.shape_cast %14 : vector<8x16x8xbf16> to vector<128x8xbf16>
    %c1_20 = arith.constant 1 : index
    %c0_21 = arith.constant 0 : index
    %c0_22 = arith.constant 0 : index
    %16 = vector.load %arg1[%c1_20, %c0_21, %c0_22] : memref<9x8x8xbf16, #tpu.memory_space<vmem>>, vector<1x8x8xbf16>
    %17 = vector.shape_cast %16 : vector<1x8x8xbf16> to vector<8x8xbf16>
    %cst_23 = arith.constant dense<0.000000e+00> : vector<128x8xf32>
    %18 = tpu.matmul %15, %17, %cst_23 {dimension_numbers = #tpu.dot_dimension_numbers<[1], [0], [0], [1], [0, 0, 1, 1], [], []>} : vector<128x8xbf16>, vector<8x8xbf16>, vector<128x8xf32> -> vector<128x8xf32>
    %19 = arith.addf %13, %18 : vector<128x8xf32>
    %c0_24 = arith.constant 0 : index
    %c2 = arith.constant 2 : index
    %c0_25 = arith.constant 0 : index
    %20 = vector.load %arg8[%c0_24, %c2, %c0_25] : memref<8x24x8xbf16, #tpu.memory_space<vmem>>, vector<8x16x8xbf16>
    %21 = vector.shape_cast %20 : vector<8x16x8xbf16> to vector<128x8xbf16>
    %c2_26 = arith.constant 2 : index
    %c0_27 = arith.constant 0 : index
    %c0_28 = arith.constant 0 : index
    %22 = vector.load %arg1[%c2_26, %c0_27, %c0_28] : memref<9x8x8xbf16, #tpu.memory_space<vmem>>, vector<1x8x8xbf16>
    %23 = vector.shape_cast %22 : vector<1x8x8xbf16> to vector<8x8xbf16>
    %cst_29 = arith.constant dense<0.000000e+00> : vector<128x8xf32>
    %24 = tpu.matmul %21, %23, %cst_29 {dimension_numbers = #tpu.dot_dimension_numbers<[1], [0], [0], [1], [0, 0, 1, 1], [], []>} : vector<128x8xbf16>, vector<8x8xbf16>, vector<128x8xf32> -> vector<128x8xf32>
    %25 = arith.addf %19, %24 : vector<128x8xf32>
    %c0_30 = arith.constant 0 : index
    %c3 = arith.constant 3 : index
    %c0_31 = arith.constant 0 : index
    %26 = vector.load %arg8[%c0_30, %c3, %c0_31] : memref<8x24x8xbf16, #tpu.memory_space<vmem>>, vector<8x16x8xbf16>
    %27 = vector.shape_cast %26 : vector<8x16x8xbf16> to vector<128x8xbf16>
    %c3_32 = arith.constant 3 : index
    %c0_33 = arith.constant 0 : index
    %c0_34 = arith.constant 0 : index
    %28 = vector.load %arg1[%c3_32, %c0_33, %c0_34] : memref<9x8x8xbf16, #tpu.memory_space<vmem>>, vector<1x8x8xbf16>
    %29 = vector.shape_cast %28 : vector<1x8x8xbf16> to vector<8x8xbf16>
    %cst_35 = arith.constant dense<0.000000e+00> : vector<128x8xf32>
    %30 = tpu.matmul %27, %29, %cst_35 {dimension_numbers = #tpu.dot_dimension_numbers<[1], [0], [0], [1], [0, 0, 1, 1], [], []>} : vector<128x8xbf16>, vector<8x8xbf16>, vector<128x8xf32> -> vector<128x8xf32>
    %31 = arith.addf %25, %30 : vector<128x8xf32>
    %c0_36 = arith.constant 0 : index
    %c4_37 = arith.constant 4 : index
    %c0_38 = arith.constant 0 : index
    %32 = vector.load %arg8[%c0_36, %c4_37, %c0_38] : memref<8x24x8xbf16, #tpu.memory_space<vmem>>, vector<8x16x8xbf16>
    %33 = vector.shape_cast %32 : vector<8x16x8xbf16> to vector<128x8xbf16>
    %c4_39 = arith.constant 4 : index
    %c0_40 = arith.constant 0 : index
    %c0_41 = arith.constant 0 : index
    %34 = vector.load %arg1[%c4_39, %c0_40, %c0_41] : memref<9x8x8xbf16, #tpu.memory_space<vmem>>, vector<1x8x8xbf16>
    %35 = vector.shape_cast %34 : vector<1x8x8xbf16> to vector<8x8xbf16>
    %cst_42 = arith.constant dense<0.000000e+00> : vector<128x8xf32>
    %36 = tpu.matmul %33, %35, %cst_42 {dimension_numbers = #tpu.dot_dimension_numbers<[1], [0], [0], [1], [0, 0, 1, 1], [], []>} : vector<128x8xbf16>, vector<8x8xbf16>, vector<128x8xf32> -> vector<128x8xf32>
    %37 = arith.addf %31, %36 : vector<128x8xf32>
    %c0_43 = arith.constant 0 : index
    %c5 = arith.constant 5 : index
    %c0_44 = arith.constant 0 : index
    %38 = vector.load %arg8[%c0_43, %c5, %c0_44] : memref<8x24x8xbf16, #tpu.memory_space<vmem>>, vector<8x16x8xbf16>
    %39 = vector.shape_cast %38 : vector<8x16x8xbf16> to vector<128x8xbf16>
    %c5_45 = arith.constant 5 : index
    %c0_46 = arith.constant 0 : index
    %c0_47 = arith.constant 0 : index
    %40 = vector.load %arg1[%c5_45, %c0_46, %c0_47] : memref<9x8x8xbf16, #tpu.memory_space<vmem>>, vector<1x8x8xbf16>
    %41 = vector.shape_cast %40 : vector<1x8x8xbf16> to vector<8x8xbf16>
    %cst_48 = arith.constant dense<0.000000e+00> : vector<128x8xf32>
    %42 = tpu.matmul %39, %41, %cst_48 {dimension_numbers = #tpu.dot_dimension_numbers<[1], [0], [0], [1], [0, 0, 1, 1], [], []>} : vector<128x8xbf16>, vector<8x8xbf16>, vector<128x8xf32> -> vector<128x8xf32>
    %43 = arith.addf %37, %42 : vector<128x8xf32>
    %c0_49 = arith.constant 0 : index
    %c6 = arith.constant 6 : index
    %c0_50 = arith.constant 0 : index
    %44 = vector.load %arg8[%c0_49, %c6, %c0_50] : memref<8x24x8xbf16, #tpu.memory_space<vmem>>, vector<8x16x8xbf16>
    %45 = vector.shape_cast %44 : vector<8x16x8xbf16> to vector<128x8xbf16>
    %c6_51 = arith.constant 6 : index
    %c0_52 = arith.constant 0 : index
    %c0_53 = arith.constant 0 : index
    %46 = vector.load %arg1[%c6_51, %c0_52, %c0_53] : memref<9x8x8xbf16, #tpu.memory_space<vmem>>, vector<1x8x8xbf16>
    %47 = vector.shape_cast %46 : vector<1x8x8xbf16> to vector<8x8xbf16>
    %cst_54 = arith.constant dense<0.000000e+00> : vector<128x8xf32>
    %48 = tpu.matmul %45, %47, %cst_54 {dimension_numbers = #tpu.dot_dimension_numbers<[1], [0], [0], [1], [0, 0, 1, 1], [], []>} : vector<128x8xbf16>, vector<8x8xbf16>, vector<128x8xf32> -> vector<128x8xf32>
    %49 = arith.addf %43, %48 : vector<128x8xf32>
    %c0_55 = arith.constant 0 : index
    %c7 = arith.constant 7 : index
    %c0_56 = arith.constant 0 : index
    %50 = vector.load %arg8[%c0_55, %c7, %c0_56] : memref<8x24x8xbf16, #tpu.memory_space<vmem>>, vector<8x16x8xbf16>
    %51 = vector.shape_cast %50 : vector<8x16x8xbf16> to vector<128x8xbf16>
    %c7_57 = arith.constant 7 : index
    %c0_58 = arith.constant 0 : index
    %c0_59 = arith.constant 0 : index
    %52 = vector.load %arg1[%c7_57, %c0_58, %c0_59] : memref<9x8x8xbf16, #tpu.memory_space<vmem>>, vector<1x8x8xbf16>
    %53 = vector.shape_cast %52 : vector<1x8x8xbf16> to vector<8x8xbf16>
    %cst_60 = arith.constant dense<0.000000e+00> : vector<128x8xf32>
    %54 = tpu.matmul %51, %53, %cst_60 {dimension_numbers = #tpu.dot_dimension_numbers<[1], [0], [0], [1], [0, 0, 1, 1], [], []>} : vector<128x8xbf16>, vector<8x8xbf16>, vector<128x8xf32> -> vector<128x8xf32>
    %55 = arith.addf %49, %54 : vector<128x8xf32>
    %c0_61 = arith.constant 0 : index
    %c8 = arith.constant 8 : index
    %c0_62 = arith.constant 0 : index
    %56 = vector.load %arg8[%c0_61, %c8, %c0_62] : memref<8x24x8xbf16, #tpu.memory_space<vmem>>, vector<8x16x8xbf16>
    %57 = vector.shape_cast %56 : vector<8x16x8xbf16> to vector<128x8xbf16>
    %c8_63 = arith.constant 8 : index
    %c0_64 = arith.constant 0 : index
    %c0_65 = arith.constant 0 : index
    %58 = vector.load %arg1[%c8_63, %c0_64, %c0_65] : memref<9x8x8xbf16, #tpu.memory_space<vmem>>, vector<1x8x8xbf16>
    %59 = vector.shape_cast %58 : vector<1x8x8xbf16> to vector<8x8xbf16>
    %cst_66 = arith.constant dense<0.000000e+00> : vector<128x8xf32>
    %60 = tpu.matmul %57, %59, %cst_66 {dimension_numbers = #tpu.dot_dimension_numbers<[1], [0], [0], [1], [0, 0, 1, 1], [], []>} : vector<128x8xbf16>, vector<8x8xbf16>, vector<128x8xf32> -> vector<128x8xf32>
    %61 = arith.addf %55, %60 : vector<128x8xf32>
    %cst_67 = arith.constant dense<0.000000e+00> : vector<8xf32>
    %62 = vector.multi_reduction <add>, %61, %cst_67 [0] : vector<128x8xf32> to vector<8xf32>
    %63 = vector.shape_cast %62 : vector<8xf32> to vector<1x8xf32>
    %cst_68 = arith.constant 1.280000e+02 : f32
    %64 = vector.broadcast %cst_68 : f32 to vector<1x8xf32>
    %65 = arith.divf %63, %64 : vector<1x8xf32>
    %66 = arith.mulf %61, %61 : vector<128x8xf32>
    %cst_69 = arith.constant dense<0.000000e+00> : vector<8xf32>
    %67 = vector.multi_reduction <add>, %66, %cst_69 [0] : vector<128x8xf32> to vector<8xf32>
    %68 = vector.shape_cast %67 : vector<8xf32> to vector<1x8xf32>
    %cst_70 = arith.constant 1.280000e+02 : f32
    %69 = vector.broadcast %cst_70 : f32 to vector<1x8xf32>
    %70 = arith.divf %68, %69 : vector<1x8xf32>
    %71 = arith.mulf %65, %65 : vector<1x8xf32>
    %72 = arith.subf %70, %71 : vector<1x8xf32>
    %73 = vector.broadcast %65 : vector<1x8xf32> to vector<128x8xf32>
    %74 = arith.subf %61, %73 : vector<128x8xf32>
    %cst_71 = arith.constant 9.99999974E-6 : f32
    %75 = vector.broadcast %cst_71 : f32 to vector<1x8xf32>
    %76 = arith.addf %72, %75 : vector<1x8xf32>
    %77 = math.rsqrt %76 : vector<1x8xf32>
    %78 = vector.broadcast %77 : vector<1x8xf32> to vector<128x8xf32>
    %79 = arith.mulf %74, %78 : vector<128x8xf32>
    %c0_72 = arith.constant 0 : index
    %c0_73 = arith.constant 0 : index
    %80 = vector.load %arg3[%c0_72, %c0_73] : memref<1x8xf32, #tpu.memory_space<vmem>>, vector<1x8xf32>
    %81 = vector.broadcast %80 : vector<1x8xf32> to vector<128x8xf32>
    %82 = arith.mulf %79, %81 : vector<128x8xf32>
    %c0_74 = arith.constant 0 : index
    %c0_75 = arith.constant 0 : index
    %83 = vector.load %arg4[%c0_74, %c0_75] : memref<1x8xf32, #tpu.memory_space<vmem>>, vector<1x8xf32>
    %84 = vector.broadcast %83 : vector<1x8xf32> to vector<128x8xf32>
    %85 = arith.addf %82, %84 : vector<128x8xf32>
    %cst_76 = arith.constant 0.000000e+00 : f32
    %86 = vector.broadcast %cst_76 : f32 to vector<128x8xf32>
    %87 = arith.maximumf %85, %86 : vector<128x8xf32>
    %cst_77 = arith.constant 0.000000e+00 : bf16
    %88 = vector.broadcast %cst_77 : bf16 to vector<8x4x8xbf16>
    %c0_78 = arith.constant 0 : index
    %c0_79 = arith.constant 0 : index
    %c0_80 = arith.constant 0 : index
    %89 = vector.load %arg9[%c0_78, %c0_79, %c0_80] : memref<8x24x8xbf16, #tpu.memory_space<vmem>>, vector<8x4x8xbf16>
    tpu.vector_store %arg9[%c0_78, %c0_79, %c0_80], %88 {strides = array<i32>} : memref<8x24x8xbf16, #tpu.memory_space<vmem>>, vector<8x4x8xbf16>,
    %cst_81 = arith.constant 0.000000e+00 : bf16
    %90 = vector.broadcast %cst_81 : bf16 to vector<8x4x8xbf16>
    %c0_82 = arith.constant 0 : index
    %c20_83 = arith.constant 20 : index
    %c0_84 = arith.constant 0 : index
    %91 = vector.load %arg9[%c0_82, %c20_83, %c0_84] : memref<8x24x8xbf16, #tpu.memory_space<vmem>>, vector<8x4x8xbf16>
    tpu.vector_store %arg9[%c0_82, %c20_83, %c0_84], %90 {strides = array<i32>} : memref<8x24x8xbf16, #tpu.memory_space<vmem>>, vector<8x4x8xbf16>,
    %92 = vector.shape_cast %87 : vector<128x8xf32> to vector<8x16x8xf32>
    %93 = arith.truncf %92 : vector<8x16x8xf32> to vector<8x16x8xbf16>
    %c0_85 = arith.constant 0 : index
    %c4_86 = arith.constant 4 : index
    %c0_87 = arith.constant 0 : index
    %94 = vector.load %arg9[%c0_85, %c4_86, %c0_87] : memref<8x24x8xbf16, #tpu.memory_space<vmem>>, vector<8x16x8xbf16>
    tpu.vector_store %arg9[%c0_85, %c4_86, %c0_87], %93 {strides = array<i32>} : memref<8x24x8xbf16, #tpu.memory_space<vmem>>, vector<8x16x8xbf16>,
    %cst_88 = arith.constant 0.000000e+00 : f32
    %95 = vector.broadcast %cst_88 : f32 to vector<128x8xf32>
    %c0_89 = arith.constant 0 : index
    %c0_90 = arith.constant 0 : index
    %c0_91 = arith.constant 0 : index
    %96 = vector.load %arg9[%c0_89, %c0_90, %c0_91] : memref<8x24x8xbf16, #tpu.memory_space<vmem>>, vector<8x16x8xbf16>
    %97 = vector.shape_cast %96 : vector<8x16x8xbf16> to vector<128x8xbf16>
    %c0_92 = arith.constant 0 : index
    %c0_93 = arith.constant 0 : index
    %c0_94 = arith.constant 0 : index
    %98 = vector.load %arg2[%c0_92, %c0_93, %c0_94] : memref<9x8x8xbf16, #tpu.memory_space<vmem>>, vector<1x8x8xbf16>
    %99 = vector.shape_cast %98 : vector<1x8x8xbf16> to vector<8x8xbf16>
    %cst_95 = arith.constant dense<0.000000e+00> : vector<128x8xf32>
    %100 = tpu.matmul %97, %99, %cst_95 {dimension_numbers = #tpu.dot_dimension_numbers<[1], [0], [0], [1], [0, 0, 1, 1], [], []>} : vector<128x8xbf16>, vector<8x8xbf16>, vector<128x8xf32> -> vector<128x8xf32>
    %101 = arith.addf %95, %100 : vector<128x8xf32>
    %c0_96 = arith.constant 0 : index
    %c1_97 = arith.constant 1 : index
    %c0_98 = arith.constant 0 : index
    %102 = vector.load %arg9[%c0_96, %c1_97, %c0_98] : memref<8x24x8xbf16, #tpu.memory_space<vmem>>, vector<8x16x8xbf16>
    %103 = vector.shape_cast %102 : vector<8x16x8xbf16> to vector<128x8xbf16>
    %c1_99 = arith.constant 1 : index
    %c0_100 = arith.constant 0 : index
    %c0_101 = arith.constant 0 : index
    %104 = vector.load %arg2[%c1_99, %c0_100, %c0_101] : memref<9x8x8xbf16, #tpu.memory_space<vmem>>, vector<1x8x8xbf16>
    %105 = vector.shape_cast %104 : vector<1x8x8xbf16> to vector<8x8xbf16>
    %cst_102 = arith.constant dense<0.000000e+00> : vector<128x8xf32>
    %106 = tpu.matmul %103, %105, %cst_102 {dimension_numbers = #tpu.dot_dimension_numbers<[1], [0], [0], [1], [0, 0, 1, 1], [], []>} : vector<128x8xbf16>, vector<8x8xbf16>, vector<128x8xf32> -> vector<128x8xf32>
    %107 = arith.addf %101, %106 : vector<128x8xf32>
    %c0_103 = arith.constant 0 : index
    %c2_104 = arith.constant 2 : index
    %c0_105 = arith.constant 0 : index
    %108 = vector.load %arg9[%c0_103, %c2_104, %c0_105] : memref<8x24x8xbf16, #tpu.memory_space<vmem>>, vector<8x16x8xbf16>
    %109 = vector.shape_cast %108 : vector<8x16x8xbf16> to vector<128x8xbf16>
    %c2_106 = arith.constant 2 : index
    %c0_107 = arith.constant 0 : index
    %c0_108 = arith.constant 0 : index
    %110 = vector.load %arg2[%c2_106, %c0_107, %c0_108] : memref<9x8x8xbf16, #tpu.memory_space<vmem>>, vector<1x8x8xbf16>
    %111 = vector.shape_cast %110 : vector<1x8x8xbf16> to vector<8x8xbf16>
    %cst_109 = arith.constant dense<0.000000e+00> : vector<128x8xf32>
    %112 = tpu.matmul %109, %111, %cst_109 {dimension_numbers = #tpu.dot_dimension_numbers<[1], [0], [0], [1], [0, 0, 1, 1], [], []>} : vector<128x8xbf16>, vector<8x8xbf16>, vector<128x8xf32> -> vector<128x8xf32>
    %113 = arith.addf %107, %112 : vector<128x8xf32>
    %c0_110 = arith.constant 0 : index
    %c3_111 = arith.constant 3 : index
    %c0_112 = arith.constant 0 : index
    %114 = vector.load %arg9[%c0_110, %c3_111, %c0_112] : memref<8x24x8xbf16, #tpu.memory_space<vmem>>, vector<8x16x8xbf16>
    %115 = vector.shape_cast %114 : vector<8x16x8xbf16> to vector<128x8xbf16>
    %c3_113 = arith.constant 3 : index
    %c0_114 = arith.constant 0 : index
    %c0_115 = arith.constant 0 : index
    %116 = vector.load %arg2[%c3_113, %c0_114, %c0_115] : memref<9x8x8xbf16, #tpu.memory_space<vmem>>, vector<1x8x8xbf16>
    %117 = vector.shape_cast %116 : vector<1x8x8xbf16> to vector<8x8xbf16>
    %cst_116 = arith.constant dense<0.000000e+00> : vector<128x8xf32>
    %118 = tpu.matmul %115, %117, %cst_116 {dimension_numbers = #tpu.dot_dimension_numbers<[1], [0], [0], [1], [0, 0, 1, 1], [], []>} : vector<128x8xbf16>, vector<8x8xbf16>, vector<128x8xf32> -> vector<128x8xf32>
    %119 = arith.addf %113, %118 : vector<128x8xf32>
    %c0_117 = arith.constant 0 : index
    %c4_118 = arith.constant 4 : index
    %c0_119 = arith.constant 0 : index
    %120 = vector.load %arg9[%c0_117, %c4_118, %c0_119] : memref<8x24x8xbf16, #tpu.memory_space<vmem>>, vector<8x16x8xbf16>
    %121 = vector.shape_cast %120 : vector<8x16x8xbf16> to vector<128x8xbf16>
    %c4_120 = arith.constant 4 : index
    %c0_121 = arith.constant 0 : index
    %c0_122 = arith.constant 0 : index
    %122 = vector.load %arg2[%c4_120, %c0_121, %c0_122] : memref<9x8x8xbf16, #tpu.memory_space<vmem>>, vector<1x8x8xbf16>
    %123 = vector.shape_cast %122 : vector<1x8x8xbf16> to vector<8x8xbf16>
    %cst_123 = arith.constant dense<0.000000e+00> : vector<128x8xf32>
    %124 = tpu.matmul %121, %123, %cst_123 {dimension_numbers = #tpu.dot_dimension_numbers<[1], [0], [0], [1], [0, 0, 1, 1], [], []>} : vector<128x8xbf16>, vector<8x8xbf16>, vector<128x8xf32> -> vector<128x8xf32>
    %125 = arith.addf %119, %124 : vector<128x8xf32>
    %c0_124 = arith.constant 0 : index
    %c5_125 = arith.constant 5 : index
    %c0_126 = arith.constant 0 : index
    %126 = vector.load %arg9[%c0_124, %c5_125, %c0_126] : memref<8x24x8xbf16, #tpu.memory_space<vmem>>, vector<8x16x8xbf16>
    %127 = vector.shape_cast %126 : vector<8x16x8xbf16> to vector<128x8xbf16>
    %c5_127 = arith.constant 5 : index
    %c0_128 = arith.constant 0 : index
    %c0_129 = arith.constant 0 : index
    %128 = vector.load %arg2[%c5_127, %c0_128, %c0_129] : memref<9x8x8xbf16, #tpu.memory_space<vmem>>, vector<1x8x8xbf16>
    %129 = vector.shape_cast %128 : vector<1x8x8xbf16> to vector<8x8xbf16>
    %cst_130 = arith.constant dense<0.000000e+00> : vector<128x8xf32>
    %130 = tpu.matmul %127, %129, %cst_130 {dimension_numbers = #tpu.dot_dimension_numbers<[1], [0], [0], [1], [0, 0, 1, 1], [], []>} : vector<128x8xbf16>, vector<8x8xbf16>, vector<128x8xf32> -> vector<128x8xf32>
    %131 = arith.addf %125, %130 : vector<128x8xf32>
    %c0_131 = arith.constant 0 : index
    %c6_132 = arith.constant 6 : index
    %c0_133 = arith.constant 0 : index
    %132 = vector.load %arg9[%c0_131, %c6_132, %c0_133] : memref<8x24x8xbf16, #tpu.memory_space<vmem>>, vector<8x16x8xbf16>
    %133 = vector.shape_cast %132 : vector<8x16x8xbf16> to vector<128x8xbf16>
    %c6_134 = arith.constant 6 : index
    %c0_135 = arith.constant 0 : index
    %c0_136 = arith.constant 0 : index
    %134 = vector.load %arg2[%c6_134, %c0_135, %c0_136] : memref<9x8x8xbf16, #tpu.memory_space<vmem>>, vector<1x8x8xbf16>
    %135 = vector.shape_cast %134 : vector<1x8x8xbf16> to vector<8x8xbf16>
    %cst_137 = arith.constant dense<0.000000e+00> : vector<128x8xf32>
    %136 = tpu.matmul %133, %135, %cst_137 {dimension_numbers = #tpu.dot_dimension_numbers<[1], [0], [0], [1], [0, 0, 1, 1], [], []>} : vector<128x8xbf16>, vector<8x8xbf16>, vector<128x8xf32> -> vector<128x8xf32>
    %137 = arith.addf %131, %136 : vector<128x8xf32>
    %c0_138 = arith.constant 0 : index
    %c7_139 = arith.constant 7 : index
    %c0_140 = arith.constant 0 : index
    %138 = vector.load %arg9[%c0_138, %c7_139, %c0_140] : memref<8x24x8xbf16, #tpu.memory_space<vmem>>, vector<8x16x8xbf16>
    %139 = vector.shape_cast %138 : vector<8x16x8xbf16> to vector<128x8xbf16>
    %c7_141 = arith.constant 7 : index
    %c0_142 = arith.constant 0 : index
    %c0_143 = arith.constant 0 : index
    %140 = vector.load %arg2[%c7_141, %c0_142, %c0_143] : memref<9x8x8xbf16, #tpu.memory_space<vmem>>, vector<1x8x8xbf16>
    %141 = vector.shape_cast %140 : vector<1x8x8xbf16> to vector<8x8xbf16>
    %cst_144 = arith.constant dense<0.000000e+00> : vector<128x8xf32>
    %142 = tpu.matmul %139, %141, %cst_144 {dimension_numbers = #tpu.dot_dimension_numbers<[1], [0], [0], [1], [0, 0, 1, 1], [], []>} : vector<128x8xbf16>, vector<8x8xbf16>, vector<128x8xf32> -> vector<128x8xf32>
    %143 = arith.addf %137, %142 : vector<128x8xf32>
    %c0_145 = arith.constant 0 : index
    %c8_146 = arith.constant 8 : index
    %c0_147 = arith.constant 0 : index
    %144 = vector.load %arg9[%c0_145, %c8_146, %c0_147] : memref<8x24x8xbf16, #tpu.memory_space<vmem>>, vector<8x16x8xbf16>
    %145 = vector.shape_cast %144 : vector<8x16x8xbf16> to vector<128x8xbf16>
    %c8_148 = arith.constant 8 : index
    %c0_149 = arith.constant 0 : index
    %c0_150 = arith.constant 0 : index
    %146 = vector.load %arg2[%c8_148, %c0_149, %c0_150] : memref<9x8x8xbf16, #tpu.memory_space<vmem>>, vector<1x8x8xbf16>
    %147 = vector.shape_cast %146 : vector<1x8x8xbf16> to vector<8x8xbf16>
    %cst_151 = arith.constant dense<0.000000e+00> : vector<128x8xf32>
    %148 = tpu.matmul %145, %147, %cst_151 {dimension_numbers = #tpu.dot_dimension_numbers<[1], [0], [0], [1], [0, 0, 1, 1], [], []>} : vector<128x8xbf16>, vector<8x8xbf16>, vector<128x8xf32> -> vector<128x8xf32>
    %149 = arith.addf %143, %148 : vector<128x8xf32>
    %cst_152 = arith.constant dense<0.000000e+00> : vector<8xf32>
    %150 = vector.multi_reduction <add>, %149, %cst_152 [0] : vector<128x8xf32> to vector<8xf32>
    %151 = vector.shape_cast %150 : vector<8xf32> to vector<1x8xf32>
    %cst_153 = arith.constant 1.280000e+02 : f32
    %152 = vector.broadcast %cst_153 : f32 to vector<1x8xf32>
    %153 = arith.divf %151, %152 : vector<1x8xf32>
    %154 = arith.mulf %149, %149 : vector<128x8xf32>
    %cst_154 = arith.constant dense<0.000000e+00> : vector<8xf32>
    %155 = vector.multi_reduction <add>, %154, %cst_154 [0] : vector<128x8xf32> to vector<8xf32>
    %156 = vector.shape_cast %155 : vector<8xf32> to vector<1x8xf32>
    %cst_155 = arith.constant 1.280000e+02 : f32
    %157 = vector.broadcast %cst_155 : f32 to vector<1x8xf32>
    %158 = arith.divf %156, %157 : vector<1x8xf32>
    %159 = arith.mulf %153, %153 : vector<1x8xf32>
    %160 = arith.subf %158, %159 : vector<1x8xf32>
    %161 = vector.broadcast %153 : vector<1x8xf32> to vector<128x8xf32>
    %162 = arith.subf %149, %161 : vector<128x8xf32>
    %cst_156 = arith.constant 9.99999974E-6 : f32
    %163 = vector.broadcast %cst_156 : f32 to vector<1x8xf32>
    %164 = arith.addf %160, %163 : vector<1x8xf32>
    %165 = math.rsqrt %164 : vector<1x8xf32>
    %166 = vector.broadcast %165 : vector<1x8xf32> to vector<128x8xf32>
    %167 = arith.mulf %162, %166 : vector<128x8xf32>
    %c0_157 = arith.constant 0 : index
    %c0_158 = arith.constant 0 : index
    %168 = vector.load %arg5[%c0_157, %c0_158] : memref<1x8xf32, #tpu.memory_space<vmem>>, vector<1x8xf32>
    %169 = vector.broadcast %168 : vector<1x8xf32> to vector<128x8xf32>
    %170 = arith.mulf %167, %169 : vector<128x8xf32>
    %c0_159 = arith.constant 0 : index
    %c0_160 = arith.constant 0 : index
    %171 = vector.load %arg6[%c0_159, %c0_160] : memref<1x8xf32, #tpu.memory_space<vmem>>, vector<1x8xf32>
    %172 = vector.broadcast %171 : vector<1x8xf32> to vector<128x8xf32>
    %173 = arith.addf %170, %172 : vector<128x8xf32>
    %174 = vector.shape_cast %0 : vector<8x16x8xf32> to vector<128x8xf32>
    %175 = arith.addf %173, %174 : vector<128x8xf32>
    %cst_161 = arith.constant 0.000000e+00 : f32
    %176 = vector.broadcast %cst_161 : f32 to vector<128x8xf32>
    %177 = arith.maximumf %175, %176 : vector<128x8xf32>
    %c0_162 = arith.constant 0 : index
    %c0_163 = arith.constant 0 : index
    %178 = vector.load %arg7[%c0_162, %c0_163] : memref<128x8xf32, #tpu.memory_space<vmem>>, vector<128x8xf32>
    tpu.vector_store %arg7[%c0_162, %c0_163], %177 {strides = array<i32>} : memref<128x8xf32, #tpu.memory_space<vmem>>, vector<128x8xf32>,
    return
  }
}

</mosaic_0001>

<llo_original>
// kernel: tpu_custom_call.1
$region0: #{tpu_custom_call.1}
  #allocation0 [shape = 'u32[]', space=smem, size = 0x4, offset = 0x4, fixed_abs, tag = 'smem constant byte address 0x4 - core index']
  #allocation1 [shape = 'u32[72,128]{1,0:T(1,128)}', space=vmem, size = 0x9000, scoped, tag = 'internal scratch']
  #allocation2 [shape = 'bf16[8,24,8]{2,1,0:T(8,128)(2,1)}', space=vmem, size = 0xc000, scoped, tag = 'scratch operand']
  #allocation3 [shape = 'bf16[8,24,8]{2,1,0:T(8,128)(2,1)}', space=vmem, size = 0xc000, scoped, tag = 'scratch operand']
  %s0 = inlined_call_operand.vmem [shape: f32[8,16,8], index: 0, kind: input, shape index: {}]
  %s1 = inlined_call_operand.vmem [shape: bf16[9,8,8], index: 1, kind: input, shape index: {}]
  %s2 = inlined_call_operand.vmem [shape: bf16[9,8,8], index: 2, kind: input, shape index: {}]
  %s3 = inlined_call_operand.vmem [shape: f32[1,8], index: 3, kind: input, shape index: {}]
  %s4 = inlined_call_operand.vmem [shape: f32[1,8], index: 4, kind: input, shape index: {}]
  %s5 = inlined_call_operand.vmem [shape: f32[1,8], index: 5, kind: input, shape index: {}]
  %s6 = inlined_call_operand.vmem [shape: f32[1,8], index: 6, kind: input, shape index: {}]
  %s7 = inlined_call_operand.vmem [shape: f32[128,8], index: 7, kind: output, shape index: {}]
  %s8 = sld [smem:[#allocation0]]
  $region38: #{tpu_custom_call.1} parent=0
    _
  %s10 = ssub.s32 1, %s8
  %s11 = scalar_select 0, %s10, %s8
  // Predicated region
  $region2: #{tpu_custom_call.1} parent=0 // pred_check
    _
  $region3: #{tpu_custom_call.1} parent=0 // pred_check_branch
    %13 = sbr.rel (0) target = $region5
  $region4: #{tpu_custom_call.1} parent=0 // pred_region
    _
  $region5: #{tpu_custom_call.1} parent=0 // pred_fallthru
    _
  // Predicated region
  $region6: #{tpu_custom_call.1} parent=0 // pred_check
    _
  $region7: #{tpu_custom_call.1} parent=0 // pred_check_branch
    %15 = sbr.rel (0) target = $region9
  $region8: #{tpu_custom_call.1} parent=0 // pred_region
    _
  $region9: #{tpu_custom_call.1} parent=0 // pred_fallthru
    _
  // Predicated region
  $region10: #{tpu_custom_call.1} parent=0 // pred_check
    _
  $region11: #{tpu_custom_call.1} parent=0 // pred_check_branch
    %17 = sbr.rel (0) target = $region13
  $region12: #{tpu_custom_call.1} parent=0 // pred_region
    _
  $region13: #{tpu_custom_call.1} parent=0 // pred_fallthru
    _
  // Predicated region
  $region14: #{tpu_custom_call.1} parent=0 // pred_check
    _
  $region15: #{tpu_custom_call.1} parent=0 // pred_check_branch
    %19 = sbr.rel (0) target = $region17
  $region16: #{tpu_custom_call.1} parent=0 // pred_region
    _
  $region17: #{tpu_custom_call.1} parent=0 // pred_fallthru
    _
  // Predicated region
  $region18: #{tpu_custom_call.1} parent=0 // pred_check
    _
  $region19: #{tpu_custom_call.1} parent=0 // pred_check_branch
    %21 = sbr.rel (0) target = $region21
  $region20: #{tpu_custom_call.1} parent=0 // pred_region
    _
  $region21: #{tpu_custom_call.1} parent=0 // pred_fallthru
    _
  // Predicated region
  $region22: #{tpu_custom_call.1} parent=0 // pred_check
    _
  $region23: #{tpu_custom_call.1} parent=0 // pred_check_branch
    %23 = sbr.rel (0) target = $region25
  $region24: #{tpu_custom_call.1} parent=0 // pred_region
    _
  $region25: #{tpu_custom_call.1} parent=0 // pred_fallthru
    _
  // Predicated region
  $region26: #{tpu_custom_call.1} parent=0 // pred_check
    _
  $region27: #{tpu_custom_call.1} parent=0 // pred_check_branch
    %25 = sbr.rel (0) target = $region29
  $region28: #{tpu_custom_call.1} parent=0 // pred_region
    _
  $region29: #{tpu_custom_call.1} parent=0 // pred_fallthru
    _
  %v27 = vld [vmem:[%s0] sm:$0xff]
  %v28 = vld [vmem:[%s0 + $0x8] sm:$0xff]
  %v29 = vld [vmem:[%s0 + $0x10] sm:$0xff]
  %v30 = vld [vmem:[%s0 + $0x18] sm:$0xff]
  %v31 = vld [vmem:[%s0 + $0x20] sm:$0xff]
  %v32 = vld [vmem:[%s0 + $0x28] sm:$0xff]
  %v33 = vld [vmem:[%s0 + $0x30] sm:$0xff]
  %v34 = vld [vmem:[%s0 + $0x38] sm:$0xff]
  %v35 = vld [vmem:[%s0 + $0x40] sm:$0xff]
  %v36 = vld [vmem:[%s0 + $0x48] sm:$0xff]
  %v37 = vld [vmem:[%s0 + $0x50] sm:$0xff]
  %v38 = vld [vmem:[%s0 + $0x58] sm:$0xff]
  %v39 = vld [vmem:[%s0 + $0x60] sm:$0xff]
  %v40 = vld [vmem:[%s0 + $0x68] sm:$0xff]
  %v41 = vld [vmem:[%s0 + $0x70] sm:$0xff]
  %v42 = vld [vmem:[%s0 + $0x78] sm:$0xff]
  %vm43 = vcmask 58368
  %44 = vst.msk [vmem:[#allocation2] sm:$0x3] %vm43, 0
  %45 = vst.msk [vmem:[#allocation2 + $0xc] sm:$0x3] %vm43, 0
  %46 = vst.msk [vmem:[#allocation2 + $0x18] sm:$0x3] %vm43, 0
  %47 = vst.msk [vmem:[#allocation2 + $0x24] sm:$0x3] %vm43, 0
  %48 = vst.msk [vmem:[#allocation2 + $0x30] sm:$0x3] %vm43, 0
  %49 = vst.msk [vmem:[#allocation2 + $0x3c] sm:$0x3] %vm43, 0
  %50 = vst.msk [vmem:[#allocation2 + $0x48] sm:$0x3] %vm43, 0
  %51 = vst.msk [vmem:[#allocation2 + $0x54] sm:$0x3] %vm43, 0
  %vm52 = vcmask 60418
  %53 = vst.msk [vmem:[#allocation2 + $0x8] sm:$0xc] %vm52, 0
  %54 = vst.msk [vmem:[#allocation2 + $0x14] sm:$0xc] %vm52, 0
  %55 = vst.msk [vmem:[#allocation2 + $0x20] sm:$0xc] %vm52, 0
  %56 = vst.msk [vmem:[#allocation2 + $0x2c] sm:$0xc] %vm52, 0
  %57 = vst.msk [vmem:[#allocation2 + $0x38] sm:$0xc] %vm52, 0
  %58 = vst.msk [vmem:[#allocation2 + $0x44] sm:$0xc] %vm52, 0
  %59 = vst.msk [vmem:[#allocation2 + $0x50] sm:$0xc] %vm52, 0
  %60 = vst.msk [vmem:[#allocation2 + $0x5c] sm:$0xc] %vm52, 0
  %v61 = vpack.c.bf16 %v27, %v27
  %v62 = vpack.c.bf16 %v28, %v28
  %v63 = vpack.c.bf16 %v29, %v29
  %v64 = vpack.c.bf16 %v30, %v30
  %v65 = vpack.c.bf16 %v31, %v31
  %v66 = vpack.c.bf16 %v32, %v32
  %v67 = vpack.c.bf16 %v33, %v33
  %v68 = vpack.c.bf16 %v34, %v34
  %v69 = vpack.c.bf16 %v35, %v35
  %v70 = vpack.c.bf16 %v36, %v36
  %v71 = vpack.c.bf16 %v37, %v37
  %v72 = vpack.c.bf16 %v38, %v38
  %v73 = vpack.c.bf16 %v39, %v39
  %v74 = vpack.c.bf16 %v40, %v40
  %v75 = vpack.c.bf16 %v41, %v41
  %v76 = vpack.c.bf16 %v42, %v42
  %vm93 = vcmask 1041408
  %vm94 = vcmask 1045508
  %vm95 = vmor %vm93, %vm94
  %v96 = vrot.slane %v61, 6
  %v97 = vrot.slane %v96, 4
  %v98 = vrot.slane %v62, 6
  %v99 = vsel %vm95, %v97, %v98
  %v100 = vrot.slane %v98, 4
  %v101 = vrot.slane %v63, 6
  %v102 = vrot.slane %v101, 4
  %v103 = vrot.slane %v64, 6
  %v104 = vsel %vm95, %v102, %v103
  %v105 = vrot.slane %v103, 4
  %v106 = vrot.slane %v65, 6
  %v107 = vrot.slane %v106, 4
  %v108 = vrot.slane %v66, 6
  %v109 = vsel %vm95, %v107, %v108
  %v110 = vrot.slane %v108, 4
  %v111 = vrot.slane %v67, 6
  %v112 = vrot.slane %v111, 4
  %v113 = vrot.slane %v68, 6
  %v114 = vsel %vm95, %v112, %v113
  %v115 = vrot.slane %v113, 4
  %v116 = vrot.slane %v69, 6
  %v117 = vrot.slane %v116, 4
  %v118 = vrot.slane %v70, 6
  %v119 = vsel %vm95, %v117, %v118
  %v120 = vrot.slane %v118, 4
  %v121 = vrot.slane %v71, 6
  %v122 = vrot.slane %v121, 4
  %v123 = vrot.slane %v72, 6
  %v124 = vsel %vm95, %v122, %v123
  %v125 = vrot.slane %v123, 4
  %v126 = vrot.slane %v73, 6
  %v127 = vrot.slane %v126, 4
  %v128 = vrot.slane %v74, 6
  %v129 = vsel %vm95, %v127, %v128
  %v130 = vrot.slane %v128, 4
  %v131 = vrot.slane %v75, 6
  %v132 = vrot.slane %v131, 4
  %v133 = vrot.slane %v76, 6
  %v134 = vsel %vm95, %v132, %v133
  %v135 = vrot.slane %v133, 4
  %160 = vst.msk [vmem:[#allocation2] sm:$0xc] %vm52, %v96
  %vm161 = vcmask 60416
  %162 = vst.msk [vmem:[#allocation2 + $0x4] sm:$0xf] %vm161, %v99
  %163 = vst.msk [vmem:[#allocation2 + $0x8] sm:$0x3] %vm43, %v100
  %164 = vst.msk [vmem:[#allocation2 + $0xc] sm:$0xc] %vm52, %v101
  %165 = vst.msk [vmem:[#allocation2 + $0x10] sm:$0xf] %vm161, %v104
  %166 = vst.msk [vmem:[#allocation2 + $0x14] sm:$0x3] %vm43, %v105
  %167 = vst.msk [vmem:[#allocation2 + $0x18] sm:$0xc] %vm52, %v106
  %168 = vst.msk [vmem:[#allocation2 + $0x1c] sm:$0xf] %vm161, %v109
  %169 = vst.msk [vmem:[#allocation2 + $0x20] sm:$0x3] %vm43, %v110
  %170 = vst.msk [vmem:[#allocation2 + $0x24] sm:$0xc] %vm52, %v111
  %171 = vst.msk [vmem:[#allocation2 + $0x28] sm:$0xf] %vm161, %v114
  %172 = vst.msk [vmem:[#allocation2 + $0x2c] sm:$0x3] %vm43, %v115
  %173 = vst.msk [vmem:[#allocation2 + $0x30] sm:$0xc] %vm52, %v116
  %174 = vst.msk [vmem:[#allocation2 + $0x34] sm:$0xf] %vm161, %v119
  %175 = vst.msk [vmem:[#allocation2 + $0x38] sm:$0x3] %vm43, %v120
  %176 = vst.msk [vmem:[#allocation2 + $0x3c] sm:$0xc] %vm52, %v121
  %177 = vst.msk [vmem:[#allocation2 + $0x40] sm:$0xf] %vm161, %v124
  %178 = vst.msk [vmem:[#allocation2 + $0x44] sm:$0x3] %vm43, %v125
  %179 = vst.msk [vmem:[#allocation2 + $0x48] sm:$0xc] %vm52, %v126
  %180 = vst.msk [vmem:[#allocation2 + $0x4c] sm:$0xf] %vm161, %v129
  %181 = vst.msk [vmem:[#allocation2 + $0x50] sm:$0x3] %vm43, %v130
  %182 = vst.msk [vmem:[#allocation2 + $0x54] sm:$0xc] %vm52, %v131
  %183 = vst.msk [vmem:[#allocation2 + $0x58] sm:$0xf] %vm161, %v134
  %184 = vst.msk [vmem:[#allocation2 + $0x5c] sm:$0x3] %vm43, %v135
  %v185 = vld [vmem:[#allocation2] sm:$0xf]
  %v186 = vld [vmem:[#allocation2 + $0x4] sm:$0xf]
  %v187 = vld [vmem:[#allocation2 + $0xc] sm:$0xf]
  %v188 = vld [vmem:[#allocation2 + $0x10] sm:$0xf]
  %v189 = vld [vmem:[#allocation2 + $0x18] sm:$0xf]
  %v190 = vld [vmem:[#allocation2 + $0x1c] sm:$0xf]
  %v191 = vld [vmem:[#allocation2 + $0x24] sm:$0xf]
  %v192 = vld [vmem:[#allocation2 + $0x28] sm:$0xf]
  %v193 = vld [vmem:[#allocation2 + $0x30] sm:$0xf]
  %v194 = vld [vmem:[#allocation2 + $0x34] sm:$0xf]
  %v195 = vld [vmem:[#allocation2 + $0x3c] sm:$0xf]
  %v196 = vld [vmem:[#allocation2 + $0x40] sm:$0xf]
  %v197 = vld [vmem:[#allocation2 + $0x48] sm:$0xf]
  %v198 = vld [vmem:[#allocation2 + $0x4c] sm:$0xf]
  %v199 = vld [vmem:[#allocation2 + $0x54] sm:$0xf]
  %v200 = vld [vmem:[#allocation2 + $0x58] sm:$0xf]
  %v201 = vld [vmem:[%s1] sm:$0xf]
  %v202 = vld [vmem:[#allocation2 + $0x8] sm:$0x1]
  %v203 = vld [vmem:[#allocation2 + $0x14] sm:$0x1]
  %v204 = vld [vmem:[#allocation2 + $0x20] sm:$0x1]
  %v205 = vld [vmem:[#allocation2 + $0x2c] sm:$0x1]
  %v206 = vld [vmem:[#allocation2 + $0x38] sm:$0x1]
  %v207 = vld [vmem:[#allocation2 + $0x44] sm:$0x1]
  %v208 = vld [vmem:[#allocation2 + $0x50] sm:$0x1]
  %v209 = vld [vmem:[#allocation2 + $0x5c] sm:$0x1]
  %vm210 = vsmask.f32 3328
  %vm211 = vsmask.f32 7440
  %vm212 = vmor %vm210, %vm211
  %v214 = vshrl.u32 %v185, 16
  %v216 = vrot.slane %v214, 4
  %v217 = vshll.u32 %v185, 16
  %v219 = vrot.slane %v217, 5
  %v220 = vor.u32 %v216, %v219
  %v221 = vrot.slane %v220, 4
  %v223 = vshll.u32 %v186, 16
  %v225 = vrot.slane %v223, 5
  %v226 = vsel %vm212, %v221, %v225
  %v227 = vshrl.u32 %v186, 16
  %v229 = vrot.slane %v227, 4
  %v230 = vor.u32 %v229, %v225
  %v231 = vrot.slane %v230, 4
  %v233 = vshll.u32 %v202, 16
  %v235 = vrot.slane %v233, 5
  %v236 = vsel %vm212, %v231, %v235
  %v238 = vshrl.u32 %v187, 16
  %v240 = vrot.slane %v238, 4
  %v241 = vshll.u32 %v187, 16
  %v243 = vrot.slane %v241, 5
  %v244 = vor.u32 %v240, %v243
  %v245 = vrot.slane %v244, 4
  %v247 = vshll.u32 %v188, 16
  %v249 = vrot.slane %v247, 5
  %v250 = vsel %vm212, %v245, %v249
  %v251 = vshrl.u32 %v188, 16
  %v253 = vrot.slane %v251, 4
  %v254 = vor.u32 %v253, %v249
  %v255 = vrot.slane %v254, 4
  %v257 = vshll.u32 %v203, 16
  %v259 = vrot.slane %v257, 5
  %v260 = vsel %vm212, %v255, %v259
  %v262 = vshrl.u32 %v189, 16
  %v264 = vrot.slane %v262, 4
  %v265 = vshll.u32 %v189, 16
  %v267 = vrot.slane %v265, 5
  %v268 = vor.u32 %v264, %v267
  %v269 = vrot.slane %v268, 4
  %v271 = vshll.u32 %v190, 16
  %v273 = vrot.slane %v271, 5
  %v274 = vsel %vm212, %v269, %v273
  %v275 = vshrl.u32 %v190, 16
  %v277 = vrot.slane %v275, 4
  %v278 = vor.u32 %v277, %v273
  %v279 = vrot.slane %v278, 4
  %v281 = vshll.u32 %v204, 16
  %v283 = vrot.slane %v281, 5
  %v284 = vsel %vm212, %v279, %v283
  %v286 = vshrl.u32 %v191, 16
  %v288 = vrot.slane %v286, 4
  %v289 = vshll.u32 %v191, 16
  %v291 = vrot.slane %v289, 5
  %v292 = vor.u32 %v288, %v291
  %v293 = vrot.slane %v292, 4
  %v295 = vshll.u32 %v192, 16
  %v297 = vrot.slane %v295, 5
  %v298 = vsel %vm212, %v293, %v297
  %v299 = vshrl.u32 %v192, 16
  %v301 = vrot.slane %v299, 4
  %v302 = vor.u32 %v301, %v297
  %v303 = vrot.slane %v302, 4
  %v305 = vshll.u32 %v205, 16
  %v307 = vrot.slane %v305, 5
  %v308 = vsel %vm212, %v303, %v307
  %v310 = vshrl.u32 %v193, 16
  %v312 = vrot.slane %v310, 4
  %v313 = vshll.u32 %v193, 16
  %v315 = vrot.slane %v313, 5
  %v316 = vor.u32 %v312, %v315
  %v317 = vrot.slane %v316, 4
  %v319 = vshll.u32 %v194, 16
  %v321 = vrot.slane %v319, 5
  %v322 = vsel %vm212, %v317, %v321
  %v323 = vshrl.u32 %v194, 16
  %v325 = vrot.slane %v323, 4
  %v326 = vor.u32 %v325, %v321
  %v327 = vrot.slane %v326, 4
  %v329 = vshll.u32 %v206, 16
  %v331 = vrot.slane %v329, 5
  %v332 = vsel %vm212, %v327, %v331
  %v334 = vshrl.u32 %v195, 16
  %v336 = vrot.slane %v334, 4
  %v337 = vshll.u32 %v195, 16
  %v339 = vrot.slane %v337, 5
  %v340 = vor.u32 %v336, %v339
  %v341 = vrot.slane %v340, 4
  %v343 = vshll.u32 %v196, 16
  %v345 = vrot.slane %v343, 5
  %v346 = vsel %vm212, %v341, %v345
  %v347 = vshrl.u32 %v196, 16
  %v349 = vrot.slane %v347, 4
  %v350 = vor.u32 %v349, %v345
  %v351 = vrot.slane %v350, 4
  %v353 = vshll.u32 %v207, 16
  %v355 = vrot.slane %v353, 5
  %v356 = vsel %vm212, %v351, %v355
  %v358 = vshrl.u32 %v197, 16
  %v360 = vrot.slane %v358, 4
  %v361 = vshll.u32 %v197, 16
  %v363 = vrot.slane %v361, 5
  %v364 = vor.u32 %v360, %v363
  %v365 = vrot.slane %v364, 4
  %v367 = vshll.u32 %v198, 16
  %v369 = vrot.slane %v367, 5
  %v370 = vsel %vm212, %v365, %v369
  %v371 = vshrl.u32 %v198, 16
  %v373 = vrot.slane %v371, 4
  %v374 = vor.u32 %v373, %v369
  %v375 = vrot.slane %v374, 4
  %v377 = vshll.u32 %v208, 16
  %v379 = vrot.slane %v377, 5
  %v380 = vsel %vm212, %v375, %v379
  %v382 = vshrl.u32 %v199, 16
  %v384 = vrot.slane %v382, 4
  %v385 = vshll.u32 %v199, 16
  %v387 = vrot.slane %v385, 5
  %v388 = vor.u32 %v384, %v387
  %v389 = vrot.slane %v388, 4
  %v391 = vshll.u32 %v200, 16
  %v393 = vrot.slane %v391, 5
  %v394 = vsel %vm212, %v389, %v393
  %v395 = vshrl.u32 %v200, 16
  %v397 = vrot.slane %v395, 4
  %v398 = vor.u32 %v397, %v393
  %v399 = vrot.slane %v398, 4
  %v401 = vshll.u32 %v209, 16
  %v403 = vrot.slane %v401, 5
  %v404 = vsel %vm212, %v399, %v403
  %s405 = scalar_lea.vmem %s1, 4
  %v406 = vld [vmem:[%s405] sm:$0xf]
  %v407 = vunpack.c.l.b16 %v226
  %v408 = vunpack.c.l.b16 %v236
  %v409 = vunpack.c.l.b16 %v250
  %v410 = vunpack.c.l.b16 %v260
  %v411 = vunpack.c.l.b16 %v274
  %v412 = vunpack.c.l.b16 %v284
  %v413 = vunpack.c.l.b16 %v298
  %v414 = vunpack.c.l.b16 %v308
  %v415 = vunpack.c.l.b16 %v322
  %v416 = vunpack.c.l.b16 %v332
  %v417 = vunpack.c.l.b16 %v346
  %v418 = vunpack.c.l.b16 %v356
  %v419 = vunpack.c.l.b16 %v370
  %v420 = vunpack.c.l.b16 %v380
  %v421 = vunpack.c.l.b16 %v394
  %v422 = vunpack.c.l.b16 %v404
  %v423 = vpack.c.b16 %v408, %v407
  %v424 = vpack.c.b16 %v410, %v409
  %v425 = vpack.c.b16 %v412, %v411
  %v426 = vpack.c.b16 %v414, %v413
  %v427 = vpack.c.b16 %v416, %v415
  %v428 = vpack.c.b16 %v418, %v417
  %v429 = vpack.c.b16 %v420, %v419
  %v430 = vpack.c.b16 %v422, %v421
  %vm431 = vcmask 64512
  %v433 = vsel %vm431, %v423, 0
  %v436 = vsel %vm431, %v424, 0
  %v439 = vsel %vm431, %v425, 0
  %v442 = vsel %vm431, %v426, 0
  %v445 = vsel %vm431, %v427, 0
  %v448 = vsel %vm431, %v428, 0
  %v451 = vsel %vm431, %v429, 0
  %v454 = vsel %vm431, %v430, 0
  %vm456 = vcmask 1043456
  %v458 = vsel %vm456, %v406, 0
  %460 = vmatpush.bf16.msra.mxu0 0
  %461 = vmatpush.bf16.msra.mxu0 0
  %462 = vmatpush.bf16.msra.mxu0 0
  %463 = vmatpush.bf16.msra.mxu0 0
  %464 = vmatpush.bf16.msra.mxu0 0
  %465 = vmatpush.bf16.msra.mxu0 0
  %466 = vmatpush.bf16.msra.mxu0 0
  %467 = vmatpush.bf16.msra.mxu0 %v458
  %468 = vmatmul.bf16.gmra.mxu0 %v433
  %v469 = vpop.f32.mrf.mxu0
  %v470 = vadd.f32 0.0, %v469
  %v471 = vpop.f32.mrf.mxu0
  %v472 = vadd.f32 0.0, %v471
  %473 = vmatmul.bf16.gmra.mxu0 %v436
  %v474 = vpop.f32.mrf.mxu0
  %v475 = vadd.f32 0.0, %v474
  %v476 = vpop.f32.mrf.mxu0
  %v477 = vadd.f32 0.0, %v476
  %478 = vmatmul.bf16.gmra.mxu0 %v439
  %v479 = vpop.f32.mrf.mxu0
  %v480 = vadd.f32 0.0, %v479
  %v481 = vpop.f32.mrf.mxu0
  %v482 = vadd.f32 0.0, %v481
  %483 = vmatmul.bf16.gmra.mxu0 %v442
  %v484 = vpop.f32.mrf.mxu0
  %v485 = vadd.f32 0.0, %v484
  %v486 = vpop.f32.mrf.mxu0
  %v487 = vadd.f32 0.0, %v486
  %488 = vmatmul.bf16.gmra.mxu0 %v445
  %v489 = vpop.f32.mrf.mxu0
  %v490 = vadd.f32 0.0, %v489
  %v491 = vpop.f32.mrf.mxu0
  %v492 = vadd.f32 0.0, %v491
  %493 = vmatmul.bf16.gmra.mxu0 %v448
  %v494 = vpop.f32.mrf.mxu0
  %v495 = vadd.f32 0.0, %v494
  %v496 = vpop.f32.mrf.mxu0
  %v497 = vadd.f32 0.0, %v496
  %498 = vmatmul.bf16.gmra.mxu0 %v451
  %v499 = vpop.f32.mrf.mxu0
  %v500 = vadd.f32 0.0, %v499
  %v501 = vpop.f32.mrf.mxu0
  %v502 = vadd.f32 0.0, %v501
  %503 = vmatmul.bf16.gmra.mxu0 %v454
  %v504 = vpop.f32.mrf.mxu0
  %v505 = vadd.f32 0.0, %v504
  %v506 = vpop.f32.mrf.mxu0
  %v507 = vadd.f32 0.0, %v506
  %508 = vdwg.mxu0
  %v525 = vunpack.c.l.b16 %v185
  %v526 = vunpack.c.l.b16 %v186
  %v527 = vunpack.c.l.b16 %v187
  %v528 = vunpack.c.l.b16 %v188
  %v529 = vunpack.c.l.b16 %v189
  %v530 = vunpack.c.l.b16 %v190
  %v531 = vunpack.c.l.b16 %v191
  %v532 = vunpack.c.l.b16 %v192
  %v533 = vunpack.c.l.b16 %v193
  %v534 = vunpack.c.l.b16 %v194
  %v535 = vunpack.c.l.b16 %v195
  %v536 = vunpack.c.l.b16 %v196
  %v537 = vunpack.c.l.b16 %v197
  %v538 = vunpack.c.l.b16 %v198
  %v539 = vunpack.c.l.b16 %v199
  %v540 = vunpack.c.l.b16 %v200
  %v541 = vpack.c.b16 %v526, %v525
  %v542 = vpack.c.b16 %v528, %v527
  %v543 = vpack.c.b16 %v530, %v529
  %v544 = vpack.c.b16 %v532, %v531
  %v545 = vpack.c.b16 %v534, %v533
  %v546 = vpack.c.b16 %v536, %v535
  %v547 = vpack.c.b16 %v538, %v537
  %v548 = vpack.c.b16 %v540, %v539
  %v550 = vsel %vm431, %v541, 0
  %v553 = vsel %vm431, %v542, 0
  %v556 = vsel %vm431, %v543, 0
  %v559 = vsel %vm431, %v544, 0
  %v562 = vsel %vm431, %v545, 0
  %v565 = vsel %vm431, %v546, 0
  %v568 = vsel %vm431, %v547, 0
  %v571 = vsel %vm431, %v548, 0
  %v574 = vsel %vm456, %v201, 0
  %576 = vmatpush.bf16.msra.mxu0 0
  %577 = vmatpush.bf16.msra.mxu0 0
  %578 = vmatpush.bf16.msra.mxu0 0
  %579 = vmatpush.bf16.msra.mxu0 0
  %580 = vmatpush.bf16.msra.mxu0 0
  %581 = vmatpush.bf16.msra.mxu0 0
  %582 = vmatpush.bf16.msra.mxu0 0
  %583 = vmatpush.bf16.msra.mxu0 %v574
  %584 = vmatmul.bf16.gmra.mxu0 %v550
  %v585 = vpop.f32.mrf.mxu0
  %v586 = vadd.f32 %v470, %v585
  %v587 = vpop.f32.mrf.mxu0
  %v588 = vadd.f32 %v472, %v587
  %589 = vmatmul.bf16.gmra.mxu0 %v553
  %v590 = vpop.f32.mrf.mxu0
  %v591 = vadd.f32 %v475, %v590
  %v592 = vpop.f32.mrf.mxu0
  %v593 = vadd.f32 %v477, %v592
  %594 = vmatmul.bf16.gmra.mxu0 %v556
  %v595 = vpop.f32.mrf.mxu0
  %v596 = vadd.f32 %v480, %v595
  %v597 = vpop.f32.mrf.mxu0
  %v598 = vadd.f32 %v482, %v597
  %599 = vmatmul.bf16.gmra.mxu0 %v559
  %v600 = vpop.f32.mrf.mxu0
  %v601 = vadd.f32 %v485, %v600
  %v602 = vpop.f32.mrf.mxu0
  %v603 = vadd.f32 %v487, %v602
  %604 = vmatmul.bf16.gmra.mxu0 %v562
  %v605 = vpop.f32.mrf.mxu0
  %v606 = vadd.f32 %v490, %v605
  %v607 = vpop.f32.mrf.mxu0
  %v608 = vadd.f32 %v492, %v607
  %609 = vmatmul.bf16.gmra.mxu0 %v565
  %v610 = vpop.f32.mrf.mxu0
  %v611 = vadd.f32 %v495, %v610
  %v612 = vpop.f32.mrf.mxu0
  %v613 = vadd.f32 %v497, %v612
  %614 = vmatmul.bf16.gmra.mxu0 %v568
  %v615 = vpop.f32.mrf.mxu0
  %v616 = vadd.f32 %v500, %v615
  %v617 = vpop.f32.mrf.mxu0
  %v618 = vadd.f32 %v502, %v617
  %619 = vmatmul.bf16.gmra.mxu0 %v571
  %v620 = vpop.f32.mrf.mxu0
  %v621 = vadd.f32 %v505, %v620
  %v622 = vpop.f32.mrf.mxu0
  %v623 = vadd.f32 %v507, %v622
  %624 = vdwg.mxu0
  %v625 = vld [vmem:[#allocation2] sm:$0xe]
  %v626 = vld [vmem:[#allocation2 + $0xc] sm:$0xe]
  %v627 = vld [vmem:[#allocation2 + $0x18] sm:$0xe]
  %v628 = vld [vmem:[#allocation2 + $0x24] sm:$0xe]
  %v629 = vld [vmem:[#allocation2 + $0x30] sm:$0xe]
  %v630 = vld [vmem:[#allocation2 + $0x3c] sm:$0xe]
  %v631 = vld [vmem:[#allocation2 + $0x48] sm:$0xe]
  %v632 = vld [vmem:[#allocation2 + $0x54] sm:$0xe]
  %vm649 = vcmask 1042432
  %vm650 = vcmask 1046532
  %vm651 = vmor %vm649, %vm650
  %v652 = vrot.slane %v625, 5
  %v653 = vrot.slane %v652, 4
  %v654 = vrot.slane %v186, 5
  %v655 = vsel %vm651, %v653, %v654
  %v656 = vrot.slane %v654, 4
  %v657 = vrot.slane %v202, 5
  %v658 = vsel %vm651, %v656, %v657
  %v659 = vrot.slane %v626, 5
  %v660 = vrot.slane %v659, 4
  %v661 = vrot.slane %v188, 5
  %v662 = vsel %vm651, %v660, %v661
  %v663 = vrot.slane %v661, 4
  %v664 = vrot.slane %v203, 5
  %v665 = vsel %vm651, %v663, %v664
  %v666 = vrot.slane %v627, 5
  %v667 = vrot.slane %v666, 4
  %v668 = vrot.slane %v190, 5
  %v669 = vsel %vm651, %v667, %v668
  %v670 = vrot.slane %v668, 4
  %v671 = vrot.slane %v204, 5
  %v672 = vsel %vm651, %v670, %v671
  %v673 = vrot.slane %v628, 5
  %v674 = vrot.slane %v673, 4
  %v675 = vrot.slane %v192, 5
  %v676 = vsel %vm651, %v674, %v675
  %v677 = vrot.slane %v675, 4
  %v678 = vrot.slane %v205, 5
  %v679 = vsel %vm651, %v677, %v678
  %v680 = vrot.slane %v629, 5
  %v681 = vrot.slane %v680, 4
  %v682 = vrot.slane %v194, 5
  %v683 = vsel %vm651, %v681, %v682
  %v684 = vrot.slane %v682, 4
  %v685 = vrot.slane %v206, 5
  %v686 = vsel %vm651, %v684, %v685
  %v687 = vrot.slane %v630, 5
  %v688 = vrot.slane %v687, 4
  %v689 = vrot.slane %v196, 5
  %v690 = vsel %vm651, %v688, %v689
  %v691 = vrot.slane %v689, 4
  %v692 = vrot.slane %v207, 5
  %v693 = vsel %vm651, %v691, %v692
  %v694 = vrot.slane %v631, 5
  %v695 = vrot.slane %v694, 4
  %v696 = vrot.slane %v198, 5
  %v697 = vsel %vm651, %v695, %v696
  %v698 = vrot.slane %v696, 4
  %v699 = vrot.slane %v208, 5
  %v700 = vsel %vm651, %v698, %v699
  %v701 = vrot.slane %v632, 5
  %v702 = vrot.slane %v701, 4
  %v703 = vrot.slane %v200, 5
  %v704 = vsel %vm651, %v702, %v703
  %v705 = vrot.slane %v703, 4
  %v706 = vrot.slane %v209, 5
  %v707 = vsel %vm651, %v705, %v706
  %s708 = scalar_lea.vmem %s1, 8
  %v709 = vld [vmem:[%s708] sm:$0xf]
  %v710 = vunpack.c.l.b16 %v655
  %v711 = vunpack.c.l.b16 %v658
  %v712 = vunpack.c.l.b16 %v662
  %v713 = vunpack.c.l.b16 %v665
  %v714 = vunpack.c.l.b16 %v669
  %v715 = vunpack.c.l.b16 %v672
  %v716 = vunpack.c.l.b16 %v676
  %v717 = vunpack.c.l.b16 %v679
  %v718 = vunpack.c.l.b16 %v683
  %v719 = vunpack.c.l.b16 %v686
  %v720 = vunpack.c.l.b16 %v690
  %v721 = vunpack.c.l.b16 %v693
  %v722 = vunpack.c.l.b16 %v697
  %v723 = vunpack.c.l.b16 %v700
  %v724 = vunpack.c.l.b16 %v704
  %v725 = vunpack.c.l.b16 %v707
  %v726 = vpack.c.b16 %v711, %v710
  %v727 = vpack.c.b16 %v713, %v712
  %v728 = vpack.c.b16 %v715, %v714
  %v729 = vpack.c.b16 %v717, %v716
  %v730 = vpack.c.b16 %v719, %v718
  %v731 = vpack.c.b16 %v721, %v720
  %v732 = vpack.c.b16 %v723, %v722
  %v733 = vpack.c.b16 %v725, %v724
  %v735 = vsel %vm431, %v726, 0
  %v738 = vsel %vm431, %v727, 0
  %v741 = vsel %vm431, %v728, 0
  %v744 = vsel %vm431, %v729, 0
  %v747 = vsel %vm431, %v730, 0
  %v750 = vsel %vm431, %v731, 0
  %v753 = vsel %vm431, %v732, 0
  %v756 = vsel %vm431, %v733, 0
  %v759 = vsel %vm456, %v709, 0
  %761 = vmatpush.bf16.msra.mxu0 0
  %762 = vmatpush.bf16.msra.mxu0 0
  %763 = vmatpush.bf16.msra.mxu0 0
  %764 = vmatpush.bf16.msra.mxu0 0
  %765 = vmatpush.bf16.msra.mxu0 0
  %766 = vmatpush.bf16.msra.mxu0 0
  %767 = vmatpush.bf16.msra.mxu0 0
  %768 = vmatpush.bf16.msra.mxu0 %v759
  %769 = vmatmul.bf16.gmra.mxu0 %v735
  %v770 = vpop.f32.mrf.mxu0
  %v771 = vadd.f32 0.0, %v770
  %v772 = vpop.f32.mrf.mxu0
  %v773 = vadd.f32 0.0, %v772
  %774 = vmatmul.bf16.gmra.mxu0 %v738
  %v775 = vpop.f32.mrf.mxu0
  %v776 = vadd.f32 0.0, %v775
  %v777 = vpop.f32.mrf.mxu0
  %v778 = vadd.f32 0.0, %v777
  %779 = vmatmul.bf16.gmra.mxu0 %v741
  %v780 = vpop.f32.mrf.mxu0
  %v781 = vadd.f32 0.0, %v780
  %v782 = vpop.f32.mrf.mxu0
  %v783 = vadd.f32 0.0, %v782
  %784 = vmatmul.bf16.gmra.mxu0 %v744
  %v785 = vpop.f32.mrf.mxu0
  %v786 = vadd.f32 0.0, %v785
  %v787 = vpop.f32.mrf.mxu0
  %v788 = vadd.f32 0.0, %v787
  %789 = vmatmul.bf16.gmra.mxu0 %v747
  %v790 = vpop.f32.mrf.mxu0
  %v791 = vadd.f32 0.0, %v790
  %v792 = vpop.f32.mrf.mxu0
  %v793 = vadd.f32 0.0, %v792
  %794 = vmatmul.bf16.gmra.mxu0 %v750
  %v795 = vpop.f32.mrf.mxu0
  %v796 = vadd.f32 0.0, %v795
  %v797 = vpop.f32.mrf.mxu0
  %v798 = vadd.f32 0.0, %v797
  %799 = vmatmul.bf16.gmra.mxu0 %v753
  %v800 = vpop.f32.mrf.mxu0
  %v801 = vadd.f32 0.0, %v800
  %v802 = vpop.f32.mrf.mxu0
  %v803 = vadd.f32 0.0, %v802
  %804 = vmatmul.bf16.gmra.mxu0 %v756
  %v805 = vpop.f32.mrf.mxu0
  %v806 = vadd.f32 0.0, %v805
  %v807 = vpop.f32.mrf.mxu0
  %v808 = vadd.f32 0.0, %v807
  %809 = vdwg.mxu0
  %v810 = vadd.f32 %v586, %v771
  %v811 = vadd.f32 %v588, %v773
  %v812 = vadd.f32 %v591, %v776
  %v813 = vadd.f32 %v593, %v778
  %v814 = vadd.f32 %v596, %v781
  %v815 = vadd.f32 %v598, %v783
  %v816 = vadd.f32 %v601, %v786
  %v817 = vadd.f32 %v603, %v788
  %v818 = vadd.f32 %v606, %v791
  %v819 = vadd.f32 %v608, %v793
  %v820 = vadd.f32 %v611, %v796
  %v821 = vadd.f32 %v613, %v798
  %v822 = vadd.f32 %v616, %v801
  %v823 = vadd.f32 %v618, %v803
  %v824 = vadd.f32 %v621, %v806
  %v825 = vadd.f32 %v623, %v808
  %v826 = vld [vmem:[#allocation2 + $0x8] sm:$0x3]
  %v827 = vld [vmem:[#allocation2 + $0x14] sm:$0x3]
  %v828 = vld [vmem:[#allocation2 + $0x20] sm:$0x3]
  %v829 = vld [vmem:[#allocation2 + $0x2c] sm:$0x3]
  %v830 = vld [vmem:[#allocation2 + $0x38] sm:$0x3]
  %v831 = vld [vmem:[#allocation2 + $0x44] sm:$0x3]
  %v832 = vld [vmem:[#allocation2 + $0x50] sm:$0x3]
  %v833 = vld [vmem:[#allocation2 + $0x5c] sm:$0x3]
  %vm834 = vsmask.f32 2304
  %vm835 = vsmask.f32 6416
  %vm836 = vmor %vm834, %vm835
  %v838 = vshrl.u32 %v625, 16
  %v840 = vrot.slane %v838, 5
  %v841 = vshll.u32 %v625, 16
  %v843 = vrot.slane %v841, 6
  %v844 = vor.u32 %v840, %v843
  %v845 = vrot.slane %v844, 4
  %v846 = vrot.slane %v227, 5
  %v847 = vrot.slane %v223, 6
  %v848 = vor.u32 %v846, %v847
  %v849 = vsel %vm836, %v845, %v848
  %v850 = vrot.slane %v848, 4
  %v852 = vshrl.u32 %v826, 16
  %v854 = vrot.slane %v852, 5
  %v855 = vshll.u32 %v826, 16
  %v857 = vrot.slane %v855, 6
  %v858 = vor.u32 %v854, %v857
  %v859 = vsel %vm836, %v850, %v858
  %v861 = vshrl.u32 %v626, 16
  %v863 = vrot.slane %v861, 5
  %v864 = vshll.u32 %v626, 16
  %v866 = vrot.slane %v864, 6
  %v867 = vor.u32 %v863, %v866
  %v868 = vrot.slane %v867, 4
  %v869 = vrot.slane %v251, 5
  %v870 = vrot.slane %v247, 6
  %v871 = vor.u32 %v869, %v870
  %v872 = vsel %vm836, %v868, %v871
  %v873 = vrot.slane %v871, 4
  %v875 = vshrl.u32 %v827, 16
  %v877 = vrot.slane %v875, 5
  %v878 = vshll.u32 %v827, 16
  %v880 = vrot.slane %v878, 6
  %v881 = vor.u32 %v877, %v880
  %v882 = vsel %vm836, %v873, %v881
  %v884 = vshrl.u32 %v627, 16
  %v886 = vrot.slane %v884, 5
  %v887 = vshll.u32 %v627, 16
  %v889 = vrot.slane %v887, 6
  %v890 = vor.u32 %v886, %v889
  %v891 = vrot.slane %v890, 4
  %v892 = vrot.slane %v275, 5
  %v893 = vrot.slane %v271, 6
  %v894 = vor.u32 %v892, %v893
  %v895 = vsel %vm836, %v891, %v894
  %v896 = vrot.slane %v894, 4
  %v898 = vshrl.u32 %v828, 16
  %v900 = vrot.slane %v898, 5
  %v901 = vshll.u32 %v828, 16
  %v903 = vrot.slane %v901, 6
  %v904 = vor.u32 %v900, %v903
  %v905 = vsel %vm836, %v896, %v904
  %v907 = vshrl.u32 %v628, 16
  %v909 = vrot.slane %v907, 5
  %v910 = vshll.u32 %v628, 16
  %v912 = vrot.slane %v910, 6
  %v913 = vor.u32 %v909, %v912
  %v914 = vrot.slane %v913, 4
  %v915 = vrot.slane %v299, 5
  %v916 = vrot.slane %v295, 6
  %v917 = vor.u32 %v915, %v916
  %v918 = vsel %vm836, %v914, %v917
  %v919 = vrot.slane %v917, 4
  %v921 = vshrl.u32 %v829, 16
  %v923 = vrot.slane %v921, 5
  %v924 = vshll.u32 %v829, 16
  %v926 = vrot.slane %v924, 6
  %v927 = vor.u32 %v923, %v926
  %v928 = vsel %vm836, %v919, %v927
  %v930 = vshrl.u32 %v629, 16
  %v932 = vrot.slane %v930, 5
  %v933 = vshll.u32 %v629, 16
  %v935 = vrot.slane %v933, 6
  %v936 = vor.u32 %v932, %v935
  %v937 = vrot.slane %v936, 4
  %v938 = vrot.slane %v323, 5
  %v939 = vrot.slane %v319, 6
  %v940 = vor.u32 %v938, %v939
  %v941 = vsel %vm836, %v937, %v940
  %v942 = vrot.slane %v940, 4
  %v944 = vshrl.u32 %v830, 16
  %v946 = vrot.slane %v944, 5
  %v947 = vshll.u32 %v830, 16
  %v949 = vrot.slane %v947, 6
  %v950 = vor.u32 %v946, %v949
  %v951 = vsel %vm836, %v942, %v950
  %v953 = vshrl.u32 %v630, 16
  %v955 = vrot.slane %v953, 5
  %v956 = vshll.u32 %v630, 16
  %v958 = vrot.slane %v956, 6
  %v959 = vor.u32 %v955, %v958
  %v960 = vrot.slane %v959, 4
  %v961 = vrot.slane %v347, 5
  %v962 = vrot.slane %v343, 6
  %v963 = vor.u32 %v961, %v962
  %v964 = vsel %vm836, %v960, %v963
  %v965 = vrot.slane %v963, 4
  %v967 = vshrl.u32 %v831, 16
  %v969 = vrot.slane %v967, 5
  %v970 = vshll.u32 %v831, 16
  %v972 = vrot.slane %v970, 6
  %v973 = vor.u32 %v969, %v972
  %v974 = vsel %vm836, %v965, %v973
  %v976 = vshrl.u32 %v631, 16
  %v978 = vrot.slane %v976, 5
  %v979 = vshll.u32 %v631, 16
  %v981 = vrot.slane %v979, 6
  %v982 = vor.u32 %v978, %v981
  %v983 = vrot.slane %v982, 4
  %v984 = vrot.slane %v371, 5
  %v985 = vrot.slane %v367, 6
  %v986 = vor.u32 %v984, %v985
  %v987 = vsel %vm836, %v983, %v986
  %v988 = vrot.slane %v986, 4
  %v990 = vshrl.u32 %v832, 16
  %v992 = vrot.slane %v990, 5
  %v993 = vshll.u32 %v832, 16
  %v995 = vrot.slane %v993, 6
  %v996 = vor.u32 %v992, %v995
  %v997 = vsel %vm836, %v988, %v996
  %v999 = vshrl.u32 %v632, 16
  %v1001 = vrot.slane %v999, 5
  %v1002 = vshll.u32 %v632, 16
  %v1004 = vrot.slane %v1002, 6
  %v1005 = vor.u32 %v1001, %v1004
  %v1006 = vrot.slane %v1005, 4
  %v1007 = vrot.slane %v395, 5
  %v1008 = vrot.slane %v391, 6
  %v1009 = vor.u32 %v1007, %v1008
  %v1010 = vsel %vm836, %v1006, %v1009
  %v1011 = vrot.slane %v1009, 4
  %v1013 = vshrl.u32 %v833, 16
  %v1015 = vrot.slane %v1013, 5
  %v1016 = vshll.u32 %v833, 16
  %v1018 = vrot.slane %v1016, 6
  %v1019 = vor.u32 %v1015, %v1018
  %v1020 = vsel %vm836, %v1011, %v1019
  %s1021 = scalar_lea.vmem %s1, 12
  %v1022 = vld [vmem:[%s1021] sm:$0xf]
  %v1023 = vunpack.c.l.b16 %v849
  %v1024 = vunpack.c.l.b16 %v859
  %v1025 = vunpack.c.l.b16 %v872
  %v1026 = vunpack.c.l.b16 %v882
  %v1027 = vunpack.c.l.b16 %v895
  %v1028 = vunpack.c.l.b16 %v905
  %v1029 = vunpack.c.l.b16 %v918
  %v1030 = vunpack.c.l.b16 %v928
  %v1031 = vunpack.c.l.b16 %v941
  %v1032 = vunpack.c.l.b16 %v951
  %v1033 = vunpack.c.l.b16 %v964
  %v1034 = vunpack.c.l.b16 %v974
  %v1035 = vunpack.c.l.b16 %v987
  %v1036 = vunpack.c.l.b16 %v997
  %v1037 = vunpack.c.l.b16 %v1010
  %v1038 = vunpack.c.l.b16 %v1020
  %v1039 = vpack.c.b16 %v1024, %v1023
  %v1040 = vpack.c.b16 %v1026, %v1025
  %v1041 = vpack.c.b16 %v1028, %v1027
  %v1042 = vpack.c.b16 %v1030, %v1029
  %v1043 = vpack.c.b16 %v1032, %v1031
  %v1044 = vpack.c.b16 %v1034, %v1033
  %v1045 = vpack.c.b16 %v1036, %v1035
  %v1046 = vpack.c.b16 %v1038, %v1037
  %v1048 = vsel %vm431, %v1039, 0
  %v1051 = vsel %vm431, %v1040, 0
  %v1054 = vsel %vm431, %v1041, 0
  %v1057 = vsel %vm431, %v1042, 0
  %v1060 = vsel %vm431, %v1043, 0
  %v1063 = vsel %vm431, %v1044, 0
  %v1066 = vsel %vm431, %v1045, 0
  %v1069 = vsel %vm431, %v1046, 0
  %v1072 = vsel %vm456, %v1022, 0
  %1074 = vmatpush.bf16.msra.mxu0 0
  %1075 = vmatpush.bf16.msra.mxu0 0
  %1076 = vmatpush.bf16.msra.mxu0 0
  %1077 = vmatpush.bf16.msra.mxu0 0
  %1078 = vmatpush.bf16.msra.mxu0 0
  %1079 = vmatpush.bf16.msra.mxu0 0
  %1080 = vmatpush.bf16.msra.mxu0 0
  %1081 = vmatpush.bf16.msra.mxu0 %v1072
  %1082 = vmatmul.bf16.gmra.mxu0 %v1048
  %v1083 = vpop.f32.mrf.mxu0
  %v1084 = vadd.f32 0.0, %v1083
  %v1085 = vpop.f32.mrf.mxu0
  %v1086 = vadd.f32 0.0, %v1085
  %1087 = vmatmul.bf16.gmra.mxu0 %v1051
  %v1088 = vpop.f32.mrf.mxu0
  %v1089 = vadd.f32 0.0, %v1088
  %v1090 = vpop.f32.mrf.mxu0
  %v1091 = vadd.f32 0.0, %v1090
  %1092 = vmatmul.bf16.gmra.mxu0 %v1054
  %v1093 = vpop.f32.mrf.mxu0
  %v1094 = vadd.f32 0.0, %v1093
  %v1095 = vpop.f32.mrf.mxu0
  %v1096 = vadd.f32 0.0, %v1095
  %1097 = vmatmul.bf16.gmra.mxu0 %v1057
  %v1098 = vpop.f32.mrf.mxu0
  %v1099 = vadd.f32 0.0, %v1098
  %v1100 = vpop.f32.mrf.mxu0
  %v1101 = vadd.f32 0.0, %v1100
  %1102 = vmatmul.bf16.gmra.mxu0 %v1060
  %v1103 = vpop.f32.mrf.mxu0
  %v1104 = vadd.f32 0.0, %v1103
  %v1105 = vpop.f32.mrf.mxu0
  %v1106 = vadd.f32 0.0, %v1105
  %1107 = vmatmul.bf16.gmra.mxu0 %v1063
  %v1108 = vpop.f32.mrf.mxu0
  %v1109 = vadd.f32 0.0, %v1108
  %v1110 = vpop.f32.mrf.mxu0
  %v1111 = vadd.f32 0.0, %v1110
  %1112 = vmatmul.bf16.gmra.mxu0 %v1066
  %v1113 = vpop.f32.mrf.mxu0
  %v1114 = vadd.f32 0.0, %v1113
  %v1115 = vpop.f32.mrf.mxu0
  %v1116 = vadd.f32 0.0, %v1115
  %1117 = vmatmul.bf16.gmra.mxu0 %v1069
  %v1118 = vpop.f32.mrf.mxu0
  %v1119 = vadd.f32 0.0, %v1118
  %v1120 = vpop.f32.mrf.mxu0
  %v1121 = vadd.f32 0.0, %v1120
  %1122 = vdwg.mxu0
  %v1123 = vadd.f32 %v810, %v1084
  %v1124 = vadd.f32 %v811, %v1086
  %v1125 = vadd.f32 %v812, %v1089
  %v1126 = vadd.f32 %v813, %v1091
  %v1127 = vadd.f32 %v814, %v1094
  %v1128 = vadd.f32 %v815, %v1096
  %v1129 = vadd.f32 %v816, %v1099
  %v1130 = vadd.f32 %v817, %v1101
  %v1131 = vadd.f32 %v818, %v1104
  %v1132 = vadd.f32 %v819, %v1106
  %v1133 = vadd.f32 %v820, %v1109
  %v1134 = vadd.f32 %v821, %v1111
  %v1135 = vadd.f32 %v822, %v1114
  %v1136 = vadd.f32 %v823, %v1116
  %v1137 = vadd.f32 %v824, %v1119
  %v1138 = vadd.f32 %v825, %v1121
  %v1139 = vld [vmem:[#allocation2] sm:$0xc]
  %v1140 = vld [vmem:[#allocation2 + $0xc] sm:$0xc]
  %v1141 = vld [vmem:[#allocation2 + $0x18] sm:$0xc]
  %v1142 = vld [vmem:[#allocation2 + $0x24] sm:$0xc]
  %v1143 = vld [vmem:[#allocation2 + $0x30] sm:$0xc]
  %v1144 = vld [vmem:[#allocation2 + $0x3c] sm:$0xc]
  %v1145 = vld [vmem:[#allocation2 + $0x48] sm:$0xc]
  %v1146 = vld [vmem:[#allocation2 + $0x54] sm:$0xc]
  %v1163 = vrot.slane %v1139, 6
  %v1164 = vrot.slane %v1163, 4
  %v1165 = vrot.slane %v186, 6
  %v1166 = vsel %vm95, %v1164, %v1165
  %v1167 = vrot.slane %v1165, 4
  %v1168 = vrot.slane %v826, 6
  %v1169 = vsel %vm95, %v1167, %v1168
  %v1170 = vrot.slane %v1140, 6
  %v1171 = vrot.slane %v1170, 4
  %v1172 = vrot.slane %v188, 6
  %v1173 = vsel %vm95, %v1171, %v1172
  %v1174 = vrot.slane %v1172, 4
  %v1175 = vrot.slane %v827, 6
  %v1176 = vsel %vm95, %v1174, %v1175
  %v1177 = vrot.slane %v1141, 6
  %v1178 = vrot.slane %v1177, 4
  %v1179 = vrot.slane %v190, 6
  %v1180 = vsel %vm95, %v1178, %v1179
  %v1181 = vrot.slane %v1179, 4
  %v1182 = vrot.slane %v828, 6
  %v1183 = vsel %vm95, %v1181, %v1182
  %v1184 = vrot.slane %v1142, 6
  %v1185 = vrot.slane %v1184, 4
  %v1186 = vrot.slane %v192, 6
  %v1187 = vsel %vm95, %v1185, %v1186
  %v1188 = vrot.slane %v1186, 4
  %v1189 = vrot.slane %v829, 6
  %v1190 = vsel %vm95, %v1188, %v1189
  %v1191 = vrot.slane %v1143, 6
  %v1192 = vrot.slane %v1191, 4
  %v1193 = vrot.slane %v194, 6
  %v1194 = vsel %vm95, %v1192, %v1193
  %v1195 = vrot.slane %v1193, 4
  %v1196 = vrot.slane %v830, 6
  %v1197 = vsel %vm95, %v1195, %v1196
  %v1198 = vrot.slane %v1144, 6
  %v1199 = vrot.slane %v1198, 4
  %v1200 = vrot.slane %v196, 6
  %v1201 = vsel %vm95, %v1199, %v1200
  %v1202 = vrot.slane %v1200, 4
  %v1203 = vrot.slane %v831, 6
  %v1204 = vsel %vm95, %v1202, %v1203
  %v1205 = vrot.slane %v1145, 6
  %v1206 = vrot.slane %v1205, 4
  %v1207 = vrot.slane %v198, 6
  %v1208 = vsel %vm95, %v1206, %v1207
  %v1209 = vrot.slane %v1207, 4
  %v1210 = vrot.slane %v832, 6
  %v1211 = vsel %vm95, %v1209, %v1210
  %v1212 = vrot.slane %v1146, 6
  %v1213 = vrot.slane %v1212, 4
  %v1214 = vrot.slane %v200, 6
  %v1215 = vsel %vm95, %v1213, %v1214
  %v1216 = vrot.slane %v1214, 4
  %v1217 = vrot.slane %v833, 6
  %v1218 = vsel %vm95, %v1216, %v1217
  %s1219 = scalar_lea.vmem %s1, 16
  %v1220 = vld [vmem:[%s1219] sm:$0xf]
  %v1221 = vunpack.c.l.b16 %v1166
  %v1222 = vunpack.c.l.b16 %v1169
  %v1223 = vunpack.c.l.b16 %v1173
  %v1224 = vunpack.c.l.b16 %v1176
  %v1225 = vunpack.c.l.b16 %v1180
  %v1226 = vunpack.c.l.b16 %v1183
  %v1227 = vunpack.c.l.b16 %v1187
  %v1228 = vunpack.c.l.b16 %v1190
  %v1229 = vunpack.c.l.b16 %v1194
  %v1230 = vunpack.c.l.b16 %v1197
  %v1231 = vunpack.c.l.b16 %v1201
  %v1232 = vunpack.c.l.b16 %v1204
  %v1233 = vunpack.c.l.b16 %v1208
  %v1234 = vunpack.c.l.b16 %v1211
  %v1235 = vunpack.c.l.b16 %v1215
  %v1236 = vunpack.c.l.b16 %v1218
  %v1237 = vpack.c.b16 %v1222, %v1221
  %v1238 = vpack.c.b16 %v1224, %v1223
  %v1239 = vpack.c.b16 %v1226, %v1225
  %v1240 = vpack.c.b16 %v1228, %v1227
  %v1241 = vpack.c.b16 %v1230, %v1229
  %v1242 = vpack.c.b16 %v1232, %v1231
  %v1243 = vpack.c.b16 %v1234, %v1233
  %v1244 = vpack.c.b16 %v1236, %v1235
  %v1246 = vsel %vm431, %v1237, 0
  %v1249 = vsel %vm431, %v1238, 0
  %v1252 = vsel %vm431, %v1239, 0
  %v1255 = vsel %vm431, %v1240, 0
  %v1258 = vsel %vm431, %v1241, 0
  %v1261 = vsel %vm431, %v1242, 0
  %v1264 = vsel %vm431, %v1243, 0
  %v1267 = vsel %vm431, %v1244, 0
  %v1270 = vsel %vm456, %v1220, 0
  %1272 = vmatpush.bf16.msra.mxu0 0
  %1273 = vmatpush.bf16.msra.mxu0 0
  %1274 = vmatpush.bf16.msra.mxu0 0
  %1275 = vmatpush.bf16.msra.mxu0 0
  %1276 = vmatpush.bf16.msra.mxu0 0
  %1277 = vmatpush.bf16.msra.mxu0 0
  %1278 = vmatpush.bf16.msra.mxu0 0
  %1279 = vmatpush.bf16.msra.mxu0 %v1270
  %1280 = vmatmul.bf16.gmra.mxu0 %v1246
  %v1281 = vpop.f32.mrf.mxu0
  %v1282 = vadd.f32 0.0, %v1281
  %v1283 = vpop.f32.mrf.mxu0
  %v1284 = vadd.f32 0.0, %v1283
  %1285 = vmatmul.bf16.gmra.mxu0 %v1249
  %v1286 = vpop.f32.mrf.mxu0
  %v1287 = vadd.f32 0.0, %v1286
  %v1288 = vpop.f32.mrf.mxu0
  %v1289 = vadd.f32 0.0, %v1288
  %1290 = vmatmul.bf16.gmra.mxu0 %v1252
  %v1291 = vpop.f32.mrf.mxu0
  %v1292 = vadd.f32 0.0, %v1291
  %v1293 = vpop.f32.mrf.mxu0
  %v1294 = vadd.f32 0.0, %v1293
  %1295 = vmatmul.bf16.gmra.mxu0 %v1255
  %v1296 = vpop.f32.mrf.mxu0
  %v1297 = vadd.f32 0.0, %v1296
  %v1298 = vpop.f32.mrf.mxu0
  %v1299 = vadd.f32 0.0, %v1298
  %1300 = vmatmul.bf16.gmra.mxu0 %v1258
  %v1301 = vpop.f32.mrf.mxu0
  %v1302 = vadd.f32 0.0, %v1301
  %v1303 = vpop.f32.mrf.mxu0
  %v1304 = vadd.f32 0.0, %v1303
  %1305 = vmatmul.bf16.gmra.mxu0 %v1261
  %v1306 = vpop.f32.mrf.mxu0
  %v1307 = vadd.f32 0.0, %v1306
  %v1308 = vpop.f32.mrf.mxu0
  %v1309 = vadd.f32 0.0, %v1308
  %1310 = vmatmul.bf16.gmra.mxu0 %v1264
  %v1311 = vpop.f32.mrf.mxu0
  %v1312 = vadd.f32 0.0, %v1311
  %v1313 = vpop.f32.mrf.mxu0
  %v1314 = vadd.f32 0.0, %v1313
  %1315 = vmatmul.bf16.gmra.mxu0 %v1267
  %v1316 = vpop.f32.mrf.mxu0
  %v1317 = vadd.f32 0.0, %v1316
  %v1318 = vpop.f32.mrf.mxu0
  %v1319 = vadd.f32 0.0, %v1318
  %1320 = vdwg.mxu0
  %v1321 = vadd.f32 %v1123, %v1282
  %v1322 = vadd.f32 %v1124, %v1284
  %v1323 = vadd.f32 %v1125, %v1287
  %v1324 = vadd.f32 %v1126, %v1289
  %v1325 = vadd.f32 %v1127, %v1292
  %v1326 = vadd.f32 %v1128, %v1294
  %v1327 = vadd.f32 %v1129, %v1297
  %v1328 = vadd.f32 %v1130, %v1299
  %v1329 = vadd.f32 %v1131, %v1302
  %v1330 = vadd.f32 %v1132, %v1304
  %v1331 = vadd.f32 %v1133, %v1307
  %v1332 = vadd.f32 %v1134, %v1309
  %v1333 = vadd.f32 %v1135, %v1312
  %v1334 = vadd.f32 %v1136, %v1314
  %v1335 = vadd.f32 %v1137, %v1317
  %v1336 = vadd.f32 %v1138, %v1319
  %v1337 = vld [vmem:[#allocation2 + $0x8] sm:$0x7]
  %v1338 = vld [vmem:[#allocation2 + $0x14] sm:$0x7]
  %v1339 = vld [vmem:[#allocation2 + $0x20] sm:$0x7]
  %v1340 = vld [vmem:[#allocation2 + $0x2c] sm:$0x7]
  %v1341 = vld [vmem:[#allocation2 + $0x38] sm:$0x7]
  %v1342 = vld [vmem:[#allocation2 + $0x44] sm:$0x7]
  %v1343 = vld [vmem:[#allocation2 + $0x50] sm:$0x7]
  %v1344 = vld [vmem:[#allocation2 + $0x5c] sm:$0x7]
  %vm1345 = vsmask.f32 1280
  %vm1346 = vsmask.f32 5392
  %vm1347 = vmor %vm1345, %vm1346
  %v1349 = vshrl.u32 %v1139, 16
  %v1351 = vrot.slane %v1349, 6
  %v1352 = vshll.u32 %v1139, 16
  %v1354 = vrot.slane %v1352, 7
  %v1355 = vor.u32 %v1351, %v1354
  %v1356 = vrot.slane %v1355, 4
  %v1357 = vrot.slane %v227, 6
  %v1358 = vrot.slane %v223, 7
  %v1359 = vor.u32 %v1357, %v1358
  %v1360 = vsel %vm1347, %v1356, %v1359
  %v1361 = vrot.slane %v1359, 4
  %v1363 = vshrl.u32 %v1337, 16
  %v1365 = vrot.slane %v1363, 6
  %v1366 = vshll.u32 %v1337, 16
  %v1368 = vrot.slane %v1366, 7
  %v1369 = vor.u32 %v1365, %v1368
  %v1370 = vsel %vm1347, %v1361, %v1369
  %v1372 = vshrl.u32 %v1140, 16
  %v1374 = vrot.slane %v1372, 6
  %v1375 = vshll.u32 %v1140, 16
  %v1377 = vrot.slane %v1375, 7
  %v1378 = vor.u32 %v1374, %v1377
  %v1379 = vrot.slane %v1378, 4
  %v1380 = vrot.slane %v251, 6
  %v1381 = vrot.slane %v247, 7
  %v1382 = vor.u32 %v1380, %v1381
  %v1383 = vsel %vm1347, %v1379, %v1382
  %v1384 = vrot.slane %v1382, 4
  %v1386 = vshrl.u32 %v1338, 16
  %v1388 = vrot.slane %v1386, 6
  %v1389 = vshll.u32 %v1338, 16
  %v1391 = vrot.slane %v1389, 7
  %v1392 = vor.u32 %v1388, %v1391
  %v1393 = vsel %vm1347, %v1384, %v1392
  %v1395 = vshrl.u32 %v1141, 16
  %v1397 = vrot.slane %v1395, 6
  %v1398 = vshll.u32 %v1141, 16
  %v1400 = vrot.slane %v1398, 7
  %v1401 = vor.u32 %v1397, %v1400
  %v1402 = vrot.slane %v1401, 4
  %v1403 = vrot.slane %v275, 6
  %v1404 = vrot.slane %v271, 7
  %v1405 = vor.u32 %v1403, %v1404
  %v1406 = vsel %vm1347, %v1402, %v1405
  %v1407 = vrot.slane %v1405, 4
  %v1409 = vshrl.u32 %v1339, 16
  %v1411 = vrot.slane %v1409, 6
  %v1412 = vshll.u32 %v1339, 16
  %v1414 = vrot.slane %v1412, 7
  %v1415 = vor.u32 %v1411, %v1414
  %v1416 = vsel %vm1347, %v1407, %v1415
  %v1418 = vshrl.u32 %v1142, 16
  %v1420 = vrot.slane %v1418, 6
  %v1421 = vshll.u32 %v1142, 16
  %v1423 = vrot.slane %v1421, 7
  %v1424 = vor.u32 %v1420, %v1423
  %v1425 = vrot.slane %v1424, 4
  %v1426 = vrot.slane %v299, 6
  %v1427 = vrot.slane %v295, 7
  %v1428 = vor.u32 %v1426, %v1427
  %v1429 = vsel %vm1347, %v1425, %v1428
  %v1430 = vrot.slane %v1428, 4
  %v1432 = vshrl.u32 %v1340, 16
  %v1434 = vrot.slane %v1432, 6
  %v1435 = vshll.u32 %v1340, 16
  %v1437 = vrot.slane %v1435, 7
  %v1438 = vor.u32 %v1434, %v1437
  %v1439 = vsel %vm1347, %v1430, %v1438
  %v1441 = vshrl.u32 %v1143, 16
  %v1443 = vrot.slane %v1441, 6
  %v1444 = vshll.u32 %v1143, 16
  %v1446 = vrot.slane %v1444, 7
  %v1447 = vor.u32 %v1443, %v1446
  %v1448 = vrot.slane %v1447, 4
  %v1449 = vrot.slane %v323, 6
  %v1450 = vrot.slane %v319, 7
  %v1451 = vor.u32 %v1449, %v1450
  %v1452 = vsel %vm1347, %v1448, %v1451
  %v1453 = vrot.slane %v1451, 4
  %v1455 = vshrl.u32 %v1341, 16
  %v1457 = vrot.slane %v1455, 6
  %v1458 = vshll.u32 %v1341, 16
  %v1460 = vrot.slane %v1458, 7
  %v1461 = vor.u32 %v1457, %v1460
  %v1462 = vsel %vm1347, %v1453, %v1461
  %v1464 = vshrl.u32 %v1144, 16
  %v1466 = vrot.slane %v1464, 6
  %v1467 = vshll.u32 %v1144, 16
  %v1469 = vrot.slane %v1467, 7
  %v1470 = vor.u32 %v1466, %v1469
  %v1471 = vrot.slane %v1470, 4
  %v1472 = vrot.slane %v347, 6
  %v1473 = vrot.slane %v343, 7
  %v1474 = vor.u32 %v1472, %v1473
  %v1475 = vsel %vm1347, %v1471, %v1474
  %v1476 = vrot.slane %v1474, 4
  %v1478 = vshrl.u32 %v1342, 16
  %v1480 = vrot.slane %v1478, 6
  %v1481 = vshll.u32 %v1342, 16
  %v1483 = vrot.slane %v1481, 7
  %v1484 = vor.u32 %v1480, %v1483
  %v1485 = vsel %vm1347, %v1476, %v1484
  %v1487 = vshrl.u32 %v1145, 16
  %v1489 = vrot.slane %v1487, 6
  %v1490 = vshll.u32 %v1145, 16
  %v1492 = vrot.slane %v1490, 7
  %v1493 = vor.u32 %v1489, %v1492
  %v1494 = vrot.slane %v1493, 4
  %v1495 = vrot.slane %v371, 6
  %v1496 = vrot.slane %v367, 7
  %v1497 = vor.u32 %v1495, %v1496
  %v1498 = vsel %vm1347, %v1494, %v1497
  %v1499 = vrot.slane %v1497, 4
  %v1501 = vshrl.u32 %v1343, 16
  %v1503 = vrot.slane %v1501, 6
  %v1504 = vshll.u32 %v1343, 16
  %v1506 = vrot.slane %v1504, 7
  %v1507 = vor.u32 %v1503, %v1506
  %v1508 = vsel %vm1347, %v1499, %v1507
  %v1510 = vshrl.u32 %v1146, 16
  %v1512 = vrot.slane %v1510, 6
  %v1513 = vshll.u32 %v1146, 16
  %v1515 = vrot.slane %v1513, 7
  %v1516 = vor.u32 %v1512, %v1515
  %v1517 = vrot.slane %v1516, 4
  %v1518 = vrot.slane %v395, 6
  %v1519 = vrot.slane %v391, 7
  %v1520 = vor.u32 %v1518, %v1519
  %v1521 = vsel %vm1347, %v1517, %v1520
  %v1522 = vrot.slane %v1520, 4
  %v1524 = vshrl.u32 %v1344, 16
  %v1526 = vrot.slane %v1524, 6
  %v1527 = vshll.u32 %v1344, 16
  %v1529 = vrot.slane %v1527, 7
  %v1530 = vor.u32 %v1526, %v1529
  %v1531 = vsel %vm1347, %v1522, %v1530
  %s1532 = scalar_lea.vmem %s1, 20
  %v1533 = vld [vmem:[%s1532] sm:$0xf]
  %v1534 = vunpack.c.l.b16 %v1360
  %v1535 = vunpack.c.l.b16 %v1370
  %v1536 = vunpack.c.l.b16 %v1383
  %v1537 = vunpack.c.l.b16 %v1393
  %v1538 = vunpack.c.l.b16 %v1406
  %v1539 = vunpack.c.l.b16 %v1416
  %v1540 = vunpack.c.l.b16 %v1429
  %v1541 = vunpack.c.l.b16 %v1439
  %v1542 = vunpack.c.l.b16 %v1452
  %v1543 = vunpack.c.l.b16 %v1462
  %v1544 = vunpack.c.l.b16 %v1475
  %v1545 = vunpack.c.l.b16 %v1485
  %v1546 = vunpack.c.l.b16 %v1498
  %v1547 = vunpack.c.l.b16 %v1508
  %v1548 = vunpack.c.l.b16 %v1521
  %v1549 = vunpack.c.l.b16 %v1531
  %v1550 = vpack.c.b16 %v1535, %v1534
  %v1551 = vpack.c.b16 %v1537, %v1536
  %v1552 = vpack.c.b16 %v1539, %v1538
  %v1553 = vpack.c.b16 %v1541, %v1540
  %v1554 = vpack.c.b16 %v1543, %v1542
  %v1555 = vpack.c.b16 %v1545, %v1544
  %v1556 = vpack.c.b16 %v1547, %v1546
  %v1557 = vpack.c.b16 %v1549, %v1548
  %v1559 = vsel %vm431, %v1550, 0
  %v1562 = vsel %vm431, %v1551, 0
  %v1565 = vsel %vm431, %v1552, 0
  %v1568 = vsel %vm431, %v1553, 0
  %v1571 = vsel %vm431, %v1554, 0
  %v1574 = vsel %vm431, %v1555, 0
  %v1577 = vsel %vm431, %v1556, 0
  %v1580 = vsel %vm431, %v1557, 0
  %v1583 = vsel %vm456, %v1533, 0
  %1585 = vmatpush.bf16.msra.mxu0 0
  %1586 = vmatpush.bf16.msra.mxu0 0
  %1587 = vmatpush.bf16.msra.mxu0 0
  %1588 = vmatpush.bf16.msra.mxu0 0
  %1589 = vmatpush.bf16.msra.mxu0 0
  %1590 = vmatpush.bf16.msra.mxu0 0
  %1591 = vmatpush.bf16.msra.mxu0 0
  %1592 = vmatpush.bf16.msra.mxu0 %v1583
  %1593 = vmatmul.bf16.gmra.mxu0 %v1559
  %v1594 = vpop.f32.mrf.mxu0
  %v1595 = vadd.f32 0.0, %v1594
  %v1596 = vpop.f32.mrf.mxu0
  %v1597 = vadd.f32 0.0, %v1596
  %1598 = vmatmul.bf16.gmra.mxu0 %v1562
  %v1599 = vpop.f32.mrf.mxu0
  %v1600 = vadd.f32 0.0, %v1599
  %v1601 = vpop.f32.mrf.mxu0
  %v1602 = vadd.f32 0.0, %v1601
  %1603 = vmatmul.bf16.gmra.mxu0 %v1565
  %v1604 = vpop.f32.mrf.mxu0
  %v1605 = vadd.f32 0.0, %v1604
  %v1606 = vpop.f32.mrf.mxu0
  %v1607 = vadd.f32 0.0, %v1606
  %1608 = vmatmul.bf16.gmra.mxu0 %v1568
  %v1609 = vpop.f32.mrf.mxu0
  %v1610 = vadd.f32 0.0, %v1609
  %v1611 = vpop.f32.mrf.mxu0
  %v1612 = vadd.f32 0.0, %v1611
  %1613 = vmatmul.bf16.gmra.mxu0 %v1571
  %v1614 = vpop.f32.mrf.mxu0
  %v1615 = vadd.f32 0.0, %v1614
  %v1616 = vpop.f32.mrf.mxu0
  %v1617 = vadd.f32 0.0, %v1616
  %1618 = vmatmul.bf16.gmra.mxu0 %v1574
  %v1619 = vpop.f32.mrf.mxu0
  %v1620 = vadd.f32 0.0, %v1619
  %v1621 = vpop.f32.mrf.mxu0
  %v1622 = vadd.f32 0.0, %v1621
  %1623 = vmatmul.bf16.gmra.mxu0 %v1577
  %v1624 = vpop.f32.mrf.mxu0
  %v1625 = vadd.f32 0.0, %v1624
  %v1626 = vpop.f32.mrf.mxu0
  %v1627 = vadd.f32 0.0, %v1626
  %1628 = vmatmul.bf16.gmra.mxu0 %v1580
  %v1629 = vpop.f32.mrf.mxu0
  %v1630 = vadd.f32 0.0, %v1629
  %v1631 = vpop.f32.mrf.mxu0
  %v1632 = vadd.f32 0.0, %v1631
  %1633 = vdwg.mxu0
  %v1634 = vadd.f32 %v1321, %v1595
  %v1635 = vadd.f32 %v1322, %v1597
  %v1636 = vadd.f32 %v1323, %v1600
  %v1637 = vadd.f32 %v1324, %v1602
  %v1638 = vadd.f32 %v1325, %v1605
  %v1639 = vadd.f32 %v1326, %v1607
  %v1640 = vadd.f32 %v1327, %v1610
  %v1641 = vadd.f32 %v1328, %v1612
  %v1642 = vadd.f32 %v1329, %v1615
  %v1643 = vadd.f32 %v1330, %v1617
  %v1644 = vadd.f32 %v1331, %v1620
  %v1645 = vadd.f32 %v1332, %v1622
  %v1646 = vadd.f32 %v1333, %v1625
  %v1647 = vadd.f32 %v1334, %v1627
  %v1648 = vadd.f32 %v1335, %v1630
  %v1649 = vadd.f32 %v1336, %v1632
  %v1650 = vld [vmem:[#allocation2] sm:$0x8]
  %v1651 = vld [vmem:[#allocation2 + $0xc] sm:$0x8]
  %v1652 = vld [vmem:[#allocation2 + $0x18] sm:$0x8]
  %v1653 = vld [vmem:[#allocation2 + $0x24] sm:$0x8]
  %v1654 = vld [vmem:[#allocation2 + $0x30] sm:$0x8]
  %v1655 = vld [vmem:[#allocation2 + $0x3c] sm:$0x8]
  %v1656 = vld [vmem:[#allocation2 + $0x48] sm:$0x8]
  %v1657 = vld [vmem:[#allocation2 + $0x54] sm:$0x8]
  %vm1674 = vcmask 1040384
  %vm1675 = vcmask 1044484
  %vm1676 = vmor %vm1674, %vm1675
  %v1677 = vrot.slane %v1650, 7
  %v1678 = vrot.slane %v1677, 4
  %v1679 = vrot.slane %v186, 7
  %v1680 = vsel %vm1676, %v1678, %v1679
  %v1681 = vrot.slane %v1679, 4
  %v1682 = vrot.slane %v1337, 7
  %v1683 = vsel %vm1676, %v1681, %v1682
  %v1684 = vrot.slane %v1651, 7
  %v1685 = vrot.slane %v1684, 4
  %v1686 = vrot.slane %v188, 7
  %v1687 = vsel %vm1676, %v1685, %v1686
  %v1688 = vrot.slane %v1686, 4
  %v1689 = vrot.slane %v1338, 7
  %v1690 = vsel %vm1676, %v1688, %v1689
  %v1691 = vrot.slane %v1652, 7
  %v1692 = vrot.slane %v1691, 4
  %v1693 = vrot.slane %v190, 7
  %v1694 = vsel %vm1676, %v1692, %v1693
  %v1695 = vrot.slane %v1693, 4
  %v1696 = vrot.slane %v1339, 7
  %v1697 = vsel %vm1676, %v1695, %v1696
  %v1698 = vrot.slane %v1653, 7
  %v1699 = vrot.slane %v1698, 4
  %v1700 = vrot.slane %v192, 7
  %v1701 = vsel %vm1676, %v1699, %v1700
  %v1702 = vrot.slane %v1700, 4
  %v1703 = vrot.slane %v1340, 7
  %v1704 = vsel %vm1676, %v1702, %v1703
  %v1705 = vrot.slane %v1654, 7
  %v1706 = vrot.slane %v1705, 4
  %v1707 = vrot.slane %v194, 7
  %v1708 = vsel %vm1676, %v1706, %v1707
  %v1709 = vrot.slane %v1707, 4
  %v1710 = vrot.slane %v1341, 7
  %v1711 = vsel %vm1676, %v1709, %v1710
  %v1712 = vrot.slane %v1655, 7
  %v1713 = vrot.slane %v1712, 4
  %v1714 = vrot.slane %v196, 7
  %v1715 = vsel %vm1676, %v1713, %v1714
  %v1716 = vrot.slane %v1714, 4
  %v1717 = vrot.slane %v1342, 7
  %v1718 = vsel %vm1676, %v1716, %v1717
  %v1719 = vrot.slane %v1656, 7
  %v1720 = vrot.slane %v1719, 4
  %v1721 = vrot.slane %v198, 7
  %v1722 = vsel %vm1676, %v1720, %v1721
  %v1723 = vrot.slane %v1721, 4
  %v1724 = vrot.slane %v1343, 7
  %v1725 = vsel %vm1676, %v1723, %v1724
  %v1726 = vrot.slane %v1657, 7
  %v1727 = vrot.slane %v1726, 4
  %v1728 = vrot.slane %v200, 7
  %v1729 = vsel %vm1676, %v1727, %v1728
  %v1730 = vrot.slane %v1728, 4
  %v1731 = vrot.slane %v1344, 7
  %v1732 = vsel %vm1676, %v1730, %v1731
  %s1733 = scalar_lea.vmem %s1, 24
  %v1734 = vld [vmem:[%s1733] sm:$0xf]
  %v1735 = vunpack.c.l.b16 %v1680
  %v1736 = vunpack.c.l.b16 %v1683
  %v1737 = vunpack.c.l.b16 %v1687
  %v1738 = vunpack.c.l.b16 %v1690
  %v1739 = vunpack.c.l.b16 %v1694
  %v1740 = vunpack.c.l.b16 %v1697
  %v1741 = vunpack.c.l.b16 %v1701
  %v1742 = vunpack.c.l.b16 %v1704
  %v1743 = vunpack.c.l.b16 %v1708
  %v1744 = vunpack.c.l.b16 %v1711
  %v1745 = vunpack.c.l.b16 %v1715
  %v1746 = vunpack.c.l.b16 %v1718
  %v1747 = vunpack.c.l.b16 %v1722
  %v1748 = vunpack.c.l.b16 %v1725
  %v1749 = vunpack.c.l.b16 %v1729
  %v1750 = vunpack.c.l.b16 %v1732
  %v1751 = vpack.c.b16 %v1736, %v1735
  %v1752 = vpack.c.b16 %v1738, %v1737
  %v1753 = vpack.c.b16 %v1740, %v1739
  %v1754 = vpack.c.b16 %v1742, %v1741
  %v1755 = vpack.c.b16 %v1744, %v1743
  %v1756 = vpack.c.b16 %v1746, %v1745
  %v1757 = vpack.c.b16 %v1748, %v1747
  %v1758 = vpack.c.b16 %v1750, %v1749
  %v1760 = vsel %vm431, %v1751, 0
  %v1763 = vsel %vm431, %v1752, 0
  %v1766 = vsel %vm431, %v1753, 0
  %v1769 = vsel %vm431, %v1754, 0
  %v1772 = vsel %vm431, %v1755, 0
  %v1775 = vsel %vm431, %v1756, 0
  %v1778 = vsel %vm431, %v1757, 0
  %v1781 = vsel %vm431, %v1758, 0
  %v1784 = vsel %vm456, %v1734, 0
  %1786 = vmatpush.bf16.msra.mxu0 0
  %1787 = vmatpush.bf16.msra.mxu0 0
  %1788 = vmatpush.bf16.msra.mxu0 0
  %1789 = vmatpush.bf16.msra.mxu0 0
  %1790 = vmatpush.bf16.msra.mxu0 0
  %1791 = vmatpush.bf16.msra.mxu0 0
  %1792 = vmatpush.bf16.msra.mxu0 0
  %1793 = vmatpush.bf16.msra.mxu0 %v1784
  %1794 = vmatmul.bf16.gmra.mxu0 %v1760
  %v1795 = vpop.f32.mrf.mxu0
  %v1796 = vadd.f32 0.0, %v1795
  %v1797 = vpop.f32.mrf.mxu0
  %v1798 = vadd.f32 0.0, %v1797
  %1799 = vmatmul.bf16.gmra.mxu0 %v1763
  %v1800 = vpop.f32.mrf.mxu0
  %v1801 = vadd.f32 0.0, %v1800
  %v1802 = vpop.f32.mrf.mxu0
  %v1803 = vadd.f32 0.0, %v1802
  %1804 = vmatmul.bf16.gmra.mxu0 %v1766
  %v1805 = vpop.f32.mrf.mxu0
  %v1806 = vadd.f32 0.0, %v1805
  %v1807 = vpop.f32.mrf.mxu0
  %v1808 = vadd.f32 0.0, %v1807
  %1809 = vmatmul.bf16.gmra.mxu0 %v1769
  %v1810 = vpop.f32.mrf.mxu0
  %v1811 = vadd.f32 0.0, %v1810
  %v1812 = vpop.f32.mrf.mxu0
  %v1813 = vadd.f32 0.0, %v1812
  %1814 = vmatmul.bf16.gmra.mxu0 %v1772
  %v1815 = vpop.f32.mrf.mxu0
  %v1816 = vadd.f32 0.0, %v1815
  %v1817 = vpop.f32.mrf.mxu0
  %v1818 = vadd.f32 0.0, %v1817
  %1819 = vmatmul.bf16.gmra.mxu0 %v1775
  %v1820 = vpop.f32.mrf.mxu0
  %v1821 = vadd.f32 0.0, %v1820
  %v1822 = vpop.f32.mrf.mxu0
  %v1823 = vadd.f32 0.0, %v1822
  %1824 = vmatmul.bf16.gmra.mxu0 %v1778
  %v1825 = vpop.f32.mrf.mxu0
  %v1826 = vadd.f32 0.0, %v1825
  %v1827 = vpop.f32.mrf.mxu0
  %v1828 = vadd.f32 0.0, %v1827
  %1829 = vmatmul.bf16.gmra.mxu0 %v1781
  %v1830 = vpop.f32.mrf.mxu0
  %v1831 = vadd.f32 0.0, %v1830
  %v1832 = vpop.f32.mrf.mxu0
  %v1833 = vadd.f32 0.0, %v1832
  %1834 = vdwg.mxu0
  %v1835 = vadd.f32 %v1634, %v1796
  %v1836 = vadd.f32 %v1635, %v1798
  %v1837 = vadd.f32 %v1636, %v1801
  %v1838 = vadd.f32 %v1637, %v1803
  %v1839 = vadd.f32 %v1638, %v1806
  %v1840 = vadd.f32 %v1639, %v1808
  %v1841 = vadd.f32 %v1640, %v1811
  %v1842 = vadd.f32 %v1641, %v1813
  %v1843 = vadd.f32 %v1642, %v1816
  %v1844 = vadd.f32 %v1643, %v1818
  %v1845 = vadd.f32 %v1644, %v1821
  %v1846 = vadd.f32 %v1645, %v1823
  %v1847 = vadd.f32 %v1646, %v1826
  %v1848 = vadd.f32 %v1647, %v1828
  %v1849 = vadd.f32 %v1648, %v1831
  %v1850 = vadd.f32 %v1649, %v1833
  %v1851 = vld [vmem:[#allocation2 + $0x8] sm:$0xf]
  %v1852 = vld [vmem:[#allocation2 + $0x14] sm:$0xf]
  %v1853 = vld [vmem:[#allocation2 + $0x20] sm:$0xf]
  %v1854 = vld [vmem:[#allocation2 + $0x2c] sm:$0xf]
  %v1855 = vld [vmem:[#allocation2 + $0x38] sm:$0xf]
  %v1856 = vld [vmem:[#allocation2 + $0x44] sm:$0xf]
  %v1857 = vld [vmem:[#allocation2 + $0x50] sm:$0xf]
  %v1858 = vld [vmem:[#allocation2 + $0x5c] sm:$0xf]
  %vm1859 = vsmask.f32 256
  %vm1860 = vsmask.f32 4368
  %vm1861 = vmor %vm1859, %vm1860
  %v1863 = vshrl.u32 %v1650, 16
  %v1865 = vrot.slane %v1863, 7
  %v1866 = vrot.slane %v1865, 4
  %v1867 = vrot.slane %v227, 7
  %v1868 = vor.u32 %v1867, %v223
  %v1869 = vsel %vm1861, %v1866, %v1868
  %v1870 = vrot.slane %v1867, 4
  %v1872 = vshrl.u32 %v1851, 16
  %v1874 = vrot.slane %v1872, 7
  %v1875 = vshll.u32 %v1851, 16
  %v1877 = vor.u32 %v1874, %v1875
  %v1878 = vsel %vm1861, %v1870, %v1877
  %v1880 = vshrl.u32 %v1651, 16
  %v1882 = vrot.slane %v1880, 7
  %v1883 = vrot.slane %v1882, 4
  %v1884 = vrot.slane %v251, 7
  %v1885 = vor.u32 %v1884, %v247
  %v1886 = vsel %vm1861, %v1883, %v1885
  %v1887 = vrot.slane %v1884, 4
  %v1889 = vshrl.u32 %v1852, 16
  %v1891 = vrot.slane %v1889, 7
  %v1892 = vshll.u32 %v1852, 16
  %v1894 = vor.u32 %v1891, %v1892
  %v1895 = vsel %vm1861, %v1887, %v1894
  %v1897 = vshrl.u32 %v1652, 16
  %v1899 = vrot.slane %v1897, 7
  %v1900 = vrot.slane %v1899, 4
  %v1901 = vrot.slane %v275, 7
  %v1902 = vor.u32 %v1901, %v271
  %v1903 = vsel %vm1861, %v1900, %v1902
  %v1904 = vrot.slane %v1901, 4
  %v1906 = vshrl.u32 %v1853, 16
  %v1908 = vrot.slane %v1906, 7
  %v1909 = vshll.u32 %v1853, 16
  %v1911 = vor.u32 %v1908, %v1909
  %v1912 = vsel %vm1861, %v1904, %v1911
  %v1914 = vshrl.u32 %v1653, 16
  %v1916 = vrot.slane %v1914, 7
  %v1917 = vrot.slane %v1916, 4
  %v1918 = vrot.slane %v299, 7
  %v1919 = vor.u32 %v1918, %v295
  %v1920 = vsel %vm1861, %v1917, %v1919
  %v1921 = vrot.slane %v1918, 4
  %v1923 = vshrl.u32 %v1854, 16
  %v1925 = vrot.slane %v1923, 7
  %v1926 = vshll.u32 %v1854, 16
  %v1928 = vor.u32 %v1925, %v1926
  %v1929 = vsel %vm1861, %v1921, %v1928
  %v1931 = vshrl.u32 %v1654, 16
  %v1933 = vrot.slane %v1931, 7
  %v1934 = vrot.slane %v1933, 4
  %v1935 = vrot.slane %v323, 7
  %v1936 = vor.u32 %v1935, %v319
  %v1937 = vsel %vm1861, %v1934, %v1936
  %v1938 = vrot.slane %v1935, 4
  %v1940 = vshrl.u32 %v1855, 16
  %v1942 = vrot.slane %v1940, 7
  %v1943 = vshll.u32 %v1855, 16
  %v1945 = vor.u32 %v1942, %v1943
  %v1946 = vsel %vm1861, %v1938, %v1945
  %v1948 = vshrl.u32 %v1655, 16
  %v1950 = vrot.slane %v1948, 7
  %v1951 = vrot.slane %v1950, 4
  %v1952 = vrot.slane %v347, 7
  %v1953 = vor.u32 %v1952, %v343
  %v1954 = vsel %vm1861, %v1951, %v1953
  %v1955 = vrot.slane %v1952, 4
  %v1957 = vshrl.u32 %v1856, 16
  %v1959 = vrot.slane %v1957, 7
  %v1960 = vshll.u32 %v1856, 16
  %v1962 = vor.u32 %v1959, %v1960
  %v1963 = vsel %vm1861, %v1955, %v1962
  %v1965 = vshrl.u32 %v1656, 16
  %v1967 = vrot.slane %v1965, 7
  %v1968 = vrot.slane %v1967, 4
  %v1969 = vrot.slane %v371, 7
  %v1970 = vor.u32 %v1969, %v367
  %v1971 = vsel %vm1861, %v1968, %v1970
  %v1972 = vrot.slane %v1969, 4
  %v1974 = vshrl.u32 %v1857, 16
  %v1976 = vrot.slane %v1974, 7
  %v1977 = vshll.u32 %v1857, 16
  %v1979 = vor.u32 %v1976, %v1977
  %v1980 = vsel %vm1861, %v1972, %v1979
  %v1982 = vshrl.u32 %v1657, 16
  %v1984 = vrot.slane %v1982, 7
  %v1985 = vrot.slane %v1984, 4
  %v1986 = vrot.slane %v395, 7
  %v1987 = vor.u32 %v1986, %v391
  %v1988 = vsel %vm1861, %v1985, %v1987
  %v1989 = vrot.slane %v1986, 4
  %v1991 = vshrl.u32 %v1858, 16
  %v1993 = vrot.slane %v1991, 7
  %v1994 = vshll.u32 %v1858, 16
  %v1996 = vor.u32 %v1993, %v1994
  %v1997 = vsel %vm1861, %v1989, %v1996
  %s1998 = scalar_lea.vmem %s1, 28
  %v1999 = vld [vmem:[%s1998] sm:$0xf]
  %v2000 = vunpack.c.l.b16 %v1869
  %v2001 = vunpack.c.l.b16 %v1878
  %v2002 = vunpack.c.l.b16 %v1886
  %v2003 = vunpack.c.l.b16 %v1895
  %v2004 = vunpack.c.l.b16 %v1903
  %v2005 = vunpack.c.l.b16 %v1912
  %v2006 = vunpack.c.l.b16 %v1920
  %v2007 = vunpack.c.l.b16 %v1929
  %v2008 = vunpack.c.l.b16 %v1937
  %v2009 = vunpack.c.l.b16 %v1946
  %v2010 = vunpack.c.l.b16 %v1954
  %v2011 = vunpack.c.l.b16 %v1963
  %v2012 = vunpack.c.l.b16 %v1971
  %v2013 = vunpack.c.l.b16 %v1980
  %v2014 = vunpack.c.l.b16 %v1988
  %v2015 = vunpack.c.l.b16 %v1997
  %v2016 = vpack.c.b16 %v2001, %v2000
  %v2017 = vpack.c.b16 %v2003, %v2002
  %v2018 = vpack.c.b16 %v2005, %v2004
  %v2019 = vpack.c.b16 %v2007, %v2006
  %v2020 = vpack.c.b16 %v2009, %v2008
  %v2021 = vpack.c.b16 %v2011, %v2010
  %v2022 = vpack.c.b16 %v2013, %v2012
  %v2023 = vpack.c.b16 %v2015, %v2014
  %v2025 = vsel %vm431, %v2016, 0
  %v2028 = vsel %vm431, %v2017, 0
  %v2031 = vsel %vm431, %v2018, 0
  %v2034 = vsel %vm431, %v2019, 0
  %v2037 = vsel %vm431, %v2020, 0
  %v2040 = vsel %vm431, %v2021, 0
  %v2043 = vsel %vm431, %v2022, 0
  %v2046 = vsel %vm431, %v2023, 0
  %v2049 = vsel %vm456, %v1999, 0
  %2051 = vmatpush.bf16.msra.mxu0 0
  %2052 = vmatpush.bf16.msra.mxu0 0
  %2053 = vmatpush.bf16.msra.mxu0 0
  %2054 = vmatpush.bf16.msra.mxu0 0
  %2055 = vmatpush.bf16.msra.mxu0 0
  %2056 = vmatpush.bf16.msra.mxu0 0
  %2057 = vmatpush.bf16.msra.mxu0 0
  %2058 = vmatpush.bf16.msra.mxu0 %v2049
  %2059 = vmatmul.bf16.gmra.mxu0 %v2025
  %v2060 = vpop.f32.mrf.mxu0
  %v2061 = vadd.f32 0.0, %v2060
  %v2062 = vpop.f32.mrf.mxu0
  %v2063 = vadd.f32 0.0, %v2062
  %2064 = vmatmul.bf16.gmra.mxu0 %v2028
  %v2065 = vpop.f32.mrf.mxu0
  %v2066 = vadd.f32 0.0, %v2065
  %v2067 = vpop.f32.mrf.mxu0
  %v2068 = vadd.f32 0.0, %v2067
  %2069 = vmatmul.bf16.gmra.mxu0 %v2031
  %v2070 = vpop.f32.mrf.mxu0
  %v2071 = vadd.f32 0.0, %v2070
  %v2072 = vpop.f32.mrf.mxu0
  %v2073 = vadd.f32 0.0, %v2072
  %2074 = vmatmul.bf16.gmra.mxu0 %v2034
  %v2075 = vpop.f32.mrf.mxu0
  %v2076 = vadd.f32 0.0, %v2075
  %v2077 = vpop.f32.mrf.mxu0
  %v2078 = vadd.f32 0.0, %v2077
  %2079 = vmatmul.bf16.gmra.mxu0 %v2037
  %v2080 = vpop.f32.mrf.mxu0
  %v2081 = vadd.f32 0.0, %v2080
  %v2082 = vpop.f32.mrf.mxu0
  %v2083 = vadd.f32 0.0, %v2082
  %2084 = vmatmul.bf16.gmra.mxu0 %v2040
  %v2085 = vpop.f32.mrf.mxu0
  %v2086 = vadd.f32 0.0, %v2085
  %v2087 = vpop.f32.mrf.mxu0
  %v2088 = vadd.f32 0.0, %v2087
  %2089 = vmatmul.bf16.gmra.mxu0 %v2043
  %v2090 = vpop.f32.mrf.mxu0
  %v2091 = vadd.f32 0.0, %v2090
  %v2092 = vpop.f32.mrf.mxu0
  %v2093 = vadd.f32 0.0, %v2092
  %2094 = vmatmul.bf16.gmra.mxu0 %v2046
  %v2095 = vpop.f32.mrf.mxu0
  %v2096 = vadd.f32 0.0, %v2095
  %v2097 = vpop.f32.mrf.mxu0
  %v2098 = vadd.f32 0.0, %v2097
  %2099 = vdwg.mxu0
  %v2100 = vadd.f32 %v1835, %v2061
  %v2101 = vadd.f32 %v1836, %v2063
  %v2102 = vadd.f32 %v1837, %v2066
  %v2103 = vadd.f32 %v1838, %v2068
  %v2104 = vadd.f32 %v1839, %v2071
  %v2105 = vadd.f32 %v1840, %v2073
  %v2106 = vadd.f32 %v1841, %v2076
  %v2107 = vadd.f32 %v1842, %v2078
  %v2108 = vadd.f32 %v1843, %v2081
  %v2109 = vadd.f32 %v1844, %v2083
  %v2110 = vadd.f32 %v1845, %v2086
  %v2111 = vadd.f32 %v1846, %v2088
  %v2112 = vadd.f32 %v1847, %v2091
  %v2113 = vadd.f32 %v1848, %v2093
  %v2114 = vadd.f32 %v1849, %v2096
  %v2115 = vadd.f32 %v1850, %v2098
  %s2116 = scalar_lea.vmem %s1, 32
  %v2117 = vld [vmem:[%s2116] sm:$0xf]
  %v2126 = vunpack.c.l.b16 %v1851
  %v2127 = vunpack.c.l.b16 %v1852
  %v2128 = vunpack.c.l.b16 %v1853
  %v2129 = vunpack.c.l.b16 %v1854
  %v2130 = vunpack.c.l.b16 %v1855
  %v2131 = vunpack.c.l.b16 %v1856
  %v2132 = vunpack.c.l.b16 %v1857
  %v2133 = vunpack.c.l.b16 %v1858
  %v2134 = vpack.c.b16 %v2126, %v526
  %v2135 = vpack.c.b16 %v2127, %v528
  %v2136 = vpack.c.b16 %v2128, %v530
  %v2137 = vpack.c.b16 %v2129, %v532
  %v2138 = vpack.c.b16 %v2130, %v534
  %v2139 = vpack.c.b16 %v2131, %v536
  %v2140 = vpack.c.b16 %v2132, %v538
  %v2141 = vpack.c.b16 %v2133, %v540
  %v2143 = vsel %vm431, %v2134, 0
  %v2146 = vsel %vm431, %v2135, 0
  %v2149 = vsel %vm431, %v2136, 0
  %v2152 = vsel %vm431, %v2137, 0
  %v2155 = vsel %vm431, %v2138, 0
  %v2158 = vsel %vm431, %v2139, 0
  %v2161 = vsel %vm431, %v2140, 0
  %v2164 = vsel %vm431, %v2141, 0
  %v2167 = vsel %vm456, %v2117, 0
  %2169 = vmatpush.bf16.msra.mxu0 0
  %2170 = vmatpush.bf16.msra.mxu0 0
  %2171 = vmatpush.bf16.msra.mxu0 0
  %2172 = vmatpush.bf16.msra.mxu0 0
  %2173 = vmatpush.bf16.msra.mxu0 0
  %2174 = vmatpush.bf16.msra.mxu0 0
  %2175 = vmatpush.bf16.msra.mxu0 0
  %2176 = vmatpush.bf16.msra.mxu0 %v2167
  %2177 = vmatmul.bf16.gmra.mxu0 %v2143
  %v2178 = vpop.f32.mrf.mxu0
  %v2179 = vadd.f32 0.0, %v2178
  %v2180 = vpop.f32.mrf.mxu0
  %v2181 = vadd.f32 0.0, %v2180
  %2182 = vmatmul.bf16.gmra.mxu0 %v2146
  %v2183 = vpop.f32.mrf.mxu0
  %v2184 = vadd.f32 0.0, %v2183
  %v2185 = vpop.f32.mrf.mxu0
  %v2186 = vadd.f32 0.0, %v2185
  %2187 = vmatmul.bf16.gmra.mxu0 %v2149
  %v2188 = vpop.f32.mrf.mxu0
  %v2189 = vadd.f32 0.0, %v2188
  %v2190 = vpop.f32.mrf.mxu0
  %v2191 = vadd.f32 0.0, %v2190
  %2192 = vmatmul.bf16.gmra.mxu0 %v2152
  %v2193 = vpop.f32.mrf.mxu0
  %v2194 = vadd.f32 0.0, %v2193
  %v2195 = vpop.f32.mrf.mxu0
  %v2196 = vadd.f32 0.0, %v2195
  %2197 = vmatmul.bf16.gmra.mxu0 %v2155
  %v2198 = vpop.f32.mrf.mxu0
  %v2199 = vadd.f32 0.0, %v2198
  %v2200 = vpop.f32.mrf.mxu0
  %v2201 = vadd.f32 0.0, %v2200
  %2202 = vmatmul.bf16.gmra.mxu0 %v2158
  %v2203 = vpop.f32.mrf.mxu0
  %v2204 = vadd.f32 0.0, %v2203
  %v2205 = vpop.f32.mrf.mxu0
  %v2206 = vadd.f32 0.0, %v2205
  %2207 = vmatmul.bf16.gmra.mxu0 %v2161
  %v2208 = vpop.f32.mrf.mxu0
  %v2209 = vadd.f32 0.0, %v2208
  %v2210 = vpop.f32.mrf.mxu0
  %v2211 = vadd.f32 0.0, %v2210
  %2212 = vmatmul.bf16.gmra.mxu0 %v2164
  %v2213 = vpop.f32.mrf.mxu0
  %v2214 = vadd.f32 0.0, %v2213
  %v2215 = vpop.f32.mrf.mxu0
  %v2216 = vadd.f32 0.0, %v2215
  %2217 = vdwg.mxu0
  %v2218 = vadd.f32 %v2100, %v2179
  %v2219 = vadd.f32 %v2101, %v2181
  %v2220 = vadd.f32 %v2102, %v2184
  %v2221 = vadd.f32 %v2103, %v2186
  %v2222 = vadd.f32 %v2104, %v2189
  %v2223 = vadd.f32 %v2105, %v2191
  %v2224 = vadd.f32 %v2106, %v2194
  %v2225 = vadd.f32 %v2107, %v2196
  %v2226 = vadd.f32 %v2108, %v2199
  %v2227 = vadd.f32 %v2109, %v2201
  %v2228 = vadd.f32 %v2110, %v2204
  %v2229 = vadd.f32 %v2111, %v2206
  %v2230 = vadd.f32 %v2112, %v2209
  %v2231 = vadd.f32 %v2113, %v2211
  %v2232 = vadd.f32 %v2114, %v2214
  %v2233 = vadd.f32 %v2115, %v2216
  %v2234 = vsel %vm431, %v2218, 0.0
  %v2235 = vsel %vm431, %v2219, 0.0
  %v2236 = vadd.f32 %v2234, %v2235
  %v2237 = vsel %vm431, %v2220, 0.0
  %v2238 = vadd.f32 %v2236, %v2237
  %v2239 = vsel %vm431, %v2221, 0.0
  %v2240 = vadd.f32 %v2238, %v2239
  %v2241 = vsel %vm431, %v2222, 0.0
  %v2242 = vadd.f32 %v2240, %v2241
  %v2243 = vsel %vm431, %v2223, 0.0
  %v2244 = vadd.f32 %v2242, %v2243
  %v2245 = vsel %vm431, %v2224, 0.0
  %v2246 = vadd.f32 %v2244, %v2245
  %v2247 = vsel %vm431, %v2225, 0.0
  %v2248 = vadd.f32 %v2246, %v2247
  %v2249 = vsel %vm431, %v2226, 0.0
  %v2250 = vadd.f32 %v2248, %v2249
  %v2251 = vsel %vm431, %v2227, 0.0
  %v2252 = vadd.f32 %v2250, %v2251
  %v2253 = vsel %vm431, %v2228, 0.0
  %v2254 = vadd.f32 %v2252, %v2253
  %v2255 = vsel %vm431, %v2229, 0.0
  %v2256 = vadd.f32 %v2254, %v2255
  %v2257 = vsel %vm431, %v2230, 0.0
  %v2258 = vadd.f32 %v2256, %v2257
  %v2259 = vsel %vm431, %v2231, 0.0
  %v2260 = vadd.f32 %v2258, %v2259
  %v2261 = vsel %vm431, %v2232, 0.0
  %v2262 = vadd.f32 %v2260, %v2261
  %v2263 = vsel %vm431, %v2233, 0.0
  %v2264 = vadd.f32 %v2262, %v2263
  %v2265 = vrot.slane %v2264, 4
  %v2266 = vadd.f32 %v2264, %v2265
  %v2267 = vrot.slane %v2266, 2
  %v2268 = vadd.f32 %v2266, %v2267
  %v2269 = vrot.slane %v2268, 1
  %v2270 = vadd.f32 %v2268, %v2269
  %v2271 = vrcp.pop 128.0
  %v2272 = vmul.f32 128.0, %v2271
  %v2273 = vsub.f32 1.0, %v2272
  %v2274 = vmul.f32 %v2271, %v2273
  %v2275 = vadd.f32 %v2271, %v2274
  %vm2276 = vweird.f32 %v2271
  %v2277 = vsel %vm2276, %v2271, %v2275
  %v2278 = vmul.f32 %v2270, %v2277
  %v2279 = vmul.f32 %v2218, %v2218
  %v2280 = vmul.f32 %v2219, %v2219
  %v2281 = vmul.f32 %v2220, %v2220
  %v2282 = vmul.f32 %v2221, %v2221
  %v2283 = vmul.f32 %v2222, %v2222
  %v2284 = vmul.f32 %v2223, %v2223
  %v2285 = vmul.f32 %v2224, %v2224
  %v2286 = vmul.f32 %v2225, %v2225
  %v2287 = vmul.f32 %v2226, %v2226
  %v2288 = vmul.f32 %v2227, %v2227
  %v2289 = vmul.f32 %v2228, %v2228
  %v2290 = vmul.f32 %v2229, %v2229
  %v2291 = vmul.f32 %v2230, %v2230
  %v2292 = vmul.f32 %v2231, %v2231
  %v2293 = vmul.f32 %v2232, %v2232
  %v2294 = vmul.f32 %v2233, %v2233
  %v2295 = vsel %vm431, %v2279, 0.0
  %v2296 = vsel %vm431, %v2280, 0.0
  %v2297 = vadd.f32 %v2295, %v2296
  %v2298 = vsel %vm431, %v2281, 0.0
  %v2299 = vadd.f32 %v2297, %v2298
  %v2300 = vsel %vm431, %v2282, 0.0
  %v2301 = vadd.f32 %v2299, %v2300
  %v2302 = vsel %vm431, %v2283, 0.0
  %v2303 = vadd.f32 %v2301, %v2302
  %v2304 = vsel %vm431, %v2284, 0.0
  %v2305 = vadd.f32 %v2303, %v2304
  %v2306 = vsel %vm431, %v2285, 0.0
  %v2307 = vadd.f32 %v2305, %v2306
  %v2308 = vsel %vm431, %v2286, 0.0
  %v2309 = vadd.f32 %v2307, %v2308
  %v2310 = vsel %vm431, %v2287, 0.0
  %v2311 = vadd.f32 %v2309, %v2310
  %v2312 = vsel %vm431, %v2288, 0.0
  %v2313 = vadd.f32 %v2311, %v2312
  %v2314 = vsel %vm431, %v2289, 0.0
  %v2315 = vadd.f32 %v2313, %v2314
  %v2316 = vsel %vm431, %v2290, 0.0
  %v2317 = vadd.f32 %v2315, %v2316
  %v2318 = vsel %vm431, %v2291, 0.0
  %v2319 = vadd.f32 %v2317, %v2318
  %v2320 = vsel %vm431, %v2292, 0.0
  %v2321 = vadd.f32 %v2319, %v2320
  %v2322 = vsel %vm431, %v2293, 0.0
  %v2323 = vadd.f32 %v2321, %v2322
  %v2324 = vsel %vm431, %v2294, 0.0
  %v2325 = vadd.f32 %v2323, %v2324
  %v2326 = vrot.slane %v2325, 4
  %v2327 = vadd.f32 %v2325, %v2326
  %v2328 = vrot.slane %v2327, 2
  %v2329 = vadd.f32 %v2327, %v2328
  %v2330 = vrot.slane %v2329, 1
  %v2331 = vadd.f32 %v2329, %v2330
  %v2332 = vmul.f32 %v2331, %v2277
  %v2333 = vmul.f32 %v2278, %v2278
  %v2334 = vsub.f32 %v2332, %v2333
  %v2335 = vsub.f32 %v2218, %v2278
  %v2336 = vsub.f32 %v2219, %v2278
  %v2337 = vsub.f32 %v2220, %v2278
  %v2338 = vsub.f32 %v2221, %v2278
  %v2339 = vsub.f32 %v2222, %v2278
  %v2340 = vsub.f32 %v2223, %v2278
  %v2341 = vsub.f32 %v2224, %v2278
  %v2342 = vsub.f32 %v2225, %v2278
  %v2343 = vsub.f32 %v2226, %v2278
  %v2344 = vsub.f32 %v2227, %v2278
  %v2345 = vsub.f32 %v2228, %v2278
  %v2346 = vsub.f32 %v2229, %v2278
  %v2347 = vsub.f32 %v2230, %v2278
  %v2348 = vsub.f32 %v2231, %v2278
  %v2349 = vsub.f32 %v2232, %v2278
  %v2350 = vsub.f32 %v2233, %v2278
  %v2351 = vadd.f32 %v2334, 1e-05
  %v2352 = vrsqrt.pop %v2351
  %v2353 = vmul.f32 %v2352, %v2351
  %v2354 = vmul.f32 %v2353, %v2352
  %v2355 = vmul.f32 0.5, %v2354
  %v2356 = vsub.f32 1.5, %v2355
  %v2357 = vmul.f32 %v2352, %v2356
  %vm2358 = vweird.f32 %v2351
  %vm2359 = vweird.f32 %v2352
  %vm2360 = vmor %vm2358, %vm2359
  %v2361 = vsel %vm2360, %v2352, %v2357
  %v2362 = vmul.f32 %v2335, %v2361
  %v2363 = vmul.f32 %v2336, %v2361
  %v2364 = vmul.f32 %v2337, %v2361
  %v2365 = vmul.f32 %v2338, %v2361
  %v2366 = vmul.f32 %v2339, %v2361
  %v2367 = vmul.f32 %v2340, %v2361
  %v2368 = vmul.f32 %v2341, %v2361
  %v2369 = vmul.f32 %v2342, %v2361
  %v2370 = vmul.f32 %v2343, %v2361
  %v2371 = vmul.f32 %v2344, %v2361
  %v2372 = vmul.f32 %v2345, %v2361
  %v2373 = vmul.f32 %v2346, %v2361
  %v2374 = vmul.f32 %v2347, %v2361
  %v2375 = vmul.f32 %v2348, %v2361
  %v2376 = vmul.f32 %v2349, %v2361
  %v2377 = vmul.f32 %v2350, %v2361
  %v2378 = vld [vmem:[%s3] sm:$0x1]
  %v2380 = vperm.slane %v2378, 0
  %v2382 = vmul.f32 %v2362, %v2380
  %v2383 = vmul.f32 %v2363, %v2380
  %v2384 = vmul.f32 %v2364, %v2380
  %v2385 = vmul.f32 %v2365, %v2380
  %v2386 = vmul.f32 %v2366, %v2380
  %v2387 = vmul.f32 %v2367, %v2380
  %v2388 = vmul.f32 %v2368, %v2380
  %v2389 = vmul.f32 %v2369, %v2380
  %v2390 = vmul.f32 %v2370, %v2380
  %v2391 = vmul.f32 %v2371, %v2380
  %v2392 = vmul.f32 %v2372, %v2380
  %v2393 = vmul.f32 %v2373, %v2380
  %v2394 = vmul.f32 %v2374, %v2380
  %v2395 = vmul.f32 %v2375, %v2380
  %v2396 = vmul.f32 %v2376, %v2380
  %v2397 = vmul.f32 %v2377, %v2380
  %v2398 = vld [vmem:[%s4] sm:$0x1]
  %v2400 = vperm.slane %v2398, 0
  %v2402 = vadd.f32 %v2382, %v2400
  %v2403 = vadd.f32 %v2383, %v2400
  %v2404 = vadd.f32 %v2384, %v2400
  %v2405 = vadd.f32 %v2385, %v2400
  %v2406 = vadd.f32 %v2386, %v2400
  %v2407 = vadd.f32 %v2387, %v2400
  %v2408 = vadd.f32 %v2388, %v2400
  %v2409 = vadd.f32 %v2389, %v2400
  %v2410 = vadd.f32 %v2390, %v2400
  %v2411 = vadd.f32 %v2391, %v2400
  %v2412 = vadd.f32 %v2392, %v2400
  %v2413 = vadd.f32 %v2393, %v2400
  %v2414 = vadd.f32 %v2394, %v2400
  %v2415 = vadd.f32 %v2395, %v2400
  %v2416 = vadd.f32 %v2396, %v2400
  %v2417 = vadd.f32 %v2397, %v2400
  %v2418 = vmax.f32 %v2402, 0.0
  %v2419 = vmax.f32 %v2403, 0.0
  %v2420 = vmax.f32 %v2404, 0.0
  %v2421 = vmax.f32 %v2405, 0.0
  %v2422 = vmax.f32 %v2406, 0.0
  %v2423 = vmax.f32 %v2407, 0.0
  %v2424 = vmax.f32 %v2408, 0.0
  %v2425 = vmax.f32 %v2409, 0.0
  %v2426 = vmax.f32 %v2410, 0.0
  %v2427 = vmax.f32 %v2411, 0.0
  %v2428 = vmax.f32 %v2412, 0.0
  %v2429 = vmax.f32 %v2413, 0.0
  %v2430 = vmax.f32 %v2414, 0.0
  %v2431 = vmax.f32 %v2415, 0.0
  %v2432 = vmax.f32 %v2416, 0.0
  %v2433 = vmax.f32 %v2417, 0.0
  %2434 = vst.msk [vmem:[#allocation3] sm:$0x3] %vm43, 0
  %2435 = vst.msk [vmem:[#allocation3 + $0xc] sm:$0x3] %vm43, 0
  %2436 = vst.msk [vmem:[#allocation3 + $0x18] sm:$0x3] %vm43, 0
  %2437 = vst.msk [vmem:[#allocation3 + $0x24] sm:$0x3] %vm43, 0
  %2438 = vst.msk [vmem:[#allocation3 + $0x30] sm:$0x3] %vm43, 0
  %2439 = vst.msk [vmem:[#allocation3 + $0x3c] sm:$0x3] %vm43, 0
  %2440 = vst.msk [vmem:[#allocation3 + $0x48] sm:$0x3] %vm43, 0
  %2441 = vst.msk [vmem:[#allocation3 + $0x54] sm:$0x3] %vm43, 0
  %2442 = vst.msk [vmem:[#allocation3 + $0x8] sm:$0xc] %vm52, 0
  %2443 = vst.msk [vmem:[#allocation3 + $0x14] sm:$0xc] %vm52, 0
  %2444 = vst.msk [vmem:[#allocation3 + $0x20] sm:$0xc] %vm52, 0
  %2445 = vst.msk [vmem:[#allocation3 + $0x2c] sm:$0xc] %vm52, 0
  %2446 = vst.msk [vmem:[#allocation3 + $0x38] sm:$0xc] %vm52, 0
  %2447 = vst.msk [vmem:[#allocation3 + $0x44] sm:$0xc] %vm52, 0
  %2448 = vst.msk [vmem:[#allocation3 + $0x50] sm:$0xc] %vm52, 0
  %2449 = vst.msk [vmem:[#allocation3 + $0x5c] sm:$0xc] %vm52, 0
  %v2450 = vpack.c.bf16 %v2418, %v2418
  %v2451 = vpack.c.bf16 %v2419, %v2419
  %v2452 = vpack.c.bf16 %v2420, %v2420
  %v2453 = vpack.c.bf16 %v2421, %v2421
  %v2454 = vpack.c.bf16 %v2422, %v2422
  %v2455 = vpack.c.bf16 %v2423, %v2423
  %v2456 = vpack.c.bf16 %v2424, %v2424
  %v2457 = vpack.c.bf16 %v2425, %v2425
  %v2458 = vpack.c.bf16 %v2426, %v2426
  %v2459 = vpack.c.bf16 %v2427, %v2427
  %v2460 = vpack.c.bf16 %v2428, %v2428
  %v2461 = vpack.c.bf16 %v2429, %v2429
  %v2462 = vpack.c.bf16 %v2430, %v2430
  %v2463 = vpack.c.bf16 %v2431, %v2431
  %v2464 = vpack.c.bf16 %v2432, %v2432
  %v2465 = vpack.c.bf16 %v2433, %v2433
  %v2482 = vrot.slane %v2450, 6
  %v2483 = vrot.slane %v2482, 4
  %v2484 = vrot.slane %v2451, 6
  %v2485 = vsel %vm95, %v2483, %v2484
  %v2486 = vrot.slane %v2484, 4
  %v2487 = vrot.slane %v2452, 6
  %v2488 = vrot.slane %v2487, 4
  %v2489 = vrot.slane %v2453, 6
  %v2490 = vsel %vm95, %v2488, %v2489
  %v2491 = vrot.slane %v2489, 4
  %v2492 = vrot.slane %v2454, 6
  %v2493 = vrot.slane %v2492, 4
  %v2494 = vrot.slane %v2455, 6
  %v2495 = vsel %vm95, %v2493, %v2494
  %v2496 = vrot.slane %v2494, 4
  %v2497 = vrot.slane %v2456, 6
  %v2498 = vrot.slane %v2497, 4
  %v2499 = vrot.slane %v2457, 6
  %v2500 = vsel %vm95, %v2498, %v2499
  %v2501 = vrot.slane %v2499, 4
  %v2502 = vrot.slane %v2458, 6
  %v2503 = vrot.slane %v2502, 4
  %v2504 = vrot.slane %v2459, 6
  %v2505 = vsel %vm95, %v2503, %v2504
  %v2506 = vrot.slane %v2504, 4
  %v2507 = vrot.slane %v2460, 6
  %v2508 = vrot.slane %v2507, 4
  %v2509 = vrot.slane %v2461, 6
  %v2510 = vsel %vm95, %v2508, %v2509
  %v2511 = vrot.slane %v2509, 4
  %v2512 = vrot.slane %v2462, 6
  %v2513 = vrot.slane %v2512, 4
  %v2514 = vrot.slane %v2463, 6
  %v2515 = vsel %vm95, %v2513, %v2514
  %v2516 = vrot.slane %v2514, 4
  %v2517 = vrot.slane %v2464, 6
  %v2518 = vrot.slane %v2517, 4
  %v2519 = vrot.slane %v2465, 6
  %v2520 = vsel %vm95, %v2518, %v2519
  %v2521 = vrot.slane %v2519, 4
  %2546 = vst.msk [vmem:[#allocation3] sm:$0xc] %vm52, %v2482
  %2547 = vst.msk [vmem:[#allocation3 + $0x4] sm:$0xf] %vm161, %v2485
  %2548 = vst.msk [vmem:[#allocation3 + $0x8] sm:$0x3] %vm43, %v2486
  %2549 = vst.msk [vmem:[#allocation3 + $0xc] sm:$0xc] %vm52, %v2487
  %2550 = vst.msk [vmem:[#allocation3 + $0x10] sm:$0xf] %vm161, %v2490
  %2551 = vst.msk [vmem:[#allocation3 + $0x14] sm:$0x3] %vm43, %v2491
  %2552 = vst.msk [vmem:[#allocation3 + $0x18] sm:$0xc] %vm52, %v2492
  %2553 = vst.msk [vmem:[#allocation3 + $0x1c] sm:$0xf] %vm161, %v2495
  %2554 = vst.msk [vmem:[#allocation3 + $0x20] sm:$0x3] %vm43, %v2496
  %2555 = vst.msk [vmem:[#allocation3 + $0x24] sm:$0xc] %vm52, %v2497
  %2556 = vst.msk [vmem:[#allocation3 + $0x28] sm:$0xf] %vm161, %v2500
  %2557 = vst.msk [vmem:[#allocation3 + $0x2c] sm:$0x3] %vm43, %v2501
  %2558 = vst.msk [vmem:[#allocation3 + $0x30] sm:$0xc] %vm52, %v2502
  %2559 = vst.msk [vmem:[#allocation3 + $0x34] sm:$0xf] %vm161, %v2505
  %2560 = vst.msk [vmem:[#allocation3 + $0x38] sm:$0x3] %vm43, %v2506
  %2561 = vst.msk [vmem:[#allocation3 + $0x3c] sm:$0xc] %vm52, %v2507
  %2562 = vst.msk [vmem:[#allocation3 + $0x40] sm:$0xf] %vm161, %v2510
  %2563 = vst.msk [vmem:[#allocation3 + $0x44] sm:$0x3] %vm43, %v2511
  %2564 = vst.msk [vmem:[#allocation3 + $0x48] sm:$0xc] %vm52, %v2512
  %2565 = vst.msk [vmem:[#allocation3 + $0x4c] sm:$0xf] %vm161, %v2515
  %2566 = vst.msk [vmem:[#allocation3 + $0x50] sm:$0x3] %vm43, %v2516
  %2567 = vst.msk [vmem:[#allocation3 + $0x54] sm:$0xc] %vm52, %v2517
  %2568 = vst.msk [vmem:[#allocation3 + $0x58] sm:$0xf] %vm161, %v2520
  %2569 = vst.msk [vmem:[#allocation3 + $0x5c] sm:$0x3] %vm43, %v2521
  %v2570 = vld [vmem:[#allocation3] sm:$0xf]
  %v2571 = vld [vmem:[#allocation3 + $0x4] sm:$0xf]
  %v2572 = vld [vmem:[#allocation3 + $0xc] sm:$0xf]
  %v2573 = vld [vmem:[#allocation3 + $0x10] sm:$0xf]
  %v2574 = vld [vmem:[#allocation3 + $0x18] sm:$0xf]
  %v2575 = vld [vmem:[#allocation3 + $0x1c] sm:$0xf]
  %v2576 = vld [vmem:[#allocation3 + $0x24] sm:$0xf]
  %v2577 = vld [vmem:[#allocation3 + $0x28] sm:$0xf]
  %v2578 = vld [vmem:[#allocation3 + $0x30] sm:$0xf]
  %v2579 = vld [vmem:[#allocation3 + $0x34] sm:$0xf]
  %v2580 = vld [vmem:[#allocation3 + $0x3c] sm:$0xf]
  %v2581 = vld [vmem:[#allocation3 + $0x40] sm:$0xf]
  %v2582 = vld [vmem:[#allocation3 + $0x48] sm:$0xf]
  %v2583 = vld [vmem:[#allocation3 + $0x4c] sm:$0xf]
  %v2584 = vld [vmem:[#allocation3 + $0x54] sm:$0xf]
  %v2585 = vld [vmem:[#allocation3 + $0x58] sm:$0xf]
  %v2586 = vld [vmem:[%s2] sm:$0xf]
  %v2587 = vld [vmem:[#allocation3 + $0x8] sm:$0x1]
  %v2588 = vld [vmem:[#allocation3 + $0x14] sm:$0x1]
  %v2589 = vld [vmem:[#allocation3 + $0x20] sm:$0x1]
  %v2590 = vld [vmem:[#allocation3 + $0x2c] sm:$0x1]
  %v2591 = vld [vmem:[#allocation3 + $0x38] sm:$0x1]
  %v2592 = vld [vmem:[#allocation3 + $0x44] sm:$0x1]
  %v2593 = vld [vmem:[#allocation3 + $0x50] sm:$0x1]
  %v2594 = vld [vmem:[#allocation3 + $0x5c] sm:$0x1]
  %v2596 = vshrl.u32 %v2570, 16
  %v2598 = vrot.slane %v2596, 4
  %v2599 = vshll.u32 %v2570, 16
  %v2601 = vrot.slane %v2599, 5
  %v2602 = vor.u32 %v2598, %v2601
  %v2603 = vrot.slane %v2602, 4
  %v2605 = vshll.u32 %v2571, 16
  %v2607 = vrot.slane %v2605, 5
  %v2608 = vsel %vm212, %v2603, %v2607
  %v2609 = vshrl.u32 %v2571, 16
  %v2611 = vrot.slane %v2609, 4
  %v2612 = vor.u32 %v2611, %v2607
  %v2613 = vrot.slane %v2612, 4
  %v2615 = vshll.u32 %v2587, 16
  %v2617 = vrot.slane %v2615, 5
  %v2618 = vsel %vm212, %v2613, %v2617
  %v2620 = vshrl.u32 %v2572, 16
  %v2622 = vrot.slane %v2620, 4
  %v2623 = vshll.u32 %v2572, 16
  %v2625 = vrot.slane %v2623, 5
  %v2626 = vor.u32 %v2622, %v2625
  %v2627 = vrot.slane %v2626, 4
  %v2629 = vshll.u32 %v2573, 16
  %v2631 = vrot.slane %v2629, 5
  %v2632 = vsel %vm212, %v2627, %v2631
  %v2633 = vshrl.u32 %v2573, 16
  %v2635 = vrot.slane %v2633, 4
  %v2636 = vor.u32 %v2635, %v2631
  %v2637 = vrot.slane %v2636, 4
  %v2639 = vshll.u32 %v2588, 16
  %v2641 = vrot.slane %v2639, 5
  %v2642 = vsel %vm212, %v2637, %v2641
  %v2644 = vshrl.u32 %v2574, 16
  %v2646 = vrot.slane %v2644, 4
  %v2647 = vshll.u32 %v2574, 16
  %v2649 = vrot.slane %v2647, 5
  %v2650 = vor.u32 %v2646, %v2649
  %v2651 = vrot.slane %v2650, 4
  %v2653 = vshll.u32 %v2575, 16
  %v2655 = vrot.slane %v2653, 5
  %v2656 = vsel %vm212, %v2651, %v2655
  %v2657 = vshrl.u32 %v2575, 16
  %v2659 = vrot.slane %v2657, 4
  %v2660 = vor.u32 %v2659, %v2655
  %v2661 = vrot.slane %v2660, 4
  %v2663 = vshll.u32 %v2589, 16
  %v2665 = vrot.slane %v2663, 5
  %v2666 = vsel %vm212, %v2661, %v2665
  %v2668 = vshrl.u32 %v2576, 16
  %v2670 = vrot.slane %v2668, 4
  %v2671 = vshll.u32 %v2576, 16
  %v2673 = vrot.slane %v2671, 5
  %v2674 = vor.u32 %v2670, %v2673
  %v2675 = vrot.slane %v2674, 4
  %v2677 = vshll.u32 %v2577, 16
  %v2679 = vrot.slane %v2677, 5
  %v2680 = vsel %vm212, %v2675, %v2679
  %v2681 = vshrl.u32 %v2577, 16
  %v2683 = vrot.slane %v2681, 4
  %v2684 = vor.u32 %v2683, %v2679
  %v2685 = vrot.slane %v2684, 4
  %v2687 = vshll.u32 %v2590, 16
  %v2689 = vrot.slane %v2687, 5
  %v2690 = vsel %vm212, %v2685, %v2689
  %v2692 = vshrl.u32 %v2578, 16
  %v2694 = vrot.slane %v2692, 4
  %v2695 = vshll.u32 %v2578, 16
  %v2697 = vrot.slane %v2695, 5
  %v2698 = vor.u32 %v2694, %v2697
  %v2699 = vrot.slane %v2698, 4
  %v2701 = vshll.u32 %v2579, 16
  %v2703 = vrot.slane %v2701, 5
  %v2704 = vsel %vm212, %v2699, %v2703
  %v2705 = vshrl.u32 %v2579, 16
  %v2707 = vrot.slane %v2705, 4
  %v2708 = vor.u32 %v2707, %v2703
  %v2709 = vrot.slane %v2708, 4
  %v2711 = vshll.u32 %v2591, 16
  %v2713 = vrot.slane %v2711, 5
  %v2714 = vsel %vm212, %v2709, %v2713
  %v2716 = vshrl.u32 %v2580, 16
  %v2718 = vrot.slane %v2716, 4
  %v2719 = vshll.u32 %v2580, 16
  %v2721 = vrot.slane %v2719, 5
  %v2722 = vor.u32 %v2718, %v2721
  %v2723 = vrot.slane %v2722, 4
  %v2725 = vshll.u32 %v2581, 16
  %v2727 = vrot.slane %v2725, 5
  %v2728 = vsel %vm212, %v2723, %v2727
  %v2729 = vshrl.u32 %v2581, 16
  %v2731 = vrot.slane %v2729, 4
  %v2732 = vor.u32 %v2731, %v2727
  %v2733 = vrot.slane %v2732, 4
  %v2735 = vshll.u32 %v2592, 16
  %v2737 = vrot.slane %v2735, 5
  %v2738 = vsel %vm212, %v2733, %v2737
  %v2740 = vshrl.u32 %v2582, 16
  %v2742 = vrot.slane %v2740, 4
  %v2743 = vshll.u32 %v2582, 16
  %v2745 = vrot.slane %v2743, 5
  %v2746 = vor.u32 %v2742, %v2745
  %v2747 = vrot.slane %v2746, 4
  %v2749 = vshll.u32 %v2583, 16
  %v2751 = vrot.slane %v2749, 5
  %v2752 = vsel %vm212, %v2747, %v2751
  %v2753 = vshrl.u32 %v2583, 16
  %v2755 = vrot.slane %v2753, 4
  %v2756 = vor.u32 %v2755, %v2751
  %v2757 = vrot.slane %v2756, 4
  %v2759 = vshll.u32 %v2593, 16
  %v2761 = vrot.slane %v2759, 5
  %v2762 = vsel %vm212, %v2757, %v2761
  %v2764 = vshrl.u32 %v2584, 16
  %v2766 = vrot.slane %v2764, 4
  %v2767 = vshll.u32 %v2584, 16
  %v2769 = vrot.slane %v2767, 5
  %v2770 = vor.u32 %v2766, %v2769
  %v2771 = vrot.slane %v2770, 4
  %v2773 = vshll.u32 %v2585, 16
  %v2775 = vrot.slane %v2773, 5
  %v2776 = vsel %vm212, %v2771, %v2775
  %v2777 = vshrl.u32 %v2585, 16
  %v2779 = vrot.slane %v2777, 4
  %v2780 = vor.u32 %v2779, %v2775
  %v2781 = vrot.slane %v2780, 4
  %v2783 = vshll.u32 %v2594, 16
  %v2785 = vrot.slane %v2783, 5
  %v2786 = vsel %vm212, %v2781, %v2785
  %s2787 = scalar_lea.vmem %s2, 4
  %v2788 = vld [vmem:[%s2787] sm:$0xf]
  %v2789 = vunpack.c.l.b16 %v2608
  %v2790 = vunpack.c.l.b16 %v2618
  %v2791 = vunpack.c.l.b16 %v2632
  %v2792 = vunpack.c.l.b16 %v2642
  %v2793 = vunpack.c.l.b16 %v2656
  %v2794 = vunpack.c.l.b16 %v2666
  %v2795 = vunpack.c.l.b16 %v2680
  %v2796 = vunpack.c.l.b16 %v2690
  %v2797 = vunpack.c.l.b16 %v2704
  %v2798 = vunpack.c.l.b16 %v2714
  %v2799 = vunpack.c.l.b16 %v2728
  %v2800 = vunpack.c.l.b16 %v2738
  %v2801 = vunpack.c.l.b16 %v2752
  %v2802 = vunpack.c.l.b16 %v2762
  %v2803 = vunpack.c.l.b16 %v2776
  %v2804 = vunpack.c.l.b16 %v2786
  %v2805 = vpack.c.b16 %v2790, %v2789
  %v2806 = vpack.c.b16 %v2792, %v2791
  %v2807 = vpack.c.b16 %v2794, %v2793
  %v2808 = vpack.c.b16 %v2796, %v2795
  %v2809 = vpack.c.b16 %v2798, %v2797
  %v2810 = vpack.c.b16 %v2800, %v2799
  %v2811 = vpack.c.b16 %v2802, %v2801
  %v2812 = vpack.c.b16 %v2804, %v2803
  %v2814 = vsel %vm431, %v2805, 0
  %v2817 = vsel %vm431, %v2806, 0
  %v2820 = vsel %vm431, %v2807, 0
  %v2823 = vsel %vm431, %v2808, 0
  %v2826 = vsel %vm431, %v2809, 0
  %v2829 = vsel %vm431, %v2810, 0
  %v2832 = vsel %vm431, %v2811, 0
  %v2835 = vsel %vm431, %v2812, 0
  %v2838 = vsel %vm456, %v2788, 0
  %2840 = vmatpush.bf16.msra.mxu0 0
  %2841 = vmatpush.bf16.msra.mxu0 0
  %2842 = vmatpush.bf16.msra.mxu0 0
  %2843 = vmatpush.bf16.msra.mxu0 0
  %2844 = vmatpush.bf16.msra.mxu0 0
  %2845 = vmatpush.bf16.msra.mxu0 0
  %2846 = vmatpush.bf16.msra.mxu0 0
  %2847 = vmatpush.bf16.msra.mxu0 %v2838
  %2848 = vmatmul.bf16.gmra.mxu0 %v2814
  %v2849 = vpop.f32.mrf.mxu0
  %v2850 = vadd.f32 0.0, %v2849
  %v2851 = vpop.f32.mrf.mxu0
  %v2852 = vadd.f32 0.0, %v2851
  %2853 = vmatmul.bf16.gmra.mxu0 %v2817
  %v2854 = vpop.f32.mrf.mxu0
  %v2855 = vadd.f32 0.0, %v2854
  %v2856 = vpop.f32.mrf.mxu0
  %v2857 = vadd.f32 0.0, %v2856
  %2858 = vmatmul.bf16.gmra.mxu0 %v2820
  %v2859 = vpop.f32.mrf.mxu0
  %v2860 = vadd.f32 0.0, %v2859
  %v2861 = vpop.f32.mrf.mxu0
  %v2862 = vadd.f32 0.0, %v2861
  %2863 = vmatmul.bf16.gmra.mxu0 %v2823
  %v2864 = vpop.f32.mrf.mxu0
  %v2865 = vadd.f32 0.0, %v2864
  %v2866 = vpop.f32.mrf.mxu0
  %v2867 = vadd.f32 0.0, %v2866
  %2868 = vmatmul.bf16.gmra.mxu0 %v2826
  %v2869 = vpop.f32.mrf.mxu0
  %v2870 = vadd.f32 0.0, %v2869
  %v2871 = vpop.f32.mrf.mxu0
  %v2872 = vadd.f32 0.0, %v2871
  %2873 = vmatmul.bf16.gmra.mxu0 %v2829
  %v2874 = vpop.f32.mrf.mxu0
  %v2875 = vadd.f32 0.0, %v2874
  %v2876 = vpop.f32.mrf.mxu0
  %v2877 = vadd.f32 0.0, %v2876
  %2878 = vmatmul.bf16.gmra.mxu0 %v2832
  %v2879 = vpop.f32.mrf.mxu0
  %v2880 = vadd.f32 0.0, %v2879
  %v2881 = vpop.f32.mrf.mxu0
  %v2882 = vadd.f32 0.0, %v2881
  %2883 = vmatmul.bf16.gmra.mxu0 %v2835
  %v2884 = vpop.f32.mrf.mxu0
  %v2885 = vadd.f32 0.0, %v2884
  %v2886 = vpop.f32.mrf.mxu0
  %v2887 = vadd.f32 0.0, %v2886
  %2888 = vdwg.mxu0
  %v2905 = vunpack.c.l.b16 %v2570
  %v2906 = vunpack.c.l.b16 %v2571
  %v2907 = vunpack.c.l.b16 %v2572
  %v2908 = vunpack.c.l.b16 %v2573
  %v2909 = vunpack.c.l.b16 %v2574
  %v2910 = vunpack.c.l.b16 %v2575
  %v2911 = vunpack.c.l.b16 %v2576
  %v2912 = vunpack.c.l.b16 %v2577
  %v2913 = vunpack.c.l.b16 %v2578
  %v2914 = vunpack.c.l.b16 %v2579
  %v2915 = vunpack.c.l.b16 %v2580
  %v2916 = vunpack.c.l.b16 %v2581
  %v2917 = vunpack.c.l.b16 %v2582
  %v2918 = vunpack.c.l.b16 %v2583
  %v2919 = vunpack.c.l.b16 %v2584
  %v2920 = vunpack.c.l.b16 %v2585
  %v2921 = vpack.c.b16 %v2906, %v2905
  %v2922 = vpack.c.b16 %v2908, %v2907
  %v2923 = vpack.c.b16 %v2910, %v2909
  %v2924 = vpack.c.b16 %v2912, %v2911
  %v2925 = vpack.c.b16 %v2914, %v2913
  %v2926 = vpack.c.b16 %v2916, %v2915
  %v2927 = vpack.c.b16 %v2918, %v2917
  %v2928 = vpack.c.b16 %v2920, %v2919
  %v2930 = vsel %vm431, %v2921, 0
  %v2933 = vsel %vm431, %v2922, 0
  %v2936 = vsel %vm431, %v2923, 0
  %v2939 = vsel %vm431, %v2924, 0
  %v2942 = vsel %vm431, %v2925, 0
  %v2945 = vsel %vm431, %v2926, 0
  %v2948 = vsel %vm431, %v2927, 0
  %v2951 = vsel %vm431, %v2928, 0
  %v2954 = vsel %vm456, %v2586, 0
  %2956 = vmatpush.bf16.msra.mxu0 0
  %2957 = vmatpush.bf16.msra.mxu0 0
  %2958 = vmatpush.bf16.msra.mxu0 0
  %2959 = vmatpush.bf16.msra.mxu0 0
  %2960 = vmatpush.bf16.msra.mxu0 0
  %2961 = vmatpush.bf16.msra.mxu0 0
  %2962 = vmatpush.bf16.msra.mxu0 0
  %2963 = vmatpush.bf16.msra.mxu0 %v2954
  %2964 = vmatmul.bf16.gmra.mxu0 %v2930
  %v2965 = vpop.f32.mrf.mxu0
  %v2966 = vadd.f32 %v2850, %v2965
  %v2967 = vpop.f32.mrf.mxu0
  %v2968 = vadd.f32 %v2852, %v2967
  %2969 = vmatmul.bf16.gmra.mxu0 %v2933
  %v2970 = vpop.f32.mrf.mxu0
  %v2971 = vadd.f32 %v2855, %v2970
  %v2972 = vpop.f32.mrf.mxu0
  %v2973 = vadd.f32 %v2857, %v2972
  %2974 = vmatmul.bf16.gmra.mxu0 %v2936
  %v2975 = vpop.f32.mrf.mxu0
  %v2976 = vadd.f32 %v2860, %v2975
  %v2977 = vpop.f32.mrf.mxu0
  %v2978 = vadd.f32 %v2862, %v2977
  %2979 = vmatmul.bf16.gmra.mxu0 %v2939
  %v2980 = vpop.f32.mrf.mxu0
  %v2981 = vadd.f32 %v2865, %v2980
  %v2982 = vpop.f32.mrf.mxu0
  %v2983 = vadd.f32 %v2867, %v2982
  %2984 = vmatmul.bf16.gmra.mxu0 %v2942
  %v2985 = vpop.f32.mrf.mxu0
  %v2986 = vadd.f32 %v2870, %v2985
  %v2987 = vpop.f32.mrf.mxu0
  %v2988 = vadd.f32 %v2872, %v2987
  %2989 = vmatmul.bf16.gmra.mxu0 %v2945
  %v2990 = vpop.f32.mrf.mxu0
  %v2991 = vadd.f32 %v2875, %v2990
  %v2992 = vpop.f32.mrf.mxu0
  %v2993 = vadd.f32 %v2877, %v2992
  %2994 = vmatmul.bf16.gmra.mxu0 %v2948
  %v2995 = vpop.f32.mrf.mxu0
  %v2996 = vadd.f32 %v2880, %v2995
  %v2997 = vpop.f32.mrf.mxu0
  %v2998 = vadd.f32 %v2882, %v2997
  %2999 = vmatmul.bf16.gmra.mxu0 %v2951
  %v3000 = vpop.f32.mrf.mxu0
  %v3001 = vadd.f32 %v2885, %v3000
  %v3002 = vpop.f32.mrf.mxu0
  %v3003 = vadd.f32 %v2887, %v3002
  %3004 = vdwg.mxu0
  %v3005 = vld [vmem:[#allocation3] sm:$0xe]
  %v3006 = vld [vmem:[#allocation3 + $0xc] sm:$0xe]
  %v3007 = vld [vmem:[#allocation3 + $0x18] sm:$0xe]
  %v3008 = vld [vmem:[#allocation3 + $0x24] sm:$0xe]
  %v3009 = vld [vmem:[#allocation3 + $0x30] sm:$0xe]
  %v3010 = vld [vmem:[#allocation3 + $0x3c] sm:$0xe]
  %v3011 = vld [vmem:[#allocation3 + $0x48] sm:$0xe]
  %v3012 = vld [vmem:[#allocation3 + $0x54] sm:$0xe]
  %v3029 = vrot.slane %v3005, 5
  %v3030 = vrot.slane %v3029, 4
  %v3031 = vrot.slane %v2571, 5
  %v3032 = vsel %vm651, %v3030, %v3031
  %v3033 = vrot.slane %v3031, 4
  %v3034 = vrot.slane %v2587, 5
  %v3035 = vsel %vm651, %v3033, %v3034
  %v3036 = vrot.slane %v3006, 5
  %v3037 = vrot.slane %v3036, 4
  %v3038 = vrot.slane %v2573, 5
  %v3039 = vsel %vm651, %v3037, %v3038
  %v3040 = vrot.slane %v3038, 4
  %v3041 = vrot.slane %v2588, 5
  %v3042 = vsel %vm651, %v3040, %v3041
  %v3043 = vrot.slane %v3007, 5
  %v3044 = vrot.slane %v3043, 4
  %v3045 = vrot.slane %v2575, 5
  %v3046 = vsel %vm651, %v3044, %v3045
  %v3047 = vrot.slane %v3045, 4
  %v3048 = vrot.slane %v2589, 5
  %v3049 = vsel %vm651, %v3047, %v3048
  %v3050 = vrot.slane %v3008, 5
  %v3051 = vrot.slane %v3050, 4
  %v3052 = vrot.slane %v2577, 5
  %v3053 = vsel %vm651, %v3051, %v3052
  %v3054 = vrot.slane %v3052, 4
  %v3055 = vrot.slane %v2590, 5
  %v3056 = vsel %vm651, %v3054, %v3055
  %v3057 = vrot.slane %v3009, 5
  %v3058 = vrot.slane %v3057, 4
  %v3059 = vrot.slane %v2579, 5
  %v3060 = vsel %vm651, %v3058, %v3059
  %v3061 = vrot.slane %v3059, 4
  %v3062 = vrot.slane %v2591, 5
  %v3063 = vsel %vm651, %v3061, %v3062
  %v3064 = vrot.slane %v3010, 5
  %v3065 = vrot.slane %v3064, 4
  %v3066 = vrot.slane %v2581, 5
  %v3067 = vsel %vm651, %v3065, %v3066
  %v3068 = vrot.slane %v3066, 4
  %v3069 = vrot.slane %v2592, 5
  %v3070 = vsel %vm651, %v3068, %v3069
  %v3071 = vrot.slane %v3011, 5
  %v3072 = vrot.slane %v3071, 4
  %v3073 = vrot.slane %v2583, 5
  %v3074 = vsel %vm651, %v3072, %v3073
  %v3075 = vrot.slane %v3073, 4
  %v3076 = vrot.slane %v2593, 5
  %v3077 = vsel %vm651, %v3075, %v3076
  %v3078 = vrot.slane %v3012, 5
  %v3079 = vrot.slane %v3078, 4
  %v3080 = vrot.slane %v2585, 5
  %v3081 = vsel %vm651, %v3079, %v3080
  %v3082 = vrot.slane %v3080, 4
  %v3083 = vrot.slane %v2594, 5
  %v3084 = vsel %vm651, %v3082, %v3083
  %s3085 = scalar_lea.vmem %s2, 8
  %v3086 = vld [vmem:[%s3085] sm:$0xf]
  %v3087 = vunpack.c.l.b16 %v3032
  %v3088 = vunpack.c.l.b16 %v3035
  %v3089 = vunpack.c.l.b16 %v3039
  %v3090 = vunpack.c.l.b16 %v3042
  %v3091 = vunpack.c.l.b16 %v3046
  %v3092 = vunpack.c.l.b16 %v3049
  %v3093 = vunpack.c.l.b16 %v3053
  %v3094 = vunpack.c.l.b16 %v3056
  %v3095 = vunpack.c.l.b16 %v3060
  %v3096 = vunpack.c.l.b16 %v3063
  %v3097 = vunpack.c.l.b16 %v3067
  %v3098 = vunpack.c.l.b16 %v3070
  %v3099 = vunpack.c.l.b16 %v3074
  %v3100 = vunpack.c.l.b16 %v3077
  %v3101 = vunpack.c.l.b16 %v3081
  %v3102 = vunpack.c.l.b16 %v3084
  %v3103 = vpack.c.b16 %v3088, %v3087
  %v3104 = vpack.c.b16 %v3090, %v3089
  %v3105 = vpack.c.b16 %v3092, %v3091
  %v3106 = vpack.c.b16 %v3094, %v3093
  %v3107 = vpack.c.b16 %v3096, %v3095
  %v3108 = vpack.c.b16 %v3098, %v3097
  %v3109 = vpack.c.b16 %v3100, %v3099
  %v3110 = vpack.c.b16 %v3102, %v3101
  %v3112 = vsel %vm431, %v3103, 0
  %v3115 = vsel %vm431, %v3104, 0
  %v3118 = vsel %vm431, %v3105, 0
  %v3121 = vsel %vm431, %v3106, 0
  %v3124 = vsel %vm431, %v3107, 0
  %v3127 = vsel %vm431, %v3108, 0
  %v3130 = vsel %vm431, %v3109, 0
  %v3133 = vsel %vm431, %v3110, 0
  %v3136 = vsel %vm456, %v3086, 0
  %3138 = vmatpush.bf16.msra.mxu0 0
  %3139 = vmatpush.bf16.msra.mxu0 0
  %3140 = vmatpush.bf16.msra.mxu0 0
  %3141 = vmatpush.bf16.msra.mxu0 0
  %3142 = vmatpush.bf16.msra.mxu0 0
  %3143 = vmatpush.bf16.msra.mxu0 0
  %3144 = vmatpush.bf16.msra.mxu0 0
  %3145 = vmatpush.bf16.msra.mxu0 %v3136
  %3146 = vmatmul.bf16.gmra.mxu0 %v3112
  %v3147 = vpop.f32.mrf.mxu0
  %v3148 = vadd.f32 0.0, %v3147
  %v3149 = vpop.f32.mrf.mxu0
  %v3150 = vadd.f32 0.0, %v3149
  %3151 = vmatmul.bf16.gmra.mxu0 %v3115
  %v3152 = vpop.f32.mrf.mxu0
  %v3153 = vadd.f32 0.0, %v3152
  %v3154 = vpop.f32.mrf.mxu0
  %v3155 = vadd.f32 0.0, %v3154
  %3156 = vmatmul.bf16.gmra.mxu0 %v3118
  %v3157 = vpop.f32.mrf.mxu0
  %v3158 = vadd.f32 0.0, %v3157
  %v3159 = vpop.f32.mrf.mxu0
  %v3160 = vadd.f32 0.0, %v3159
  %3161 = vmatmul.bf16.gmra.mxu0 %v3121
  %v3162 = vpop.f32.mrf.mxu0
  %v3163 = vadd.f32 0.0, %v3162
  %v3164 = vpop.f32.mrf.mxu0
  %v3165 = vadd.f32 0.0, %v3164
  %3166 = vmatmul.bf16.gmra.mxu0 %v3124
  %v3167 = vpop.f32.mrf.mxu0
  %v3168 = vadd.f32 0.0, %v3167
  %v3169 = vpop.f32.mrf.mxu0
  %v3170 = vadd.f32 0.0, %v3169
  %3171 = vmatmul.bf16.gmra.mxu0 %v3127
  %v3172 = vpop.f32.mrf.mxu0
  %v3173 = vadd.f32 0.0, %v3172
  %v3174 = vpop.f32.mrf.mxu0
  %v3175 = vadd.f32 0.0, %v3174
  %3176 = vmatmul.bf16.gmra.mxu0 %v3130
  %v3177 = vpop.f32.mrf.mxu0
  %v3178 = vadd.f32 0.0, %v3177
  %v3179 = vpop.f32.mrf.mxu0
  %v3180 = vadd.f32 0.0, %v3179
  %3181 = vmatmul.bf16.gmra.mxu0 %v3133
  %v3182 = vpop.f32.mrf.mxu0
  %v3183 = vadd.f32 0.0, %v3182
  %v3184 = vpop.f32.mrf.mxu0
  %v3185 = vadd.f32 0.0, %v3184
  %3186 = vdwg.mxu0
  %v3187 = vadd.f32 %v2966, %v3148
  %v3188 = vadd.f32 %v2968, %v3150
  %v3189 = vadd.f32 %v2971, %v3153
  %v3190 = vadd.f32 %v2973, %v3155
  %v3191 = vadd.f32 %v2976, %v3158
  %v3192 = vadd.f32 %v2978, %v3160
  %v3193 = vadd.f32 %v2981, %v3163
  %v3194 = vadd.f32 %v2983, %v3165
  %v3195 = vadd.f32 %v2986, %v3168
  %v3196 = vadd.f32 %v2988, %v3170
  %v3197 = vadd.f32 %v2991, %v3173
  %v3198 = vadd.f32 %v2993, %v3175
  %v3199 = vadd.f32 %v2996, %v3178
  %v3200 = vadd.f32 %v2998, %v3180
  %v3201 = vadd.f32 %v3001, %v3183
  %v3202 = vadd.f32 %v3003, %v3185
  %v3203 = vld [vmem:[#allocation3 + $0x8] sm:$0x3]
  %v3204 = vld [vmem:[#allocation3 + $0x14] sm:$0x3]
  %v3205 = vld [vmem:[#allocation3 + $0x20] sm:$0x3]
  %v3206 = vld [vmem:[#allocation3 + $0x2c] sm:$0x3]
  %v3207 = vld [vmem:[#allocation3 + $0x38] sm:$0x3]
  %v3208 = vld [vmem:[#allocation3 + $0x44] sm:$0x3]
  %v3209 = vld [vmem:[#allocation3 + $0x50] sm:$0x3]
  %v3210 = vld [vmem:[#allocation3 + $0x5c] sm:$0x3]
  %v3212 = vshrl.u32 %v3005, 16
  %v3214 = vrot.slane %v3212, 5
  %v3215 = vshll.u32 %v3005, 16
  %v3217 = vrot.slane %v3215, 6
  %v3218 = vor.u32 %v3214, %v3217
  %v3219 = vrot.slane %v3218, 4
  %v3220 = vrot.slane %v2609, 5
  %v3221 = vrot.slane %v2605, 6
  %v3222 = vor.u32 %v3220, %v3221
  %v3223 = vsel %vm836, %v3219, %v3222
  %v3224 = vrot.slane %v3222, 4
  %v3226 = vshrl.u32 %v3203, 16
  %v3228 = vrot.slane %v3226, 5
  %v3229 = vshll.u32 %v3203, 16
  %v3231 = vrot.slane %v3229, 6
  %v3232 = vor.u32 %v3228, %v3231
  %v3233 = vsel %vm836, %v3224, %v3232
  %v3235 = vshrl.u32 %v3006, 16
  %v3237 = vrot.slane %v3235, 5
  %v3238 = vshll.u32 %v3006, 16
  %v3240 = vrot.slane %v3238, 6
  %v3241 = vor.u32 %v3237, %v3240
  %v3242 = vrot.slane %v3241, 4
  %v3243 = vrot.slane %v2633, 5
  %v3244 = vrot.slane %v2629, 6
  %v3245 = vor.u32 %v3243, %v3244
  %v3246 = vsel %vm836, %v3242, %v3245
  %v3247 = vrot.slane %v3245, 4
  %v3249 = vshrl.u32 %v3204, 16
  %v3251 = vrot.slane %v3249, 5
  %v3252 = vshll.u32 %v3204, 16
  %v3254 = vrot.slane %v3252, 6
  %v3255 = vor.u32 %v3251, %v3254
  %v3256 = vsel %vm836, %v3247, %v3255
  %v3258 = vshrl.u32 %v3007, 16
  %v3260 = vrot.slane %v3258, 5
  %v3261 = vshll.u32 %v3007, 16
  %v3263 = vrot.slane %v3261, 6
  %v3264 = vor.u32 %v3260, %v3263
  %v3265 = vrot.slane %v3264, 4
  %v3266 = vrot.slane %v2657, 5
  %v3267 = vrot.slane %v2653, 6
  %v3268 = vor.u32 %v3266, %v3267
  %v3269 = vsel %vm836, %v3265, %v3268
  %v3270 = vrot.slane %v3268, 4
  %v3272 = vshrl.u32 %v3205, 16
  %v3274 = vrot.slane %v3272, 5
  %v3275 = vshll.u32 %v3205, 16
  %v3277 = vrot.slane %v3275, 6
  %v3278 = vor.u32 %v3274, %v3277
  %v3279 = vsel %vm836, %v3270, %v3278
  %v3281 = vshrl.u32 %v3008, 16
  %v3283 = vrot.slane %v3281, 5
  %v3284 = vshll.u32 %v3008, 16
  %v3286 = vrot.slane %v3284, 6
  %v3287 = vor.u32 %v3283, %v3286
  %v3288 = vrot.slane %v3287, 4
  %v3289 = vrot.slane %v2681, 5
  %v3290 = vrot.slane %v2677, 6
  %v3291 = vor.u32 %v3289, %v3290
  %v3292 = vsel %vm836, %v3288, %v3291
  %v3293 = vrot.slane %v3291, 4
  %v3295 = vshrl.u32 %v3206, 16
  %v3297 = vrot.slane %v3295, 5
  %v3298 = vshll.u32 %v3206, 16
  %v3300 = vrot.slane %v3298, 6
  %v3301 = vor.u32 %v3297, %v3300
  %v3302 = vsel %vm836, %v3293, %v3301
  %v3304 = vshrl.u32 %v3009, 16
  %v3306 = vrot.slane %v3304, 5
  %v3307 = vshll.u32 %v3009, 16
  %v3309 = vrot.slane %v3307, 6
  %v3310 = vor.u32 %v3306, %v3309
  %v3311 = vrot.slane %v3310, 4
  %v3312 = vrot.slane %v2705, 5
  %v3313 = vrot.slane %v2701, 6
  %v3314 = vor.u32 %v3312, %v3313
  %v3315 = vsel %vm836, %v3311, %v3314
  %v3316 = vrot.slane %v3314, 4
  %v3318 = vshrl.u32 %v3207, 16
  %v3320 = vrot.slane %v3318, 5
  %v3321 = vshll.u32 %v3207, 16
  %v3323 = vrot.slane %v3321, 6
  %v3324 = vor.u32 %v3320, %v3323
  %v3325 = vsel %vm836, %v3316, %v3324
  %v3327 = vshrl.u32 %v3010, 16
  %v3329 = vrot.slane %v3327, 5
  %v3330 = vshll.u32 %v3010, 16
  %v3332 = vrot.slane %v3330, 6
  %v3333 = vor.u32 %v3329, %v3332
  %v3334 = vrot.slane %v3333, 4
  %v3335 = vrot.slane %v2729, 5
  %v3336 = vrot.slane %v2725, 6
  %v3337 = vor.u32 %v3335, %v3336
  %v3338 = vsel %vm836, %v3334, %v3337
  %v3339 = vrot.slane %v3337, 4
  %v3341 = vshrl.u32 %v3208, 16
  %v3343 = vrot.slane %v3341, 5
  %v3344 = vshll.u32 %v3208, 16
  %v3346 = vrot.slane %v3344, 6
  %v3347 = vor.u32 %v3343, %v3346
  %v3348 = vsel %vm836, %v3339, %v3347
  %v3350 = vshrl.u32 %v3011, 16
  %v3352 = vrot.slane %v3350, 5
  %v3353 = vshll.u32 %v3011, 16
  %v3355 = vrot.slane %v3353, 6
  %v3356 = vor.u32 %v3352, %v3355
  %v3357 = vrot.slane %v3356, 4
  %v3358 = vrot.slane %v2753, 5
  %v3359 = vrot.slane %v2749, 6
  %v3360 = vor.u32 %v3358, %v3359
  %v3361 = vsel %vm836, %v3357, %v3360
  %v3362 = vrot.slane %v3360, 4
  %v3364 = vshrl.u32 %v3209, 16
  %v3366 = vrot.slane %v3364, 5
  %v3367 = vshll.u32 %v3209, 16
  %v3369 = vrot.slane %v3367, 6
  %v3370 = vor.u32 %v3366, %v3369
  %v3371 = vsel %vm836, %v3362, %v3370
  %v3373 = vshrl.u32 %v3012, 16
  %v3375 = vrot.slane %v3373, 5
  %v3376 = vshll.u32 %v3012, 16
  %v3378 = vrot.slane %v3376, 6
  %v3379 = vor.u32 %v3375, %v3378
  %v3380 = vrot.slane %v3379, 4
  %v3381 = vrot.slane %v2777, 5
  %v3382 = vrot.slane %v2773, 6
  %v3383 = vor.u32 %v3381, %v3382
  %v3384 = vsel %vm836, %v3380, %v3383
  %v3385 = vrot.slane %v3383, 4
  %v3387 = vshrl.u32 %v3210, 16
  %v3389 = vrot.slane %v3387, 5
  %v3390 = vshll.u32 %v3210, 16
  %v3392 = vrot.slane %v3390, 6
  %v3393 = vor.u32 %v3389, %v3392
  %v3394 = vsel %vm836, %v3385, %v3393
  %s3395 = scalar_lea.vmem %s2, 12
  %v3396 = vld [vmem:[%s3395] sm:$0xf]
  %v3397 = vunpack.c.l.b16 %v3223
  %v3398 = vunpack.c.l.b16 %v3233
  %v3399 = vunpack.c.l.b16 %v3246
  %v3400 = vunpack.c.l.b16 %v3256
  %v3401 = vunpack.c.l.b16 %v3269
  %v3402 = vunpack.c.l.b16 %v3279
  %v3403 = vunpack.c.l.b16 %v3292
  %v3404 = vunpack.c.l.b16 %v3302
  %v3405 = vunpack.c.l.b16 %v3315
  %v3406 = vunpack.c.l.b16 %v3325
  %v3407 = vunpack.c.l.b16 %v3338
  %v3408 = vunpack.c.l.b16 %v3348
  %v3409 = vunpack.c.l.b16 %v3361
  %v3410 = vunpack.c.l.b16 %v3371
  %v3411 = vunpack.c.l.b16 %v3384
  %v3412 = vunpack.c.l.b16 %v3394
  %v3413 = vpack.c.b16 %v3398, %v3397
  %v3414 = vpack.c.b16 %v3400, %v3399
  %v3415 = vpack.c.b16 %v3402, %v3401
  %v3416 = vpack.c.b16 %v3404, %v3403
  %v3417 = vpack.c.b16 %v3406, %v3405
  %v3418 = vpack.c.b16 %v3408, %v3407
  %v3419 = vpack.c.b16 %v3410, %v3409
  %v3420 = vpack.c.b16 %v3412, %v3411
  %v3422 = vsel %vm431, %v3413, 0
  %v3425 = vsel %vm431, %v3414, 0
  %v3428 = vsel %vm431, %v3415, 0
  %v3431 = vsel %vm431, %v3416, 0
  %v3434 = vsel %vm431, %v3417, 0
  %v3437 = vsel %vm431, %v3418, 0
  %v3440 = vsel %vm431, %v3419, 0
  %v3443 = vsel %vm431, %v3420, 0
  %v3446 = vsel %vm456, %v3396, 0
  %3448 = vmatpush.bf16.msra.mxu0 0
  %3449 = vmatpush.bf16.msra.mxu0 0
  %3450 = vmatpush.bf16.msra.mxu0 0
  %3451 = vmatpush.bf16.msra.mxu0 0
  %3452 = vmatpush.bf16.msra.mxu0 0
  %3453 = vmatpush.bf16.msra.mxu0 0
  %3454 = vmatpush.bf16.msra.mxu0 0
  %3455 = vmatpush.bf16.msra.mxu0 %v3446
  %3456 = vmatmul.bf16.gmra.mxu0 %v3422
  %v3457 = vpop.f32.mrf.mxu0
  %v3458 = vadd.f32 0.0, %v3457
  %v3459 = vpop.f32.mrf.mxu0
  %v3460 = vadd.f32 0.0, %v3459
  %3461 = vmatmul.bf16.gmra.mxu0 %v3425
  %v3462 = vpop.f32.mrf.mxu0
  %v3463 = vadd.f32 0.0, %v3462
  %v3464 = vpop.f32.mrf.mxu0
  %v3465 = vadd.f32 0.0, %v3464
  %3466 = vmatmul.bf16.gmra.mxu0 %v3428
  %v3467 = vpop.f32.mrf.mxu0
  %v3468 = vadd.f32 0.0, %v3467
  %v3469 = vpop.f32.mrf.mxu0
  %v3470 = vadd.f32 0.0, %v3469
  %3471 = vmatmul.bf16.gmra.mxu0 %v3431
  %v3472 = vpop.f32.mrf.mxu0
  %v3473 = vadd.f32 0.0, %v3472
  %v3474 = vpop.f32.mrf.mxu0
  %v3475 = vadd.f32 0.0, %v3474
  %3476 = vmatmul.bf16.gmra.mxu0 %v3434
  %v3477 = vpop.f32.mrf.mxu0
  %v3478 = vadd.f32 0.0, %v3477
  %v3479 = vpop.f32.mrf.mxu0
  %v3480 = vadd.f32 0.0, %v3479
  %3481 = vmatmul.bf16.gmra.mxu0 %v3437
  %v3482 = vpop.f32.mrf.mxu0
  %v3483 = vadd.f32 0.0, %v3482
  %v3484 = vpop.f32.mrf.mxu0
  %v3485 = vadd.f32 0.0, %v3484
  %3486 = vmatmul.bf16.gmra.mxu0 %v3440
  %v3487 = vpop.f32.mrf.mxu0
  %v3488 = vadd.f32 0.0, %v3487
  %v3489 = vpop.f32.mrf.mxu0
  %v3490 = vadd.f32 0.0, %v3489
  %3491 = vmatmul.bf16.gmra.mxu0 %v3443
  %v3492 = vpop.f32.mrf.mxu0
  %v3493 = vadd.f32 0.0, %v3492
  %v3494 = vpop.f32.mrf.mxu0
  %v3495 = vadd.f32 0.0, %v3494
  %3496 = vdwg.mxu0
  %v3497 = vadd.f32 %v3187, %v3458
  %v3498 = vadd.f32 %v3188, %v3460
  %v3499 = vadd.f32 %v3189, %v3463
  %v3500 = vadd.f32 %v3190, %v3465
  %v3501 = vadd.f32 %v3191, %v3468
  %v3502 = vadd.f32 %v3192, %v3470
  %v3503 = vadd.f32 %v3193, %v3473
  %v3504 = vadd.f32 %v3194, %v3475
  %v3505 = vadd.f32 %v3195, %v3478
  %v3506 = vadd.f32 %v3196, %v3480
  %v3507 = vadd.f32 %v3197, %v3483
  %v3508 = vadd.f32 %v3198, %v3485
  %v3509 = vadd.f32 %v3199, %v3488
  %v3510 = vadd.f32 %v3200, %v3490
  %v3511 = vadd.f32 %v3201, %v3493
  %v3512 = vadd.f32 %v3202, %v3495
  %v3513 = vld [vmem:[#allocation3] sm:$0xc]
  %v3514 = vld [vmem:[#allocation3 + $0xc] sm:$0xc]
  %v3515 = vld [vmem:[#allocation3 + $0x18] sm:$0xc]
  %v3516 = vld [vmem:[#allocation3 + $0x24] sm:$0xc]
  %v3517 = vld [vmem:[#allocation3 + $0x30] sm:$0xc]
  %v3518 = vld [vmem:[#allocation3 + $0x3c] sm:$0xc]
  %v3519 = vld [vmem:[#allocation3 + $0x48] sm:$0xc]
  %v3520 = vld [vmem:[#allocation3 + $0x54] sm:$0xc]
  %v3537 = vrot.slane %v3513, 6
  %v3538 = vrot.slane %v3537, 4
  %v3539 = vrot.slane %v2571, 6
  %v3540 = vsel %vm95, %v3538, %v3539
  %v3541 = vrot.slane %v3539, 4
  %v3542 = vrot.slane %v3203, 6
  %v3543 = vsel %vm95, %v3541, %v3542
  %v3544 = vrot.slane %v3514, 6
  %v3545 = vrot.slane %v3544, 4
  %v3546 = vrot.slane %v2573, 6
  %v3547 = vsel %vm95, %v3545, %v3546
  %v3548 = vrot.slane %v3546, 4
  %v3549 = vrot.slane %v3204, 6
  %v3550 = vsel %vm95, %v3548, %v3549
  %v3551 = vrot.slane %v3515, 6
  %v3552 = vrot.slane %v3551, 4
  %v3553 = vrot.slane %v2575, 6
  %v3554 = vsel %vm95, %v3552, %v3553
  %v3555 = vrot.slane %v3553, 4
  %v3556 = vrot.slane %v3205, 6
  %v3557 = vsel %vm95, %v3555, %v3556
  %v3558 = vrot.slane %v3516, 6
  %v3559 = vrot.slane %v3558, 4
  %v3560 = vrot.slane %v2577, 6
  %v3561 = vsel %vm95, %v3559, %v3560
  %v3562 = vrot.slane %v3560, 4
  %v3563 = vrot.slane %v3206, 6
  %v3564 = vsel %vm95, %v3562, %v3563
  %v3565 = vrot.slane %v3517, 6
  %v3566 = vrot.slane %v3565, 4
  %v3567 = vrot.slane %v2579, 6
  %v3568 = vsel %vm95, %v3566, %v3567
  %v3569 = vrot.slane %v3567, 4
  %v3570 = vrot.slane %v3207, 6
  %v3571 = vsel %vm95, %v3569, %v3570
  %v3572 = vrot.slane %v3518, 6
  %v3573 = vrot.slane %v3572, 4
  %v3574 = vrot.slane %v2581, 6
  %v3575 = vsel %vm95, %v3573, %v3574
  %v3576 = vrot.slane %v3574, 4
  %v3577 = vrot.slane %v3208, 6
  %v3578 = vsel %vm95, %v3576, %v3577
  %v3579 = vrot.slane %v3519, 6
  %v3580 = vrot.slane %v3579, 4
  %v3581 = vrot.slane %v2583, 6
  %v3582 = vsel %vm95, %v3580, %v3581
  %v3583 = vrot.slane %v3581, 4
  %v3584 = vrot.slane %v3209, 6
  %v3585 = vsel %vm95, %v3583, %v3584
  %v3586 = vrot.slane %v3520, 6
  %v3587 = vrot.slane %v3586, 4
  %v3588 = vrot.slane %v2585, 6
  %v3589 = vsel %vm95, %v3587, %v3588
  %v3590 = vrot.slane %v3588, 4
  %v3591 = vrot.slane %v3210, 6
  %v3592 = vsel %vm95, %v3590, %v3591
  %s3593 = scalar_lea.vmem %s2, 16
  %v3594 = vld [vmem:[%s3593] sm:$0xf]
  %v3595 = vunpack.c.l.b16 %v3540
  %v3596 = vunpack.c.l.b16 %v3543
  %v3597 = vunpack.c.l.b16 %v3547
  %v3598 = vunpack.c.l.b16 %v3550
  %v3599 = vunpack.c.l.b16 %v3554
  %v3600 = vunpack.c.l.b16 %v3557
  %v3601 = vunpack.c.l.b16 %v3561
  %v3602 = vunpack.c.l.b16 %v3564
  %v3603 = vunpack.c.l.b16 %v3568
  %v3604 = vunpack.c.l.b16 %v3571
  %v3605 = vunpack.c.l.b16 %v3575
  %v3606 = vunpack.c.l.b16 %v3578
  %v3607 = vunpack.c.l.b16 %v3582
  %v3608 = vunpack.c.l.b16 %v3585
  %v3609 = vunpack.c.l.b16 %v3589
  %v3610 = vunpack.c.l.b16 %v3592
  %v3611 = vpack.c.b16 %v3596, %v3595
  %v3612 = vpack.c.b16 %v3598, %v3597
  %v3613 = vpack.c.b16 %v3600, %v3599
  %v3614 = vpack.c.b16 %v3602, %v3601
  %v3615 = vpack.c.b16 %v3604, %v3603
  %v3616 = vpack.c.b16 %v3606, %v3605
  %v3617 = vpack.c.b16 %v3608, %v3607
  %v3618 = vpack.c.b16 %v3610, %v3609
  %v3620 = vsel %vm431, %v3611, 0
  %v3623 = vsel %vm431, %v3612, 0
  %v3626 = vsel %vm431, %v3613, 0
  %v3629 = vsel %vm431, %v3614, 0
  %v3632 = vsel %vm431, %v3615, 0
  %v3635 = vsel %vm431, %v3616, 0
  %v3638 = vsel %vm431, %v3617, 0
  %v3641 = vsel %vm431, %v3618, 0
  %v3644 = vsel %vm456, %v3594, 0
  %3646 = vmatpush.bf16.msra.mxu0 0
  %3647 = vmatpush.bf16.msra.mxu0 0
  %3648 = vmatpush.bf16.msra.mxu0 0
  %3649 = vmatpush.bf16.msra.mxu0 0
  %3650 = vmatpush.bf16.msra.mxu0 0
  %3651 = vmatpush.bf16.msra.mxu0 0
  %3652 = vmatpush.bf16.msra.mxu0 0
  %3653 = vmatpush.bf16.msra.mxu0 %v3644
  %3654 = vmatmul.bf16.gmra.mxu0 %v3620
  %v3655 = vpop.f32.mrf.mxu0
  %v3656 = vadd.f32 0.0, %v3655
  %v3657 = vpop.f32.mrf.mxu0
  %v3658 = vadd.f32 0.0, %v3657
  %3659 = vmatmul.bf16.gmra.mxu0 %v3623
  %v3660 = vpop.f32.mrf.mxu0
  %v3661 = vadd.f32 0.0, %v3660
  %v3662 = vpop.f32.mrf.mxu0
  %v3663 = vadd.f32 0.0, %v3662
  %3664 = vmatmul.bf16.gmra.mxu0 %v3626
  %v3665 = vpop.f32.mrf.mxu0
  %v3666 = vadd.f32 0.0, %v3665
  %v3667 = vpop.f32.mrf.mxu0
  %v3668 = vadd.f32 0.0, %v3667
  %3669 = vmatmul.bf16.gmra.mxu0 %v3629
  %v3670 = vpop.f32.mrf.mxu0
  %v3671 = vadd.f32 0.0, %v3670
  %v3672 = vpop.f32.mrf.mxu0
  %v3673 = vadd.f32 0.0, %v3672
  %3674 = vmatmul.bf16.gmra.mxu0 %v3632
  %v3675 = vpop.f32.mrf.mxu0
  %v3676 = vadd.f32 0.0, %v3675
  %v3677 = vpop.f32.mrf.mxu0
  %v3678 = vadd.f32 0.0, %v3677
  %3679 = vmatmul.bf16.gmra.mxu0 %v3635
  %v3680 = vpop.f32.mrf.mxu0
  %v3681 = vadd.f32 0.0, %v3680
  %v3682 = vpop.f32.mrf.mxu0
  %v3683 = vadd.f32 0.0, %v3682
  %3684 = vmatmul.bf16.gmra.mxu0 %v3638
  %v3685 = vpop.f32.mrf.mxu0
  %v3686 = vadd.f32 0.0, %v3685
  %v3687 = vpop.f32.mrf.mxu0
  %v3688 = vadd.f32 0.0, %v3687
  %3689 = vmatmul.bf16.gmra.mxu0 %v3641
  %v3690 = vpop.f32.mrf.mxu0
  %v3691 = vadd.f32 0.0, %v3690
  %v3692 = vpop.f32.mrf.mxu0
  %v3693 = vadd.f32 0.0, %v3692
  %3694 = vdwg.mxu0
  %v3695 = vadd.f32 %v3497, %v3656
  %v3696 = vadd.f32 %v3498, %v3658
  %v3697 = vadd.f32 %v3499, %v3661
  %v3698 = vadd.f32 %v3500, %v3663
  %v3699 = vadd.f32 %v3501, %v3666
  %v3700 = vadd.f32 %v3502, %v3668
  %v3701 = vadd.f32 %v3503, %v3671
  %v3702 = vadd.f32 %v3504, %v3673
  %v3703 = vadd.f32 %v3505, %v3676
  %v3704 = vadd.f32 %v3506, %v3678
  %v3705 = vadd.f32 %v3507, %v3681
  %v3706 = vadd.f32 %v3508, %v3683
  %v3707 = vadd.f32 %v3509, %v3686
  %v3708 = vadd.f32 %v3510, %v3688
  %v3709 = vadd.f32 %v3511, %v3691
  %v3710 = vadd.f32 %v3512, %v3693
  %v3711 = vld [vmem:[#allocation3 + $0x8] sm:$0x7]
  %v3712 = vld [vmem:[#allocation3 + $0x14] sm:$0x7]
  %v3713 = vld [vmem:[#allocation3 + $0x20] sm:$0x7]
  %v3714 = vld [vmem:[#allocation3 + $0x2c] sm:$0x7]
  %v3715 = vld [vmem:[#allocation3 + $0x38] sm:$0x7]
  %v3716 = vld [vmem:[#allocation3 + $0x44] sm:$0x7]
  %v3717 = vld [vmem:[#allocation3 + $0x50] sm:$0x7]
  %v3718 = vld [vmem:[#allocation3 + $0x5c] sm:$0x7]
  %v3720 = vshrl.u32 %v3513, 16
  %v3722 = vrot.slane %v3720, 6
  %v3723 = vshll.u32 %v3513, 16
  %v3725 = vrot.slane %v3723, 7
  %v3726 = vor.u32 %v3722, %v3725
  %v3727 = vrot.slane %v3726, 4
  %v3728 = vrot.slane %v2609, 6
  %v3729 = vrot.slane %v2605, 7
  %v3730 = vor.u32 %v3728, %v3729
  %v3731 = vsel %vm1347, %v3727, %v3730
  %v3732 = vrot.slane %v3730, 4
  %v3734 = vshrl.u32 %v3711, 16
  %v3736 = vrot.slane %v3734, 6
  %v3737 = vshll.u32 %v3711, 16
  %v3739 = vrot.slane %v3737, 7
  %v3740 = vor.u32 %v3736, %v3739
  %v3741 = vsel %vm1347, %v3732, %v3740
  %v3743 = vshrl.u32 %v3514, 16
  %v3745 = vrot.slane %v3743, 6
  %v3746 = vshll.u32 %v3514, 16
  %v3748 = vrot.slane %v3746, 7
  %v3749 = vor.u32 %v3745, %v3748
  %v3750 = vrot.slane %v3749, 4
  %v3751 = vrot.slane %v2633, 6
  %v3752 = vrot.slane %v2629, 7
  %v3753 = vor.u32 %v3751, %v3752
  %v3754 = vsel %vm1347, %v3750, %v3753
  %v3755 = vrot.slane %v3753, 4
  %v3757 = vshrl.u32 %v3712, 16
  %v3759 = vrot.slane %v3757, 6
  %v3760 = vshll.u32 %v3712, 16
  %v3762 = vrot.slane %v3760, 7
  %v3763 = vor.u32 %v3759, %v3762
  %v3764 = vsel %vm1347, %v3755, %v3763
  %v3766 = vshrl.u32 %v3515, 16
  %v3768 = vrot.slane %v3766, 6
  %v3769 = vshll.u32 %v3515, 16
  %v3771 = vrot.slane %v3769, 7
  %v3772 = vor.u32 %v3768, %v3771
  %v3773 = vrot.slane %v3772, 4
  %v3774 = vrot.slane %v2657, 6
  %v3775 = vrot.slane %v2653, 7
  %v3776 = vor.u32 %v3774, %v3775
  %v3777 = vsel %vm1347, %v3773, %v3776
  %v3778 = vrot.slane %v3776, 4
  %v3780 = vshrl.u32 %v3713, 16
  %v3782 = vrot.slane %v3780, 6
  %v3783 = vshll.u32 %v3713, 16
  %v3785 = vrot.slane %v3783, 7
  %v3786 = vor.u32 %v3782, %v3785
  %v3787 = vsel %vm1347, %v3778, %v3786
  %v3789 = vshrl.u32 %v3516, 16
  %v3791 = vrot.slane %v3789, 6
  %v3792 = vshll.u32 %v3516, 16
  %v3794 = vrot.slane %v3792, 7
  %v3795 = vor.u32 %v3791, %v3794
  %v3796 = vrot.slane %v3795, 4
  %v3797 = vrot.slane %v2681, 6
  %v3798 = vrot.slane %v2677, 7
  %v3799 = vor.u32 %v3797, %v3798
  %v3800 = vsel %vm1347, %v3796, %v3799
  %v3801 = vrot.slane %v3799, 4
  %v3803 = vshrl.u32 %v3714, 16
  %v3805 = vrot.slane %v3803, 6
  %v3806 = vshll.u32 %v3714, 16
  %v3808 = vrot.slane %v3806, 7
  %v3809 = vor.u32 %v3805, %v3808
  %v3810 = vsel %vm1347, %v3801, %v3809
  %v3812 = vshrl.u32 %v3517, 16
  %v3814 = vrot.slane %v3812, 6
  %v3815 = vshll.u32 %v3517, 16
  %v3817 = vrot.slane %v3815, 7
  %v3818 = vor.u32 %v3814, %v3817
  %v3819 = vrot.slane %v3818, 4
  %v3820 = vrot.slane %v2705, 6
  %v3821 = vrot.slane %v2701, 7
  %v3822 = vor.u32 %v3820, %v3821
  %v3823 = vsel %vm1347, %v3819, %v3822
  %v3824 = vrot.slane %v3822, 4
  %v3826 = vshrl.u32 %v3715, 16
  %v3828 = vrot.slane %v3826, 6
  %v3829 = vshll.u32 %v3715, 16
  %v3831 = vrot.slane %v3829, 7
  %v3832 = vor.u32 %v3828, %v3831
  %v3833 = vsel %vm1347, %v3824, %v3832
  %v3835 = vshrl.u32 %v3518, 16
  %v3837 = vrot.slane %v3835, 6
  %v3838 = vshll.u32 %v3518, 16
  %v3840 = vrot.slane %v3838, 7
  %v3841 = vor.u32 %v3837, %v3840
  %v3842 = vrot.slane %v3841, 4
  %v3843 = vrot.slane %v2729, 6
  %v3844 = vrot.slane %v2725, 7
  %v3845 = vor.u32 %v3843, %v3844
  %v3846 = vsel %vm1347, %v3842, %v3845
  %v3847 = vrot.slane %v3845, 4
  %v3849 = vshrl.u32 %v3716, 16
  %v3851 = vrot.slane %v3849, 6
  %v3852 = vshll.u32 %v3716, 16
  %v3854 = vrot.slane %v3852, 7
  %v3855 = vor.u32 %v3851, %v3854
  %v3856 = vsel %vm1347, %v3847, %v3855
  %v3858 = vshrl.u32 %v3519, 16
  %v3860 = vrot.slane %v3858, 6
  %v3861 = vshll.u32 %v3519, 16
  %v3863 = vrot.slane %v3861, 7
  %v3864 = vor.u32 %v3860, %v3863
  %v3865 = vrot.slane %v3864, 4
  %v3866 = vrot.slane %v2753, 6
  %v3867 = vrot.slane %v2749, 7
  %v3868 = vor.u32 %v3866, %v3867
  %v3869 = vsel %vm1347, %v3865, %v3868
  %v3870 = vrot.slane %v3868, 4
  %v3872 = vshrl.u32 %v3717, 16
  %v3874 = vrot.slane %v3872, 6
  %v3875 = vshll.u32 %v3717, 16
  %v3877 = vrot.slane %v3875, 7
  %v3878 = vor.u32 %v3874, %v3877
  %v3879 = vsel %vm1347, %v3870, %v3878
  %v3881 = vshrl.u32 %v3520, 16
  %v3883 = vrot.slane %v3881, 6
  %v3884 = vshll.u32 %v3520, 16
  %v3886 = vrot.slane %v3884, 7
  %v3887 = vor.u32 %v3883, %v3886
  %v3888 = vrot.slane %v3887, 4
  %v3889 = vrot.slane %v2777, 6
  %v3890 = vrot.slane %v2773, 7
  %v3891 = vor.u32 %v3889, %v3890
  %v3892 = vsel %vm1347, %v3888, %v3891
  %v3893 = vrot.slane %v3891, 4
  %v3895 = vshrl.u32 %v3718, 16
  %v3897 = vrot.slane %v3895, 6
  %v3898 = vshll.u32 %v3718, 16
  %v3900 = vrot.slane %v3898, 7
  %v3901 = vor.u32 %v3897, %v3900
  %v3902 = vsel %vm1347, %v3893, %v3901
  %s3903 = scalar_lea.vmem %s2, 20
  %v3904 = vld [vmem:[%s3903] sm:$0xf]
  %v3905 = vunpack.c.l.b16 %v3731
  %v3906 = vunpack.c.l.b16 %v3741
  %v3907 = vunpack.c.l.b16 %v3754
  %v3908 = vunpack.c.l.b16 %v3764
  %v3909 = vunpack.c.l.b16 %v3777
  %v3910 = vunpack.c.l.b16 %v3787
  %v3911 = vunpack.c.l.b16 %v3800
  %v3912 = vunpack.c.l.b16 %v3810
  %v3913 = vunpack.c.l.b16 %v3823
  %v3914 = vunpack.c.l.b16 %v3833
  %v3915 = vunpack.c.l.b16 %v3846
  %v3916 = vunpack.c.l.b16 %v3856
  %v3917 = vunpack.c.l.b16 %v3869
  %v3918 = vunpack.c.l.b16 %v3879
  %v3919 = vunpack.c.l.b16 %v3892
  %v3920 = vunpack.c.l.b16 %v3902
  %v3921 = vpack.c.b16 %v3906, %v3905
  %v3922 = vpack.c.b16 %v3908, %v3907
  %v3923 = vpack.c.b16 %v3910, %v3909
  %v3924 = vpack.c.b16 %v3912, %v3911
  %v3925 = vpack.c.b16 %v3914, %v3913
  %v3926 = vpack.c.b16 %v3916, %v3915
  %v3927 = vpack.c.b16 %v3918, %v3917
  %v3928 = vpack.c.b16 %v3920, %v3919
  %v3930 = vsel %vm431, %v3921, 0
  %v3933 = vsel %vm431, %v3922, 0
  %v3936 = vsel %vm431, %v3923, 0
  %v3939 = vsel %vm431, %v3924, 0
  %v3942 = vsel %vm431, %v3925, 0
  %v3945 = vsel %vm431, %v3926, 0
  %v3948 = vsel %vm431, %v3927, 0
  %v3951 = vsel %vm431, %v3928, 0
  %v3954 = vsel %vm456, %v3904, 0
  %3956 = vmatpush.bf16.msra.mxu0 0
  %3957 = vmatpush.bf16.msra.mxu0 0
  %3958 = vmatpush.bf16.msra.mxu0 0
  %3959 = vmatpush.bf16.msra.mxu0 0
  %3960 = vmatpush.bf16.msra.mxu0 0
  %3961 = vmatpush.bf16.msra.mxu0 0
  %3962 = vmatpush.bf16.msra.mxu0 0
  %3963 = vmatpush.bf16.msra.mxu0 %v3954
  %3964 = vmatmul.bf16.gmra.mxu0 %v3930
  %v3965 = vpop.f32.mrf.mxu0
  %v3966 = vadd.f32 0.0, %v3965
  %v3967 = vpop.f32.mrf.mxu0
  %v3968 = vadd.f32 0.0, %v3967
  %3969 = vmatmul.bf16.gmra.mxu0 %v3933
  %v3970 = vpop.f32.mrf.mxu0
  %v3971 = vadd.f32 0.0, %v3970
  %v3972 = vpop.f32.mrf.mxu0
  %v3973 = vadd.f32 0.0, %v3972
  %3974 = vmatmul.bf16.gmra.mxu0 %v3936
  %v3975 = vpop.f32.mrf.mxu0
  %v3976 = vadd.f32 0.0, %v3975
  %v3977 = vpop.f32.mrf.mxu0
  %v3978 = vadd.f32 0.0, %v3977
  %3979 = vmatmul.bf16.gmra.mxu0 %v3939
  %v3980 = vpop.f32.mrf.mxu0
  %v3981 = vadd.f32 0.0, %v3980
  %v3982 = vpop.f32.mrf.mxu0
  %v3983 = vadd.f32 0.0, %v3982
  %3984 = vmatmul.bf16.gmra.mxu0 %v3942
  %v3985 = vpop.f32.mrf.mxu0
  %v3986 = vadd.f32 0.0, %v3985
  %v3987 = vpop.f32.mrf.mxu0
  %v3988 = vadd.f32 0.0, %v3987
  %3989 = vmatmul.bf16.gmra.mxu0 %v3945
  %v3990 = vpop.f32.mrf.mxu0
  %v3991 = vadd.f32 0.0, %v3990
  %v3992 = vpop.f32.mrf.mxu0
  %v3993 = vadd.f32 0.0, %v3992
  %3994 = vmatmul.bf16.gmra.mxu0 %v3948
  %v3995 = vpop.f32.mrf.mxu0
  %v3996 = vadd.f32 0.0, %v3995
  %v3997 = vpop.f32.mrf.mxu0
  %v3998 = vadd.f32 0.0, %v3997
  %3999 = vmatmul.bf16.gmra.mxu0 %v3951
  %v4000 = vpop.f32.mrf.mxu0
  %v4001 = vadd.f32 0.0, %v4000
  %v4002 = vpop.f32.mrf.mxu0
  %v4003 = vadd.f32 0.0, %v4002
  %4004 = vdwg.mxu0
  %v4005 = vadd.f32 %v3695, %v3966
  %v4006 = vadd.f32 %v3696, %v3968
  %v4007 = vadd.f32 %v3697, %v3971
  %v4008 = vadd.f32 %v3698, %v3973
  %v4009 = vadd.f32 %v3699, %v3976
  %v4010 = vadd.f32 %v3700, %v3978
  %v4011 = vadd.f32 %v3701, %v3981
  %v4012 = vadd.f32 %v3702, %v3983
  %v4013 = vadd.f32 %v3703, %v3986
  %v4014 = vadd.f32 %v3704, %v3988
  %v4015 = vadd.f32 %v3705, %v3991
  %v4016 = vadd.f32 %v3706, %v3993
  %v4017 = vadd.f32 %v3707, %v3996
  %v4018 = vadd.f32 %v3708, %v3998
  %v4019 = vadd.f32 %v3709, %v4001
  %v4020 = vadd.f32 %v3710, %v4003
  %v4021 = vld [vmem:[#allocation3] sm:$0x8]
  %v4022 = vld [vmem:[#allocation3 + $0xc] sm:$0x8]
  %v4023 = vld [vmem:[#allocation3 + $0x18] sm:$0x8]
  %v4024 = vld [vmem:[#allocation3 + $0x24] sm:$0x8]
  %v4025 = vld [vmem:[#allocation3 + $0x30] sm:$0x8]
  %v4026 = vld [vmem:[#allocation3 + $0x3c] sm:$0x8]
  %v4027 = vld [vmem:[#allocation3 + $0x48] sm:$0x8]
  %v4028 = vld [vmem:[#allocation3 + $0x54] sm:$0x8]
  %v4045 = vrot.slane %v4021, 7
  %v4046 = vrot.slane %v4045, 4
  %v4047 = vrot.slane %v2571, 7
  %v4048 = vsel %vm1676, %v4046, %v4047
  %v4049 = vrot.slane %v4047, 4
  %v4050 = vrot.slane %v3711, 7
  %v4051 = vsel %vm1676, %v4049, %v4050
  %v4052 = vrot.slane %v4022, 7
  %v4053 = vrot.slane %v4052, 4
  %v4054 = vrot.slane %v2573, 7
  %v4055 = vsel %vm1676, %v4053, %v4054
  %v4056 = vrot.slane %v4054, 4
  %v4057 = vrot.slane %v3712, 7
  %v4058 = vsel %vm1676, %v4056, %v4057
  %v4059 = vrot.slane %v4023, 7
  %v4060 = vrot.slane %v4059, 4
  %v4061 = vrot.slane %v2575, 7
  %v4062 = vsel %vm1676, %v4060, %v4061
  %v4063 = vrot.slane %v4061, 4
  %v4064 = vrot.slane %v3713, 7
  %v4065 = vsel %vm1676, %v4063, %v4064
  %v4066 = vrot.slane %v4024, 7
  %v4067 = vrot.slane %v4066, 4
  %v4068 = vrot.slane %v2577, 7
  %v4069 = vsel %vm1676, %v4067, %v4068
  %v4070 = vrot.slane %v4068, 4
  %v4071 = vrot.slane %v3714, 7
  %v4072 = vsel %vm1676, %v4070, %v4071
  %v4073 = vrot.slane %v4025, 7
  %v4074 = vrot.slane %v4073, 4
  %v4075 = vrot.slane %v2579, 7
  %v4076 = vsel %vm1676, %v4074, %v4075
  %v4077 = vrot.slane %v4075, 4
  %v4078 = vrot.slane %v3715, 7
  %v4079 = vsel %vm1676, %v4077, %v4078
  %v4080 = vrot.slane %v4026, 7
  %v4081 = vrot.slane %v4080, 4
  %v4082 = vrot.slane %v2581, 7
  %v4083 = vsel %vm1676, %v4081, %v4082
  %v4084 = vrot.slane %v4082, 4
  %v4085 = vrot.slane %v3716, 7
  %v4086 = vsel %vm1676, %v4084, %v4085
  %v4087 = vrot.slane %v4027, 7
  %v4088 = vrot.slane %v4087, 4
  %v4089 = vrot.slane %v2583, 7
  %v4090 = vsel %vm1676, %v4088, %v4089
  %v4091 = vrot.slane %v4089, 4
  %v4092 = vrot.slane %v3717, 7
  %v4093 = vsel %vm1676, %v4091, %v4092
  %v4094 = vrot.slane %v4028, 7
  %v4095 = vrot.slane %v4094, 4
  %v4096 = vrot.slane %v2585, 7
  %v4097 = vsel %vm1676, %v4095, %v4096
  %v4098 = vrot.slane %v4096, 4
  %v4099 = vrot.slane %v3718, 7
  %v4100 = vsel %vm1676, %v4098, %v4099
  %s4101 = scalar_lea.vmem %s2, 24
  %v4102 = vld [vmem:[%s4101] sm:$0xf]
  %v4103 = vunpack.c.l.b16 %v4048
  %v4104 = vunpack.c.l.b16 %v4051
  %v4105 = vunpack.c.l.b16 %v4055
  %v4106 = vunpack.c.l.b16 %v4058
  %v4107 = vunpack.c.l.b16 %v4062
  %v4108 = vunpack.c.l.b16 %v4065
  %v4109 = vunpack.c.l.b16 %v4069
  %v4110 = vunpack.c.l.b16 %v4072
  %v4111 = vunpack.c.l.b16 %v4076
  %v4112 = vunpack.c.l.b16 %v4079
  %v4113 = vunpack.c.l.b16 %v4083
  %v4114 = vunpack.c.l.b16 %v4086
  %v4115 = vunpack.c.l.b16 %v4090
  %v4116 = vunpack.c.l.b16 %v4093
  %v4117 = vunpack.c.l.b16 %v4097
  %v4118 = vunpack.c.l.b16 %v4100
  %v4119 = vpack.c.b16 %v4104, %v4103
  %v4120 = vpack.c.b16 %v4106, %v4105
  %v4121 = vpack.c.b16 %v4108, %v4107
  %v4122 = vpack.c.b16 %v4110, %v4109
  %v4123 = vpack.c.b16 %v4112, %v4111
  %v4124 = vpack.c.b16 %v4114, %v4113
  %v4125 = vpack.c.b16 %v4116, %v4115
  %v4126 = vpack.c.b16 %v4118, %v4117
  %v4128 = vsel %vm431, %v4119, 0
  %v4131 = vsel %vm431, %v4120, 0
  %v4134 = vsel %vm431, %v4121, 0
  %v4137 = vsel %vm431, %v4122, 0
  %v4140 = vsel %vm431, %v4123, 0
  %v4143 = vsel %vm431, %v4124, 0
  %v4146 = vsel %vm431, %v4125, 0
  %v4149 = vsel %vm431, %v4126, 0
  %v4152 = vsel %vm456, %v4102, 0
  %4154 = vmatpush.bf16.msra.mxu0 0
  %4155 = vmatpush.bf16.msra.mxu0 0
  %4156 = vmatpush.bf16.msra.mxu0 0
  %4157 = vmatpush.bf16.msra.mxu0 0
  %4158 = vmatpush.bf16.msra.mxu0 0
  %4159 = vmatpush.bf16.msra.mxu0 0
  %4160 = vmatpush.bf16.msra.mxu0 0
  %4161 = vmatpush.bf16.msra.mxu0 %v4152
  %4162 = vmatmul.bf16.gmra.mxu0 %v4128
  %v4163 = vpop.f32.mrf.mxu0
  %v4164 = vadd.f32 0.0, %v4163
  %v4165 = vpop.f32.mrf.mxu0
  %v4166 = vadd.f32 0.0, %v4165
  %4167 = vmatmul.bf16.gmra.mxu0 %v4131
  %v4168 = vpop.f32.mrf.mxu0
  %v4169 = vadd.f32 0.0, %v4168
  %v4170 = vpop.f32.mrf.mxu0
  %v4171 = vadd.f32 0.0, %v4170
  %4172 = vmatmul.bf16.gmra.mxu0 %v4134
  %v4173 = vpop.f32.mrf.mxu0
  %v4174 = vadd.f32 0.0, %v4173
  %v4175 = vpop.f32.mrf.mxu0
  %v4176 = vadd.f32 0.0, %v4175
  %4177 = vmatmul.bf16.gmra.mxu0 %v4137
  %v4178 = vpop.f32.mrf.mxu0
  %v4179 = vadd.f32 0.0, %v4178
  %v4180 = vpop.f32.mrf.mxu0
  %v4181 = vadd.f32 0.0, %v4180
  %4182 = vmatmul.bf16.gmra.mxu0 %v4140
  %v4183 = vpop.f32.mrf.mxu0
  %v4184 = vadd.f32 0.0, %v4183
  %v4185 = vpop.f32.mrf.mxu0
  %v4186 = vadd.f32 0.0, %v4185
  %4187 = vmatmul.bf16.gmra.mxu0 %v4143
  %v4188 = vpop.f32.mrf.mxu0
  %v4189 = vadd.f32 0.0, %v4188
  %v4190 = vpop.f32.mrf.mxu0
  %v4191 = vadd.f32 0.0, %v4190
  %4192 = vmatmul.bf16.gmra.mxu0 %v4146
  %v4193 = vpop.f32.mrf.mxu0
  %v4194 = vadd.f32 0.0, %v4193
  %v4195 = vpop.f32.mrf.mxu0
  %v4196 = vadd.f32 0.0, %v4195
  %4197 = vmatmul.bf16.gmra.mxu0 %v4149
  %v4198 = vpop.f32.mrf.mxu0
  %v4199 = vadd.f32 0.0, %v4198
  %v4200 = vpop.f32.mrf.mxu0
  %v4201 = vadd.f32 0.0, %v4200
  %4202 = vdwg.mxu0
  %v4203 = vadd.f32 %v4005, %v4164
  %v4204 = vadd.f32 %v4006, %v4166
  %v4205 = vadd.f32 %v4007, %v4169
  %v4206 = vadd.f32 %v4008, %v4171
  %v4207 = vadd.f32 %v4009, %v4174
  %v4208 = vadd.f32 %v4010, %v4176
  %v4209 = vadd.f32 %v4011, %v4179
  %v4210 = vadd.f32 %v4012, %v4181
  %v4211 = vadd.f32 %v4013, %v4184
  %v4212 = vadd.f32 %v4014, %v4186
  %v4213 = vadd.f32 %v4015, %v4189
  %v4214 = vadd.f32 %v4016, %v4191
  %v4215 = vadd.f32 %v4017, %v4194
  %v4216 = vadd.f32 %v4018, %v4196
  %v4217 = vadd.f32 %v4019, %v4199
  %v4218 = vadd.f32 %v4020, %v4201
  %v4219 = vld [vmem:[#allocation3 + $0x8] sm:$0xf]
  %v4220 = vld [vmem:[#allocation3 + $0x14] sm:$0xf]
  %v4221 = vld [vmem:[#allocation3 + $0x20] sm:$0xf]
  %v4222 = vld [vmem:[#allocation3 + $0x2c] sm:$0xf]
  %v4223 = vld [vmem:[#allocation3 + $0x38] sm:$0xf]
  %v4224 = vld [vmem:[#allocation3 + $0x44] sm:$0xf]
  %v4225 = vld [vmem:[#allocation3 + $0x50] sm:$0xf]
  %v4226 = vld [vmem:[#allocation3 + $0x5c] sm:$0xf]
  %v4228 = vshrl.u32 %v4021, 16
  %v4230 = vrot.slane %v4228, 7
  %v4231 = vrot.slane %v4230, 4
  %v4232 = vrot.slane %v2609, 7
  %v4233 = vor.u32 %v4232, %v2605
  %v4234 = vsel %vm1861, %v4231, %v4233
  %v4235 = vrot.slane %v4232, 4
  %v4237 = vshrl.u32 %v4219, 16
  %v4239 = vrot.slane %v4237, 7
  %v4240 = vshll.u32 %v4219, 16
  %v4242 = vor.u32 %v4239, %v4240
  %v4243 = vsel %vm1861, %v4235, %v4242
  %v4245 = vshrl.u32 %v4022, 16
  %v4247 = vrot.slane %v4245, 7
  %v4248 = vrot.slane %v4247, 4
  %v4249 = vrot.slane %v2633, 7
  %v4250 = vor.u32 %v4249, %v2629
  %v4251 = vsel %vm1861, %v4248, %v4250
  %v4252 = vrot.slane %v4249, 4
  %v4254 = vshrl.u32 %v4220, 16
  %v4256 = vrot.slane %v4254, 7
  %v4257 = vshll.u32 %v4220, 16
  %v4259 = vor.u32 %v4256, %v4257
  %v4260 = vsel %vm1861, %v4252, %v4259
  %v4262 = vshrl.u32 %v4023, 16
  %v4264 = vrot.slane %v4262, 7
  %v4265 = vrot.slane %v4264, 4
  %v4266 = vrot.slane %v2657, 7
  %v4267 = vor.u32 %v4266, %v2653
  %v4268 = vsel %vm1861, %v4265, %v4267
  %v4269 = vrot.slane %v4266, 4
  %v4271 = vshrl.u32 %v4221, 16
  %v4273 = vrot.slane %v4271, 7
  %v4274 = vshll.u32 %v4221, 16
  %v4276 = vor.u32 %v4273, %v4274
  %v4277 = vsel %vm1861, %v4269, %v4276
  %v4279 = vshrl.u32 %v4024, 16
  %v4281 = vrot.slane %v4279, 7
  %v4282 = vrot.slane %v4281, 4
  %v4283 = vrot.slane %v2681, 7
  %v4284 = vor.u32 %v4283, %v2677
  %v4285 = vsel %vm1861, %v4282, %v4284
  %v4286 = vrot.slane %v4283, 4
  %v4288 = vshrl.u32 %v4222, 16
  %v4290 = vrot.slane %v4288, 7
  %v4291 = vshll.u32 %v4222, 16
  %v4293 = vor.u32 %v4290, %v4291
  %v4294 = vsel %vm1861, %v4286, %v4293
  %v4296 = vshrl.u32 %v4025, 16
  %v4298 = vrot.slane %v4296, 7
  %v4299 = vrot.slane %v4298, 4
  %v4300 = vrot.slane %v2705, 7
  %v4301 = vor.u32 %v4300, %v2701
  %v4302 = vsel %vm1861, %v4299, %v4301
  %v4303 = vrot.slane %v4300, 4
  %v4305 = vshrl.u32 %v4223, 16
  %v4307 = vrot.slane %v4305, 7
  %v4308 = vshll.u32 %v4223, 16
  %v4310 = vor.u32 %v4307, %v4308
  %v4311 = vsel %vm1861, %v4303, %v4310
  %v4313 = vshrl.u32 %v4026, 16
  %v4315 = vrot.slane %v4313, 7
  %v4316 = vrot.slane %v4315, 4
  %v4317 = vrot.slane %v2729, 7
  %v4318 = vor.u32 %v4317, %v2725
  %v4319 = vsel %vm1861, %v4316, %v4318
  %v4320 = vrot.slane %v4317, 4
  %v4322 = vshrl.u32 %v4224, 16
  %v4324 = vrot.slane %v4322, 7
  %v4325 = vshll.u32 %v4224, 16
  %v4327 = vor.u32 %v4324, %v4325
  %v4328 = vsel %vm1861, %v4320, %v4327
  %v4330 = vshrl.u32 %v4027, 16
  %v4332 = vrot.slane %v4330, 7
  %v4333 = vrot.slane %v4332, 4
  %v4334 = vrot.slane %v2753, 7
  %v4335 = vor.u32 %v4334, %v2749
  %v4336 = vsel %vm1861, %v4333, %v4335
  %v4337 = vrot.slane %v4334, 4
  %v4339 = vshrl.u32 %v4225, 16
  %v4341 = vrot.slane %v4339, 7
  %v4342 = vshll.u32 %v4225, 16
  %v4344 = vor.u32 %v4341, %v4342
  %v4345 = vsel %vm1861, %v4337, %v4344
  %v4347 = vshrl.u32 %v4028, 16
  %v4349 = vrot.slane %v4347, 7
  %v4350 = vrot.slane %v4349, 4
  %v4351 = vrot.slane %v2777, 7
  %v4352 = vor.u32 %v4351, %v2773
  %v4353 = vsel %vm1861, %v4350, %v4352
  %v4354 = vrot.slane %v4351, 4
  %v4356 = vshrl.u32 %v4226, 16
  %v4358 = vrot.slane %v4356, 7
  %v4359 = vshll.u32 %v4226, 16
  %v4361 = vor.u32 %v4358, %v4359
  %v4362 = vsel %vm1861, %v4354, %v4361
  %s4363 = scalar_lea.vmem %s2, 28
  %v4364 = vld [vmem:[%s4363] sm:$0xf]
  %v4365 = vunpack.c.l.b16 %v4234
  %v4366 = vunpack.c.l.b16 %v4243
  %v4367 = vunpack.c.l.b16 %v4251
  %v4368 = vunpack.c.l.b16 %v4260
  %v4369 = vunpack.c.l.b16 %v4268
  %v4370 = vunpack.c.l.b16 %v4277
  %v4371 = vunpack.c.l.b16 %v4285
  %v4372 = vunpack.c.l.b16 %v4294
  %v4373 = vunpack.c.l.b16 %v4302
  %v4374 = vunpack.c.l.b16 %v4311
  %v4375 = vunpack.c.l.b16 %v4319
  %v4376 = vunpack.c.l.b16 %v4328
  %v4377 = vunpack.c.l.b16 %v4336
  %v4378 = vunpack.c.l.b16 %v4345
  %v4379 = vunpack.c.l.b16 %v4353
  %v4380 = vunpack.c.l.b16 %v4362
  %v4381 = vpack.c.b16 %v4366, %v4365
  %v4382 = vpack.c.b16 %v4368, %v4367
  %v4383 = vpack.c.b16 %v4370, %v4369
  %v4384 = vpack.c.b16 %v4372, %v4371
  %v4385 = vpack.c.b16 %v4374, %v4373
  %v4386 = vpack.c.b16 %v4376, %v4375
  %v4387 = vpack.c.b16 %v4378, %v4377
  %v4388 = vpack.c.b16 %v4380, %v4379
  %v4390 = vsel %vm431, %v4381, 0
  %v4393 = vsel %vm431, %v4382, 0
  %v4396 = vsel %vm431, %v4383, 0
  %v4399 = vsel %vm431, %v4384, 0
  %v4402 = vsel %vm431, %v4385, 0
  %v4405 = vsel %vm431, %v4386, 0
  %v4408 = vsel %vm431, %v4387, 0
  %v4411 = vsel %vm431, %v4388, 0
  %v4414 = vsel %vm456, %v4364, 0
  %4416 = vmatpush.bf16.msra.mxu0 0
  %4417 = vmatpush.bf16.msra.mxu0 0
  %4418 = vmatpush.bf16.msra.mxu0 0
  %4419 = vmatpush.bf16.msra.mxu0 0
  %4420 = vmatpush.bf16.msra.mxu0 0
  %4421 = vmatpush.bf16.msra.mxu0 0
  %4422 = vmatpush.bf16.msra.mxu0 0
  %4423 = vmatpush.bf16.msra.mxu0 %v4414
  %4424 = vmatmul.bf16.gmra.mxu0 %v4390
  %v4425 = vpop.f32.mrf.mxu0
  %v4426 = vadd.f32 0.0, %v4425
  %v4427 = vpop.f32.mrf.mxu0
  %v4428 = vadd.f32 0.0, %v4427
  %4429 = vmatmul.bf16.gmra.mxu0 %v4393
  %v4430 = vpop.f32.mrf.mxu0
  %v4431 = vadd.f32 0.0, %v4430
  %v4432 = vpop.f32.mrf.mxu0
  %v4433 = vadd.f32 0.0, %v4432
  %4434 = vmatmul.bf16.gmra.mxu0 %v4396
  %v4435 = vpop.f32.mrf.mxu0
  %v4436 = vadd.f32 0.0, %v4435
  %v4437 = vpop.f32.mrf.mxu0
  %v4438 = vadd.f32 0.0, %v4437
  %4439 = vmatmul.bf16.gmra.mxu0 %v4399
  %v4440 = vpop.f32.mrf.mxu0
  %v4441 = vadd.f32 0.0, %v4440
  %v4442 = vpop.f32.mrf.mxu0
  %v4443 = vadd.f32 0.0, %v4442
  %4444 = vmatmul.bf16.gmra.mxu0 %v4402
  %v4445 = vpop.f32.mrf.mxu0
  %v4446 = vadd.f32 0.0, %v4445
  %v4447 = vpop.f32.mrf.mxu0
  %v4448 = vadd.f32 0.0, %v4447
  %4449 = vmatmul.bf16.gmra.mxu0 %v4405
  %v4450 = vpop.f32.mrf.mxu0
  %v4451 = vadd.f32 0.0, %v4450
  %v4452 = vpop.f32.mrf.mxu0
  %v4453 = vadd.f32 0.0, %v4452
  %4454 = vmatmul.bf16.gmra.mxu0 %v4408
  %v4455 = vpop.f32.mrf.mxu0
  %v4456 = vadd.f32 0.0, %v4455
  %v4457 = vpop.f32.mrf.mxu0
  %v4458 = vadd.f32 0.0, %v4457
  %4459 = vmatmul.bf16.gmra.mxu0 %v4411
  %v4460 = vpop.f32.mrf.mxu0
  %v4461 = vadd.f32 0.0, %v4460
  %v4462 = vpop.f32.mrf.mxu0
  %v4463 = vadd.f32 0.0, %v4462
  %4464 = vdwg.mxu0
  %v4465 = vadd.f32 %v4203, %v4426
  %v4466 = vadd.f32 %v4204, %v4428
  %v4467 = vadd.f32 %v4205, %v4431
  %v4468 = vadd.f32 %v4206, %v4433
  %v4469 = vadd.f32 %v4207, %v4436
  %v4470 = vadd.f32 %v4208, %v4438
  %v4471 = vadd.f32 %v4209, %v4441
  %v4472 = vadd.f32 %v4210, %v4443
  %v4473 = vadd.f32 %v4211, %v4446
  %v4474 = vadd.f32 %v4212, %v4448
  %v4475 = vadd.f32 %v4213, %v4451
  %v4476 = vadd.f32 %v4214, %v4453
  %v4477 = vadd.f32 %v4215, %v4456
  %v4478 = vadd.f32 %v4216, %v4458
  %v4479 = vadd.f32 %v4217, %v4461
  %v4480 = vadd.f32 %v4218, %v4463
  %s4481 = scalar_lea.vmem %s2, 32
  %v4482 = vld [vmem:[%s4481] sm:$0xf]
  %v4491 = vunpack.c.l.b16 %v4219
  %v4492 = vunpack.c.l.b16 %v4220
  %v4493 = vunpack.c.l.b16 %v4221
  %v4494 = vunpack.c.l.b16 %v4222
  %v4495 = vunpack.c.l.b16 %v4223
  %v4496 = vunpack.c.l.b16 %v4224
  %v4497 = vunpack.c.l.b16 %v4225
  %v4498 = vunpack.c.l.b16 %v4226
  %v4499 = vpack.c.b16 %v4491, %v2906
  %v4500 = vpack.c.b16 %v4492, %v2908
  %v4501 = vpack.c.b16 %v4493, %v2910
  %v4502 = vpack.c.b16 %v4494, %v2912
  %v4503 = vpack.c.b16 %v4495, %v2914
  %v4504 = vpack.c.b16 %v4496, %v2916
  %v4505 = vpack.c.b16 %v4497, %v2918
  %v4506 = vpack.c.b16 %v4498, %v2920
  %v4508 = vsel %vm431, %v4499, 0
  %v4511 = vsel %vm431, %v4500, 0
  %v4514 = vsel %vm431, %v4501, 0
  %v4517 = vsel %vm431, %v4502, 0
  %v4520 = vsel %vm431, %v4503, 0
  %v4523 = vsel %vm431, %v4504, 0
  %v4526 = vsel %vm431, %v4505, 0
  %v4529 = vsel %vm431, %v4506, 0
  %v4532 = vsel %vm456, %v4482, 0
  %4534 = vmatpush.bf16.msra.mxu0 0
  %4535 = vmatpush.bf16.msra.mxu0 0
  %4536 = vmatpush.bf16.msra.mxu0 0
  %4537 = vmatpush.bf16.msra.mxu0 0
  %4538 = vmatpush.bf16.msra.mxu0 0
  %4539 = vmatpush.bf16.msra.mxu0 0
  %4540 = vmatpush.bf16.msra.mxu0 0
  %4541 = vmatpush.bf16.msra.mxu0 %v4532
  %4542 = vmatmul.bf16.gmra.mxu0 %v4508
  %v4543 = vpop.f32.mrf.mxu0
  %v4544 = vadd.f32 0.0, %v4543
  %v4545 = vpop.f32.mrf.mxu0
  %v4546 = vadd.f32 0.0, %v4545
  %4547 = vmatmul.bf16.gmra.mxu0 %v4511
  %v4548 = vpop.f32.mrf.mxu0
  %v4549 = vadd.f32 0.0, %v4548
  %v4550 = vpop.f32.mrf.mxu0
  %v4551 = vadd.f32 0.0, %v4550
  %4552 = vmatmul.bf16.gmra.mxu0 %v4514
  %v4553 = vpop.f32.mrf.mxu0
  %v4554 = vadd.f32 0.0, %v4553
  %v4555 = vpop.f32.mrf.mxu0
  %v4556 = vadd.f32 0.0, %v4555
  %4557 = vmatmul.bf16.gmra.mxu0 %v4517
  %v4558 = vpop.f32.mrf.mxu0
  %v4559 = vadd.f32 0.0, %v4558
  %v4560 = vpop.f32.mrf.mxu0
  %v4561 = vadd.f32 0.0, %v4560
  %4562 = vmatmul.bf16.gmra.mxu0 %v4520
  %v4563 = vpop.f32.mrf.mxu0
  %v4564 = vadd.f32 0.0, %v4563
  %v4565 = vpop.f32.mrf.mxu0
  %v4566 = vadd.f32 0.0, %v4565
  %4567 = vmatmul.bf16.gmra.mxu0 %v4523
  %v4568 = vpop.f32.mrf.mxu0
  %v4569 = vadd.f32 0.0, %v4568
  %v4570 = vpop.f32.mrf.mxu0
  %v4571 = vadd.f32 0.0, %v4570
  %4572 = vmatmul.bf16.gmra.mxu0 %v4526
  %v4573 = vpop.f32.mrf.mxu0
  %v4574 = vadd.f32 0.0, %v4573
  %v4575 = vpop.f32.mrf.mxu0
  %v4576 = vadd.f32 0.0, %v4575
  %4577 = vmatmul.bf16.gmra.mxu0 %v4529
  %v4578 = vpop.f32.mrf.mxu0
  %v4579 = vadd.f32 0.0, %v4578
  %v4580 = vpop.f32.mrf.mxu0
  %v4581 = vadd.f32 0.0, %v4580
  %4582 = vdwg.mxu0
  %v4583 = vadd.f32 %v4465, %v4544
  %v4584 = vadd.f32 %v4466, %v4546
  %v4585 = vadd.f32 %v4467, %v4549
  %v4586 = vadd.f32 %v4468, %v4551
  %v4587 = vadd.f32 %v4469, %v4554
  %v4588 = vadd.f32 %v4470, %v4556
  %v4589 = vadd.f32 %v4471, %v4559
  %v4590 = vadd.f32 %v4472, %v4561
  %v4591 = vadd.f32 %v4473, %v4564
  %v4592 = vadd.f32 %v4474, %v4566
  %v4593 = vadd.f32 %v4475, %v4569
  %v4594 = vadd.f32 %v4476, %v4571
  %v4595 = vadd.f32 %v4477, %v4574
  %v4596 = vadd.f32 %v4478, %v4576
  %v4597 = vadd.f32 %v4479, %v4579
  %v4598 = vadd.f32 %v4480, %v4581
  %v4599 = vsel %vm431, %v4583, 0.0
  %v4600 = vsel %vm431, %v4584, 0.0
  %v4601 = vadd.f32 %v4599, %v4600
  %v4602 = vsel %vm431, %v4585, 0.0
  %v4603 = vadd.f32 %v4601, %v4602
  %v4604 = vsel %vm431, %v4586, 0.0
  %v4605 = vadd.f32 %v4603, %v4604
  %v4606 = vsel %vm431, %v4587, 0.0
  %v4607 = vadd.f32 %v4605, %v4606
  %v4608 = vsel %vm431, %v4588, 0.0
  %v4609 = vadd.f32 %v4607, %v4608
  %v4610 = vsel %vm431, %v4589, 0.0
  %v4611 = vadd.f32 %v4609, %v4610
  %v4612 = vsel %vm431, %v4590, 0.0
  %v4613 = vadd.f32 %v4611, %v4612
  %v4614 = vsel %vm431, %v4591, 0.0
  %v4615 = vadd.f32 %v4613, %v4614
  %v4616 = vsel %vm431, %v4592, 0.0
  %v4617 = vadd.f32 %v4615, %v4616
  %v4618 = vsel %vm431, %v4593, 0.0
  %v4619 = vadd.f32 %v4617, %v4618
  %v4620 = vsel %vm431, %v4594, 0.0
  %v4621 = vadd.f32 %v4619, %v4620
  %v4622 = vsel %vm431, %v4595, 0.0
  %v4623 = vadd.f32 %v4621, %v4622
  %v4624 = vsel %vm431, %v4596, 0.0
  %v4625 = vadd.f32 %v4623, %v4624
  %v4626 = vsel %vm431, %v4597, 0.0
  %v4627 = vadd.f32 %v4625, %v4626
  %v4628 = vsel %vm431, %v4598, 0.0
  %v4629 = vadd.f32 %v4627, %v4628
  %v4630 = vrot.slane %v4629, 4
  %v4631 = vadd.f32 %v4629, %v4630
  %v4632 = vrot.slane %v4631, 2
  %v4633 = vadd.f32 %v4631, %v4632
  %v4634 = vrot.slane %v4633, 1
  %v4635 = vadd.f32 %v4633, %v4634
  %v4636 = vmul.f32 %v4635, %v2277
  %v4637 = vmul.f32 %v4583, %v4583
  %v4638 = vmul.f32 %v4584, %v4584
  %v4639 = vmul.f32 %v4585, %v4585
  %v4640 = vmul.f32 %v4586, %v4586
  %v4641 = vmul.f32 %v4587, %v4587
  %v4642 = vmul.f32 %v4588, %v4588
  %v4643 = vmul.f32 %v4589, %v4589
  %v4644 = vmul.f32 %v4590, %v4590
  %v4645 = vmul.f32 %v4591, %v4591
  %v4646 = vmul.f32 %v4592, %v4592
  %v4647 = vmul.f32 %v4593, %v4593
  %v4648 = vmul.f32 %v4594, %v4594
  %v4649 = vmul.f32 %v4595, %v4595
  %v4650 = vmul.f32 %v4596, %v4596
  %v4651 = vmul.f32 %v4597, %v4597
  %v4652 = vmul.f32 %v4598, %v4598
  %v4653 = vsel %vm431, %v4637, 0.0
  %v4654 = vsel %vm431, %v4638, 0.0
  %v4655 = vadd.f32 %v4653, %v4654
  %v4656 = vsel %vm431, %v4639, 0.0
  %v4657 = vadd.f32 %v4655, %v4656
  %v4658 = vsel %vm431, %v4640, 0.0
  %v4659 = vadd.f32 %v4657, %v4658
  %v4660 = vsel %vm431, %v4641, 0.0
  %v4661 = vadd.f32 %v4659, %v4660
  %v4662 = vsel %vm431, %v4642, 0.0
  %v4663 = vadd.f32 %v4661, %v4662
  %v4664 = vsel %vm431, %v4643, 0.0
  %v4665 = vadd.f32 %v4663, %v4664
  %v4666 = vsel %vm431, %v4644, 0.0
  %v4667 = vadd.f32 %v4665, %v4666
  %v4668 = vsel %vm431, %v4645, 0.0
  %v4669 = vadd.f32 %v4667, %v4668
  %v4670 = vsel %vm431, %v4646, 0.0
  %v4671 = vadd.f32 %v4669, %v4670
  %v4672 = vsel %vm431, %v4647, 0.0
  %v4673 = vadd.f32 %v4671, %v4672
  %v4674 = vsel %vm431, %v4648, 0.0
  %v4675 = vadd.f32 %v4673, %v4674
  %v4676 = vsel %vm431, %v4649, 0.0
  %v4677 = vadd.f32 %v4675, %v4676
  %v4678 = vsel %vm431, %v4650, 0.0
  %v4679 = vadd.f32 %v4677, %v4678
  %v4680 = vsel %vm431, %v4651, 0.0
  %v4681 = vadd.f32 %v4679, %v4680
  %v4682 = vsel %vm431, %v4652, 0.0
  %v4683 = vadd.f32 %v4681, %v4682
  %v4684 = vrot.slane %v4683, 4
  %v4685 = vadd.f32 %v4683, %v4684
  %v4686 = vrot.slane %v4685, 2
  %v4687 = vadd.f32 %v4685, %v4686
  %v4688 = vrot.slane %v4687, 1
  %v4689 = vadd.f32 %v4687, %v4688
  %v4690 = vmul.f32 %v4689, %v2277
  %v4691 = vmul.f32 %v4636, %v4636
  %v4692 = vsub.f32 %v4690, %v4691
  %v4693 = vsub.f32 %v4583, %v4636
  %v4694 = vsub.f32 %v4584, %v4636
  %v4695 = vsub.f32 %v4585, %v4636
  %v4696 = vsub.f32 %v4586, %v4636
  %v4697 = vsub.f32 %v4587, %v4636
  %v4698 = vsub.f32 %v4588, %v4636
  %v4699 = vsub.f32 %v4589, %v4636
  %v4700 = vsub.f32 %v4590, %v4636
  %v4701 = vsub.f32 %v4591, %v4636
  %v4702 = vsub.f32 %v4592, %v4636
  %v4703 = vsub.f32 %v4593, %v4636
  %v4704 = vsub.f32 %v4594, %v4636
  %v4705 = vsub.f32 %v4595, %v4636
  %v4706 = vsub.f32 %v4596, %v4636
  %v4707 = vsub.f32 %v4597, %v4636
  %v4708 = vsub.f32 %v4598, %v4636
  %v4709 = vadd.f32 %v4692, 1e-05
  %v4710 = vrsqrt.pop %v4709
  %v4711 = vmul.f32 %v4710, %v4709
  %v4712 = vmul.f32 %v4711, %v4710
  %v4713 = vmul.f32 0.5, %v4712
  %v4714 = vsub.f32 1.5, %v4713
  %v4715 = vmul.f32 %v4710, %v4714
  %vm4716 = vweird.f32 %v4709
  %vm4717 = vweird.f32 %v4710
  %vm4718 = vmor %vm4716, %vm4717
  %v4719 = vsel %vm4718, %v4710, %v4715
  %v4720 = vmul.f32 %v4693, %v4719
  %v4721 = vmul.f32 %v4694, %v4719
  %v4722 = vmul.f32 %v4695, %v4719
  %v4723 = vmul.f32 %v4696, %v4719
  %v4724 = vmul.f32 %v4697, %v4719
  %v4725 = vmul.f32 %v4698, %v4719
  %v4726 = vmul.f32 %v4699, %v4719
  %v4727 = vmul.f32 %v4700, %v4719
  %v4728 = vmul.f32 %v4701, %v4719
  %v4729 = vmul.f32 %v4702, %v4719
  %v4730 = vmul.f32 %v4703, %v4719
  %v4731 = vmul.f32 %v4704, %v4719
  %v4732 = vmul.f32 %v4705, %v4719
  %v4733 = vmul.f32 %v4706, %v4719
  %v4734 = vmul.f32 %v4707, %v4719
  %v4735 = vmul.f32 %v4708, %v4719
  %v4736 = vld [vmem:[%s5] sm:$0x1]
  %v4738 = vperm.slane %v4736, 0
  %v4740 = vmul.f32 %v4720, %v4738
  %v4741 = vmul.f32 %v4721, %v4738
  %v4742 = vmul.f32 %v4722, %v4738
  %v4743 = vmul.f32 %v4723, %v4738
  %v4744 = vmul.f32 %v4724, %v4738
  %v4745 = vmul.f32 %v4725, %v4738
  %v4746 = vmul.f32 %v4726, %v4738
  %v4747 = vmul.f32 %v4727, %v4738
  %v4748 = vmul.f32 %v4728, %v4738
  %v4749 = vmul.f32 %v4729, %v4738
  %v4750 = vmul.f32 %v4730, %v4738
  %v4751 = vmul.f32 %v4731, %v4738
  %v4752 = vmul.f32 %v4732, %v4738
  %v4753 = vmul.f32 %v4733, %v4738
  %v4754 = vmul.f32 %v4734, %v4738
  %v4755 = vmul.f32 %v4735, %v4738
  %v4756 = vld [vmem:[%s6] sm:$0x1]
  %v4758 = vperm.slane %v4756, 0
  %v4760 = vadd.f32 %v4740, %v4758
  %v4761 = vadd.f32 %v4741, %v4758
  %v4762 = vadd.f32 %v4742, %v4758
  %v4763 = vadd.f32 %v4743, %v4758
  %v4764 = vadd.f32 %v4744, %v4758
  %v4765 = vadd.f32 %v4745, %v4758
  %v4766 = vadd.f32 %v4746, %v4758
  %v4767 = vadd.f32 %v4747, %v4758
  %v4768 = vadd.f32 %v4748, %v4758
  %v4769 = vadd.f32 %v4749, %v4758
  %v4770 = vadd.f32 %v4750, %v4758
  %v4771 = vadd.f32 %v4751, %v4758
  %v4772 = vadd.f32 %v4752, %v4758
  %v4773 = vadd.f32 %v4753, %v4758
  %v4774 = vadd.f32 %v4754, %v4758
  %v4775 = vadd.f32 %v4755, %v4758
  %v4776 = vadd.f32 %v4760, %v27
  %v4777 = vadd.f32 %v4761, %v28
  %v4778 = vadd.f32 %v4762, %v29
  %v4779 = vadd.f32 %v4763, %v30
  %v4780 = vadd.f32 %v4764, %v31
  %v4781 = vadd.f32 %v4765, %v32
  %v4782 = vadd.f32 %v4766, %v33
  %v4783 = vadd.f32 %v4767, %v34
  %v4784 = vadd.f32 %v4768, %v35
  %v4785 = vadd.f32 %v4769, %v36
  %v4786 = vadd.f32 %v4770, %v37
  %v4787 = vadd.f32 %v4771, %v38
  %v4788 = vadd.f32 %v4772, %v39
  %v4789 = vadd.f32 %v4773, %v40
  %v4790 = vadd.f32 %v4774, %v41
  %v4791 = vadd.f32 %v4775, %v42
  %v4792 = vmax.f32 %v4776, 0.0
  %v4793 = vmax.f32 %v4777, 0.0
  %v4794 = vmax.f32 %v4778, 0.0
  %v4795 = vmax.f32 %v4779, 0.0
  %v4796 = vmax.f32 %v4780, 0.0
  %v4797 = vmax.f32 %v4781, 0.0
  %v4798 = vmax.f32 %v4782, 0.0
  %v4799 = vmax.f32 %v4783, 0.0
  %v4800 = vmax.f32 %v4784, 0.0
  %v4801 = vmax.f32 %v4785, 0.0
  %v4802 = vmax.f32 %v4786, 0.0
  %v4803 = vmax.f32 %v4787, 0.0
  %v4804 = vmax.f32 %v4788, 0.0
  %v4805 = vmax.f32 %v4789, 0.0
  %v4806 = vmax.f32 %v4790, 0.0
  %v4807 = vmax.f32 %v4791, 0.0
  %4808 = vst.msk [vmem:[%s7] sm:$0xff] %vm431, %v4792
  %4809 = vst.msk [vmem:[%s7 + $0x8] sm:$0xff] %vm431, %v4793
  %4810 = vst.msk [vmem:[%s7 + $0x10] sm:$0xff] %vm431, %v4794
  %4811 = vst.msk [vmem:[%s7 + $0x18] sm:$0xff] %vm431, %v4795
  %4812 = vst.msk [vmem:[%s7 + $0x20] sm:$0xff] %vm431, %v4796
  %4813 = vst.msk [vmem:[%s7 + $0x28] sm:$0xff] %vm431, %v4797
  %4814 = vst.msk [vmem:[%s7 + $0x30] sm:$0xff] %vm431, %v4798
  %4815 = vst.msk [vmem:[%s7 + $0x38] sm:$0xff] %vm431, %v4799
  %4816 = vst.msk [vmem:[%s7 + $0x40] sm:$0xff] %vm431, %v4800
  %4817 = vst.msk [vmem:[%s7 + $0x48] sm:$0xff] %vm431, %v4801
  %4818 = vst.msk [vmem:[%s7 + $0x50] sm:$0xff] %vm431, %v4802
  %4819 = vst.msk [vmem:[%s7 + $0x58] sm:$0xff] %vm431, %v4803
  %4820 = vst.msk [vmem:[%s7 + $0x60] sm:$0xff] %vm431, %v4804
  %4821 = vst.msk [vmem:[%s7 + $0x68] sm:$0xff] %vm431, %v4805
  %4822 = vst.msk [vmem:[%s7 + $0x70] sm:$0xff] %vm431, %v4806
  %4823 = vst.msk [vmem:[%s7 + $0x78] sm:$0xff] %vm431, %v4807
  // Predicated region
  $region30: #{tpu_custom_call.1} parent=0 // pred_check
    _
  $region31: #{tpu_custom_call.1} parent=0 // pred_check_branch
    %4825 = sbr.rel (0) target = $region33
  $region32: #{tpu_custom_call.1} parent=0 // pred_region
    _
  $region33: #{tpu_custom_call.1} parent=0 // pred_fallthru
    _
  // Predicated region
  $region34: #{tpu_custom_call.1} parent=0 // pred_check
    _
  $region35: #{tpu_custom_call.1} parent=0 // pred_check_branch
    %4827 = sbr.rel (0) target = $region37
  $region36: #{tpu_custom_call.1} parent=0 // pred_region
    _
  $region37: #{tpu_custom_call.1} parent=0 // pred_fallthru
    _

</llo_original>
